<compile_context>
chip_gen: v7x
topology: tpu7x:2x2x1
jax: 0.10.0
libtpu: 0.0.40
codegen_flags: <defaults>
</compile_context>

<pallas_src>
import math
import numpy as np
import jax
import jax.numpy as jnp
from jax.experimental import pallas as pl
from jax.experimental.pallas import tpu as pltpu

# ---------------------------------------------------------------- config
VOCAB_SIZE = 10
BLOCK_SIZE = 24
N_LAYER = 2
N_HEAD = 2
N_EMBD = 32
OBS_DIM = 3
ACT_DIM = 1
TRANSITION_DIM = OBS_DIM + ACT_DIM + 2          # 6 (obs + act + reward + value)
STOP_TOKEN = VOCAB_SIZE * TRANSITION_DIM        # 60
HEAD_DIM = N_EMBD // N_HEAD
LN_EPS = 1e-5
V_PAD = 128                                     # lane-dense head output width


# ---------------------------------------------------------------- kernel helpers
def _layernorm(x, w, b):
    mu = jnp.mean(x, axis=-1, keepdims=True)
    xc = x - mu
    var = jnp.mean(xc * xc, axis=-1, keepdims=True)
    inv = jax.lax.rsqrt(var + LN_EPS)
    return xc * inv * w + b


def _gelu_exact(x):
    # PyTorch nn.GELU() default (erf form)
    return 0.5 * x * (1.0 + jax.lax.erf(x * (1.0 / math.sqrt(2.0))))


# ---------------------------------------------------------------- fused GPT kernel
def _gpt_kernel(x_ref, mask_ref, sel_ref,
                ln1w_ref, ln1b_ref, wq_ref, bq_ref, wk_ref, bk_ref,
                wv_ref, bv_ref, wp_ref, bp_ref, ln2w_ref, ln2b_ref,
                w1_ref, b1_ref, w2_ref, b2_ref,
                lnfw_ref, lnfb_ref, headw_ref,
                o_ref):
    x = x_ref[0]                      # (T, C)
    madd = mask_ref[...]              # (T, T) additive mask (0 / -1e30)

    # hoist all weight loads (tiny, VMEM resident)
    ln1w = ln1w_ref[...]; ln1b = ln1b_ref[...]
    wq = wq_ref[...]; bq = bq_ref[...]
    wk = wk_ref[...]; bk = bk_ref[...]
    wv = wv_ref[...]; bv = bv_ref[...]
    wp = wp_ref[...]; bp = bp_ref[...]
    ln2w = ln2w_ref[...]; ln2b = ln2b_ref[...]
    w1 = w1_ref[...]; b1 = b1_ref[...]
    w2 = w2_ref[...]; b2 = b2_ref[...]

    for l in range(N_LAYER):
        # --- causal self-attention (per-head weights; no lane slicing / concat)
        h = _layernorm(x, ln1w[l], ln1b[l])
        y = None
        for hh in range(N_HEAD):
            qh = jnp.dot(h, wq[l, hh], preferred_element_type=jnp.float32) + bq[l, hh]
            kh = jnp.dot(h, wk[l, hh], preferred_element_type=jnp.float32) + bk[l, hh]
            vh = jnp.dot(h, wv[l, hh], preferred_element_type=jnp.float32) + bv[l, hh]
            # att = q @ k^T (contract last dims of both; scale already folded in wq/bq)
            att = jax.lax.dot_general(qh, kh, (((1,), (1,)), ((), ())),
                                      preferred_element_type=jnp.float32) + madd
            att = att - jnp.max(att, axis=-1, keepdims=True)
            p = jnp.exp(att)
            p = p * pl.reciprocal(jnp.sum(p, axis=-1, keepdims=True), approx=True)
            oh = jnp.dot(p, vh, preferred_element_type=jnp.float32)          # (T, HD)
            ph = jnp.dot(oh, wp[l, hh], preferred_element_type=jnp.float32)  # (T, C)
            y = ph if y is None else y + ph
        x = x + y + bp[l]

        # --- MLP
        h2 = _layernorm(x, ln2w[l], ln2b[l])
        m = jnp.dot(h2, w1[l], preferred_element_type=jnp.float32) + b1[l]
        m = _gelu_exact(m)
        x = x + jnp.dot(m, w2[l], preferred_element_type=jnp.float32) + b2[l]

    # --- final layernorm
    x = _layernorm(x, lnfw_ref[...], lnfb_ref[...])

    # --- EinLinear head, lane-dense output (V padded to 128)
    sel = sel_ref[...]                # (E, T, 1) one-hot of (t % E == e)
    headw = headw_ref[...]            # (E, C, V_PAD), pre-transposed + zero-padded
    logits = None
    for e in range(TRANSITION_DIM):
        part = jnp.dot(x * sel[e], headw[e], preferred_element_type=jnp.float32)
        logits = part if logits is None else logits + part
    o_ref[0] = logits


def gpt_forward(idx, kp, mask_full):
    b, t = idx.shape
    assert t <= BLOCK_SIZE, 'Cannot forward, model block size is exhausted.'

    # offset_tokens + embedding gather (glue: integer indexing / gather)
    n_states = int(math.ceil(t / TRANSITION_DIM))
    offsets = jnp.tile(jnp.arange(TRANSITION_DIM, dtype=jnp.int32) * VOCAB_SIZE, n_states)[:t]
    offset_idx = jnp.where(idx == VOCAB_SIZE, STOP_TOKEN, idx + offsets[None, :])
    x = jnp.take(kp['tok_emb'], offset_idx, axis=0) + kp['pos_emb'][:, :t, :]

    # additive attention mask (0 allowed / -1e30 masked)
    mask_add = jnp.where(mask_full[:t, :t] == 0.0,
                         jnp.float32(-1e30), jnp.float32(0.0))
    # one-hot selection of which EinLinear weight each row uses (static, built on host)
    sel = jnp.asarray(
        (np.arange(t)[None, :] % TRANSITION_DIM ==
         np.arange(TRANSITION_DIM)[:, None]).astype(np.float32))[:, :, None]   # (E, T, 1)

    weights = [kp[k] for k in (
        'ln1_w', 'ln1_b', 'wq', 'bq', 'wk', 'bk', 'wv', 'bv', 'wp', 'bp',
        'ln2_w', 'ln2_b', 'w1', 'b1', 'w2', 'b2', 'lnf_w', 'lnf_b', 'head_w')]

    in_specs = [pl.BlockSpec((1, t, N_EMBD), lambda bb: (bb, 0, 0)),
                pl.BlockSpec((t, t), lambda bb: (0, 0)),
                pl.BlockSpec((TRANSITION_DIM, t, 1), lambda bb: (0, 0, 0))]
    in_specs += [pl.BlockSpec(w.shape, lambda bb, _n=w.ndim: (0,) * _n) for w in weights]

    out = pl.pallas_call(
        _gpt_kernel,
        out_shape=jax.ShapeDtypeStruct((b, t, V_PAD), jnp.float32),
        grid=(b,),
        in_specs=in_specs,
        out_specs=pl.BlockSpec((1, t, V_PAD), lambda bb: (bb, 0, 0)),
        compiler_params=pltpu.CompilerParams(dimension_semantics=("parallel",)),
    )(x, mask_add, sel, *weights)

    return out[:, :, :VOCAB_SIZE + 1]   # drop lane padding; loss is None (no targets)


# ---------------------------------------------------------------- parameters
def init_params(key):
    keys = iter(jax.random.split(key, 32))

    def nrm(shape):
        return 0.02 * jax.random.normal(next(keys), shape, jnp.float32)

    params = {
        'tok_emb': nrm((VOCAB_SIZE * TRANSITION_DIM + 1, N_EMBD)),
        'pos_emb': nrm((1, BLOCK_SIZE, N_EMBD)),   # synthetic (module inits to zeros)
        'lnf_w': jnp.ones((1, N_EMBD), jnp.float32),
        'lnf_b': jnp.zeros((1, N_EMBD), jnp.float32),
        'head_w': nrm((TRANSITION_DIM, VOCAB_SIZE + 1, N_EMBD)),
        'blocks': [],
    }
    for _ in range(N_LAYER):
        params['blocks'].append(dict(
            ln1_w=jnp.ones((1, N_EMBD), jnp.float32), ln1_b=jnp.zeros((1, N_EMBD), jnp.float32),
            wq=nrm((N_EMBD, N_EMBD)), bq=jnp.zeros((1, N_EMBD), jnp.float32),
            wk=nrm((N_EMBD, N_EMBD)), bk=jnp.zeros((1, N_EMBD), jnp.float32),
            wv=nrm((N_EMBD, N_EMBD)), bv=jnp.zeros((1, N_EMBD), jnp.float32),
            wp=nrm((N_EMBD, N_EMBD)), bp=jnp.zeros((1, N_EMBD), jnp.float32),
            ln2_w=jnp.ones((1, N_EMBD), jnp.float32), ln2_b=jnp.zeros((1, N_EMBD), jnp.float32),
            w1=nrm((N_EMBD, 4 * N_EMBD)), b1=jnp.zeros((1, 4 * N_EMBD), jnp.float32),
            w2=nrm((4 * N_EMBD, N_EMBD)), b2=jnp.zeros((1, N_EMBD), jnp.float32),
        ))
    return params


def prepare_kernel_params(params):
    """One-time repack of logical params into the kernel layout:
    per-head split, scale folding, stacked layers, transposed + lane-padded head."""
    L, H, C, HD = N_LAYER, N_HEAD, N_EMBD, HEAD_DIM
    scale = 1.0 / math.sqrt(HD)

    def stack(key):
        return jnp.stack([blk[key] for blk in params['blocks']], axis=0)

    def split_w(w):   # (L, C, C) -> (L, H, C, HD)  (head hh = output cols hh*HD:(hh+1)*HD)
        return w.reshape(L, C, H, HD).transpose(0, 2, 1, 3)

    def split_b(b):   # (L, 1, C) -> (L, H, 1, HD)
        return b.reshape(L, 1, H, HD).transpose(0, 2, 1, 3)

    wq = split_w(stack('wq')) * scale
    bq = split_b(stack('bq')) * scale
    wk = split_w(stack('wk'))
    bk = split_b(stack('bk'))
    wv = split_w(stack('wv'))
    bv = split_b(stack('bv'))
    wp = stack('wp').reshape(L, H, HD, C)           # head hh = input rows hh*HD:(hh+1)*HD

    head_w = params['head_w']                       # (E, V, C), applied as x @ W[e].T
    V = head_w.shape[1]
    head_w_t = jnp.transpose(head_w, (0, 2, 1))     # (E, C, V)
    head_w_pad = jnp.zeros((TRANSITION_DIM, C, V_PAD), jnp.float32).at[:, :, :V].set(head_w_t)

    return {
        'tok_emb': params['tok_emb'], 'pos_emb': params['pos_emb'],
        'ln1_w': stack('ln1_w'), 'ln1_b': stack('ln1_b'),
        'wq': wq, 'bq': bq, 'wk': wk, 'bk': bk, 'wv': wv, 'bv': bv,
        'wp': wp, 'bp': stack('bp'),
        'ln2_w': stack('ln2_w'), 'ln2_b': stack('ln2_b'),
        'w1': stack('w1'), 'b1': stack('b1'),
        'w2': stack('w2'), 'b2': stack('b2'),
        'lnf_w': params['lnf_w'], 'lnf_b': params['lnf_b'],
        'head_w': head_w_pad,
    }


def build_attention_mask():
    mask = np.tril(np.ones((BLOCK_SIZE, BLOCK_SIZE), dtype=np.float32))
    joined_dim = OBS_DIM + ACT_DIM + 2
    mask[:, joined_dim - 1::joined_dim] = 0.0
    return jnp.asarray(mask)


# ---------------------------------------------------------------- pure-JAX reference
def gpt_forward_ref(idx, params, mask_full):
    b, t = idx.shape
    n_states = int(math.ceil(t / TRANSITION_DIM))
    offsets = jnp.tile(jnp.arange(TRANSITION_DIM, dtype=jnp.int32) * VOCAB_SIZE, n_states)[:t]
    offset_idx = jnp.where(idx == VOCAB_SIZE, STOP_TOKEN, idx + offsets[None, :])
    x = jnp.take(params['tok_emb'], offset_idx, axis=0) + params['pos_emb'][:, :t, :]
    mask = mask_full[:t, :t]

    def ln(x, w, b):
        mu = x.mean(-1, keepdims=True)
        xc = x - mu
        var = (xc * xc).mean(-1, keepdims=True)
        return xc / jnp.sqrt(var + LN_EPS) * w + b

    for blk in params['blocks']:
        h = ln(x, blk['ln1_w'], blk['ln1_b'])
        q = (h @ blk['wq'] + blk['bq']).reshape(b, t, N_HEAD, HEAD_DIM).transpose(0, 2, 1, 3)
        k = (h @ blk['wk'] + blk['bk']).reshape(b, t, N_HEAD, HEAD_DIM).transpose(0, 2, 1, 3)
        v = (h @ blk['wv'] + blk['bv']).reshape(b, t, N_HEAD, HEAD_DIM).transpose(0, 2, 1, 3)
        att = jnp.einsum('bhtd,bhsd->bhts', q, k) * (1.0 / math.sqrt(HEAD_DIM))
        att = jnp.where(mask[None, None] == 0.0, -jnp.inf, att)
        att = jax.nn.softmax(att, axis=-1)
        y = jnp.einsum('bhts,bhsd->bhtd', att, v).transpose(0, 2, 1, 3).reshape(b, t, N_EMBD)
        x = x + (y @ blk['wp'] + blk['bp'])
        h2 = ln(x, blk['ln2_w'], blk['ln2_b'])
        m = h2 @ blk['w1'] + blk['b1']
        m = 0.5 * m * (1.0 + jax.scipy.special.erf(m / math.sqrt(2.0)))
        x = x + (m @ blk['w2'] + blk['b2'])
    x = ln(x, params['lnf_w'], params['lnf_b'])
    n_pad = (TRANSITION_DIM - t % TRANSITION_DIM) % TRANSITION_DIM
    if n_pad > 0:
        x = jnp.concatenate([x, jnp.zeros((b, n_pad, N_EMBD), jnp.float32)], axis=1)
    x_pad = x.reshape(-1, TRANSITION_DIM, N_EMBD)
    logits = jnp.einsum('eoi,bei->beo', params['head_w'], x_pad)
    return logits.reshape(b, t + n_pad, VOCAB_SIZE + 1)[:, :t]


# ---------------------------------------------------------------- main
if __name__ == "__main__":
    key = jax.random.PRNGKey(0)
    k_param, k_idx = jax.random.split(key)

    params = init_params(k_param)
    kparams = prepare_kernel_params(params)
    mask_full = build_attention_mask()

    B, T = 2, 10   # T not a multiple of transition_dim -> exercises the e = t % E selection
    idx = jax.random.randint(k_idx, (B, T), 0, VOCAB_SIZE + 1, dtype=jnp.int32)

    logits = jax.block_until_ready(gpt_forward(idx, kparams, mask_full))
    ref = jax.block_until_ready(gpt_forward_ref(idx, params, mask_full))

    assert logits.shape == (B, T, VOCAB_SIZE + 1), logits.shape
    np.testing.assert_allclose(np.asarray(logits), np.asarray(ref), rtol=2e-2, atol=2e-2)

    print("KERNEL_OK")
</pallas_src>

<mosaic_0001>
module attributes {stable_mosaic.version = 11 : i64} {
  func.func @_gpt_kernel(%arg0: i32, %arg1: memref<1x10x32xf32, #tpu.memory_space<vmem>>, %arg2: memref<10x10xf32, #tpu.memory_space<vmem>>, %arg3: memref<6x10x1xf32, #tpu.memory_space<vmem>>, %arg4: memref<2x1x32xf32, #tpu.memory_space<vmem>>, %arg5: memref<2x1x32xf32, #tpu.memory_space<vmem>>, %arg6: memref<2x2x32x16xf32, #tpu.memory_space<vmem>>, %arg7: memref<2x2x1x16xf32, #tpu.memory_space<vmem>>, %arg8: memref<2x2x32x16xf32, #tpu.memory_space<vmem>>, %arg9: memref<2x2x1x16xf32, #tpu.memory_space<vmem>>, %arg10: memref<2x2x32x16xf32, #tpu.memory_space<vmem>>, %arg11: memref<2x2x1x16xf32, #tpu.memory_space<vmem>>, %arg12: memref<2x2x16x32xf32, #tpu.memory_space<vmem>>, %arg13: memref<2x1x32xf32, #tpu.memory_space<vmem>>, %arg14: memref<2x1x32xf32, #tpu.memory_space<vmem>>, %arg15: memref<2x1x32xf32, #tpu.memory_space<vmem>>, %arg16: memref<2x32x128xf32, #tpu.memory_space<vmem>>, %arg17: memref<2x1x128xf32, #tpu.memory_space<vmem>>, %arg18: memref<2x128x32xf32, #tpu.memory_space<vmem>>, %arg19: memref<2x1x32xf32, #tpu.memory_space<vmem>>, %arg20: memref<1x32xf32, #tpu.memory_space<vmem>>, %arg21: memref<1x32xf32, #tpu.memory_space<vmem>>, %arg22: memref<6x32x128xf32, #tpu.memory_space<vmem>>, %arg23: memref<1x10x128xf32, #tpu.memory_space<vmem>>) attributes {dimension_semantics = [#tpu.dimension_semantics<parallel>], iteration_bounds = array<i64: 2>, scalar_prefetch = 0 : i64, scratch_operands = 0 : i64, tpu.core_type = #tpu.core_type<tc>, window_params = [{transform_indices = @transform_0, window_bounds = array<i64: 1, 10, 32>}, {pipeline_mode = #tpu.pipeline_mode<synchronous>, transform_indices = @transform_1, window_bounds = array<i64: 10, 10>}, {pipeline_mode = #tpu.pipeline_mode<synchronous>, transform_indices = @transform_2, window_bounds = array<i64: 6, 10, 1>}, {pipeline_mode = #tpu.pipeline_mode<synchronous>, transform_indices = @transform_3, window_bounds = array<i64: 2, 1, 32>}, {pipeline_mode = #tpu.pipeline_mode<synchronous>, transform_indices = @transform_4, window_bounds = array<i64: 2, 1, 32>}, {pipeline_mode = #tpu.pipeline_mode<synchronous>, transform_indices = @transform_5, window_bounds = array<i64: 2, 2, 32, 16>}, {pipeline_mode = #tpu.pipeline_mode<synchronous>, transform_indices = @transform_6, window_bounds = array<i64: 2, 2, 1, 16>}, {pipeline_mode = #tpu.pipeline_mode<synchronous>, transform_indices = @transform_7, window_bounds = array<i64: 2, 2, 32, 16>}, {pipeline_mode = #tpu.pipeline_mode<synchronous>, transform_indices = @transform_8, window_bounds = array<i64: 2, 2, 1, 16>}, {pipeline_mode = #tpu.pipeline_mode<synchronous>, transform_indices = @transform_9, window_bounds = array<i64: 2, 2, 32, 16>}, {pipeline_mode = #tpu.pipeline_mode<synchronous>, transform_indices = @transform_10, window_bounds = array<i64: 2, 2, 1, 16>}, {pipeline_mode = #tpu.pipeline_mode<synchronous>, transform_indices = @transform_11, window_bounds = array<i64: 2, 2, 16, 32>}, {pipeline_mode = #tpu.pipeline_mode<synchronous>, transform_indices = @transform_12, window_bounds = array<i64: 2, 1, 32>}, {pipeline_mode = #tpu.pipeline_mode<synchronous>, transform_indices = @transform_13, window_bounds = array<i64: 2, 1, 32>}, {pipeline_mode = #tpu.pipeline_mode<synchronous>, transform_indices = @transform_14, window_bounds = array<i64: 2, 1, 32>}, {pipeline_mode = #tpu.pipeline_mode<synchronous>, transform_indices = @transform_15, window_bounds = array<i64: 2, 32, 128>}, {pipeline_mode = #tpu.pipeline_mode<synchronous>, transform_indices = @transform_16, window_bounds = array<i64: 2, 1, 128>}, {pipeline_mode = #tpu.pipeline_mode<synchronous>, transform_indices = @transform_17, window_bounds = array<i64: 2, 128, 32>}, {pipeline_mode = #tpu.pipeline_mode<synchronous>, transform_indices = @transform_18, window_bounds = array<i64: 2, 1, 32>}, {pipeline_mode = #tpu.pipeline_mode<synchronous>, transform_indices = @transform_19, window_bounds = array<i64: 1, 32>}, {pipeline_mode = #tpu.pipeline_mode<synchronous>, transform_indices = @transform_20, window_bounds = array<i64: 1, 32>}, {pipeline_mode = #tpu.pipeline_mode<synchronous>, transform_indices = @transform_21, window_bounds = array<i64: 6, 32, 128>}, {transform_indices = @transform_22, window_bounds = array<i64: 1, 10, 128>}]} {
    %c0 = arith.constant 0 : index
    %c0_0 = arith.constant 0 : index
    %c0_1 = arith.constant 0 : index
    %0 = vector.load %arg1[%c0, %c0_0, %c0_1] : memref<1x10x32xf32, #tpu.memory_space<vmem>>, vector<1x10x32xf32>
    %1 = vector.shape_cast %0 : vector<1x10x32xf32> to vector<10x32xf32>
    %c0_2 = arith.constant 0 : index
    %c0_3 = arith.constant 0 : index
    %2 = vector.load %arg2[%c0_2, %c0_3] : memref<10x10xf32, #tpu.memory_space<vmem>>, vector<10x10xf32>
    %c0_4 = arith.constant 0 : index
    %c0_5 = arith.constant 0 : index
    %c0_6 = arith.constant 0 : index
    %3 = vector.load %arg4[%c0_4, %c0_5, %c0_6] : memref<2x1x32xf32, #tpu.memory_space<vmem>>, vector<2x1x32xf32>
    %c0_7 = arith.constant 0 : index
    %c0_8 = arith.constant 0 : index
    %c0_9 = arith.constant 0 : index
    %4 = vector.load %arg5[%c0_7, %c0_8, %c0_9] : memref<2x1x32xf32, #tpu.memory_space<vmem>>, vector<2x1x32xf32>
    %c0_10 = arith.constant 0 : index
    %c0_11 = arith.constant 0 : index
    %c0_12 = arith.constant 0 : index
    %c0_13 = arith.constant 0 : index
    %5 = vector.load %arg6[%c0_10, %c0_11, %c0_12, %c0_13] : memref<2x2x32x16xf32, #tpu.memory_space<vmem>>, vector<2x2x32x16xf32>
    %c0_14 = arith.constant 0 : index
    %c0_15 = arith.constant 0 : index
    %c0_16 = arith.constant 0 : index
    %c0_17 = arith.constant 0 : index
    %6 = vector.load %arg7[%c0_14, %c0_15, %c0_16, %c0_17] : memref<2x2x1x16xf32, #tpu.memory_space<vmem>>, vector<2x2x1x16xf32>
    %c0_18 = arith.constant 0 : index
    %c0_19 = arith.constant 0 : index
    %c0_20 = arith.constant 0 : index
    %c0_21 = arith.constant 0 : index
    %7 = vector.load %arg8[%c0_18, %c0_19, %c0_20, %c0_21] : memref<2x2x32x16xf32, #tpu.memory_space<vmem>>, vector<2x2x32x16xf32>
    %c0_22 = arith.constant 0 : index
    %c0_23 = arith.constant 0 : index
    %c0_24 = arith.constant 0 : index
    %c0_25 = arith.constant 0 : index
    %8 = vector.load %arg9[%c0_22, %c0_23, %c0_24, %c0_25] : memref<2x2x1x16xf32, #tpu.memory_space<vmem>>, vector<2x2x1x16xf32>
    %c0_26 = arith.constant 0 : index
    %c0_27 = arith.constant 0 : index
    %c0_28 = arith.constant 0 : index
    %c0_29 = arith.constant 0 : index
    %9 = vector.load %arg10[%c0_26, %c0_27, %c0_28, %c0_29] : memref<2x2x32x16xf32, #tpu.memory_space<vmem>>, vector<2x2x32x16xf32>
    %c0_30 = arith.constant 0 : index
    %c0_31 = arith.constant 0 : index
    %c0_32 = arith.constant 0 : index
    %c0_33 = arith.constant 0 : index
    %10 = vector.load %arg11[%c0_30, %c0_31, %c0_32, %c0_33] : memref<2x2x1x16xf32, #tpu.memory_space<vmem>>, vector<2x2x1x16xf32>
    %c0_34 = arith.constant 0 : index
    %c0_35 = arith.constant 0 : index
    %c0_36 = arith.constant 0 : index
    %c0_37 = arith.constant 0 : index
    %11 = vector.load %arg12[%c0_34, %c0_35, %c0_36, %c0_37] : memref<2x2x16x32xf32, #tpu.memory_space<vmem>>, vector<2x2x16x32xf32>
    %c0_38 = arith.constant 0 : index
    %c0_39 = arith.constant 0 : index
    %c0_40 = arith.constant 0 : index
    %12 = vector.load %arg13[%c0_38, %c0_39, %c0_40] : memref<2x1x32xf32, #tpu.memory_space<vmem>>, vector<2x1x32xf32>
    %c0_41 = arith.constant 0 : index
    %c0_42 = arith.constant 0 : index
    %c0_43 = arith.constant 0 : index
    %13 = vector.load %arg14[%c0_41, %c0_42, %c0_43] : memref<2x1x32xf32, #tpu.memory_space<vmem>>, vector<2x1x32xf32>
    %c0_44 = arith.constant 0 : index
    %c0_45 = arith.constant 0 : index
    %c0_46 = arith.constant 0 : index
    %14 = vector.load %arg15[%c0_44, %c0_45, %c0_46] : memref<2x1x32xf32, #tpu.memory_space<vmem>>, vector<2x1x32xf32>
    %c0_47 = arith.constant 0 : index
    %c0_48 = arith.constant 0 : index
    %c0_49 = arith.constant 0 : index
    %15 = vector.load %arg16[%c0_47, %c0_48, %c0_49] : memref<2x32x128xf32, #tpu.memory_space<vmem>>, vector<2x32x128xf32>
    %c0_50 = arith.constant 0 : index
    %c0_51 = arith.constant 0 : index
    %c0_52 = arith.constant 0 : index
    %16 = vector.load %arg17[%c0_50, %c0_51, %c0_52] : memref<2x1x128xf32, #tpu.memory_space<vmem>>, vector<2x1x128xf32>
    %c0_53 = arith.constant 0 : index
    %c0_54 = arith.constant 0 : index
    %c0_55 = arith.constant 0 : index
    %17 = vector.load %arg18[%c0_53, %c0_54, %c0_55] : memref<2x128x32xf32, #tpu.memory_space<vmem>>, vector<2x128x32xf32>
    %c0_56 = arith.constant 0 : index
    %c0_57 = arith.constant 0 : index
    %c0_58 = arith.constant 0 : index
    %18 = vector.load %arg19[%c0_56, %c0_57, %c0_58] : memref<2x1x32xf32, #tpu.memory_space<vmem>>, vector<2x1x32xf32>
    %19 = vector.extract_strided_slice %3 {offsets = [0, 0, 0], sizes = [1, 1, 32], strides = [1, 1, 1]} : vector<2x1x32xf32> to vector<1x1x32xf32>
    %20 = vector.shape_cast %19 : vector<1x1x32xf32> to vector<1x32xf32>
    %21 = vector.extract_strided_slice %4 {offsets = [0, 0, 0], sizes = [1, 1, 32], strides = [1, 1, 1]} : vector<2x1x32xf32> to vector<1x1x32xf32>
    %22 = vector.shape_cast %21 : vector<1x1x32xf32> to vector<1x32xf32>
    %cst = arith.constant dense<0.000000e+00> : vector<10xf32>
    %23 = vector.multi_reduction <add>, %1, %cst [1] : vector<10x32xf32> to vector<10xf32>
    %24 = vector.shape_cast %23 : vector<10xf32> to vector<10x1xf32>
    %cst_59 = arith.constant 3.200000e+01 : f32
    %25 = vector.broadcast %cst_59 : f32 to vector<10x1xf32>
    %26 = arith.divf %24, %25 : vector<10x1xf32>
    %27 = vector.broadcast %26 : vector<10x1xf32> to vector<10x32xf32>
    %28 = arith.subf %1, %27 : vector<10x32xf32>
    %29 = arith.mulf %28, %28 : vector<10x32xf32>
    %cst_60 = arith.constant dense<0.000000e+00> : vector<10xf32>
    %30 = vector.multi_reduction <add>, %29, %cst_60 [1] : vector<10x32xf32> to vector<10xf32>
    %31 = vector.shape_cast %30 : vector<10xf32> to vector<10x1xf32>
    %cst_61 = arith.constant 3.200000e+01 : f32
    %32 = vector.broadcast %cst_61 : f32 to vector<10x1xf32>
    %33 = arith.divf %31, %32 : vector<10x1xf32>
    %cst_62 = arith.constant 9.99999974E-6 : f32
    %34 = vector.broadcast %cst_62 : f32 to vector<10x1xf32>
    %35 = arith.addf %33, %34 : vector<10x1xf32>
    %36 = math.rsqrt %35 : vector<10x1xf32>
    %37 = vector.broadcast %36 : vector<10x1xf32> to vector<10x32xf32>
    %38 = arith.mulf %28, %37 : vector<10x32xf32>
    %39 = vector.broadcast %20 : vector<1x32xf32> to vector<10x32xf32>
    %40 = arith.mulf %38, %39 : vector<10x32xf32>
    %41 = vector.broadcast %22 : vector<1x32xf32> to vector<10x32xf32>
    %42 = arith.addf %40, %41 : vector<10x32xf32>
    %43 = vector.extract_strided_slice %5 {offsets = [0, 0, 0, 0], sizes = [1, 1, 32, 16], strides = [1, 1, 1, 1]} : vector<2x2x32x16xf32> to vector<1x1x32x16xf32>
    %44 = vector.shape_cast %43 : vector<1x1x32x16xf32> to vector<32x16xf32>
    %cst_63 = arith.constant dense<0.000000e+00> : vector<10x16xf32>
    %45 = tpu.matmul %42, %44, %cst_63 {dimension_numbers = #tpu.dot_dimension_numbers<[1], [0], [0], [1], [0, 0, 1, 1], [], []>} : vector<10x32xf32>, vector<32x16xf32>, vector<10x16xf32> -> vector<10x16xf32>
    %46 = vector.extract_strided_slice %6 {offsets = [0, 0, 0, 0], sizes = [1, 1, 1, 16], strides = [1, 1, 1, 1]} : vector<2x2x1x16xf32> to vector<1x1x1x16xf32>
    %47 = vector.shape_cast %46 : vector<1x1x1x16xf32> to vector<1x16xf32>
    %48 = vector.broadcast %47 : vector<1x16xf32> to vector<10x16xf32>
    %49 = arith.addf %45, %48 : vector<10x16xf32>
    %50 = vector.extract_strided_slice %7 {offsets = [0, 0, 0, 0], sizes = [1, 1, 32, 16], strides = [1, 1, 1, 1]} : vector<2x2x32x16xf32> to vector<1x1x32x16xf32>
    %51 = vector.shape_cast %50 : vector<1x1x32x16xf32> to vector<32x16xf32>
    %cst_64 = arith.constant dense<0.000000e+00> : vector<10x16xf32>
    %52 = tpu.matmul %42, %51, %cst_64 {dimension_numbers = #tpu.dot_dimension_numbers<[1], [0], [0], [1], [0, 0, 1, 1], [], []>} : vector<10x32xf32>, vector<32x16xf32>, vector<10x16xf32> -> vector<10x16xf32>
    %53 = vector.extract_strided_slice %8 {offsets = [0, 0, 0, 0], sizes = [1, 1, 1, 16], strides = [1, 1, 1, 1]} : vector<2x2x1x16xf32> to vector<1x1x1x16xf32>
    %54 = vector.shape_cast %53 : vector<1x1x1x16xf32> to vector<1x16xf32>
    %55 = vector.broadcast %54 : vector<1x16xf32> to vector<10x16xf32>
    %56 = arith.addf %52, %55 : vector<10x16xf32>
    %57 = vector.extract_strided_slice %9 {offsets = [0, 0, 0, 0], sizes = [1, 1, 32, 16], strides = [1, 1, 1, 1]} : vector<2x2x32x16xf32> to vector<1x1x32x16xf32>
    %58 = vector.shape_cast %57 : vector<1x1x32x16xf32> to vector<32x16xf32>
    %cst_65 = arith.constant dense<0.000000e+00> : vector<10x16xf32>
    %59 = tpu.matmul %42, %58, %cst_65 {dimension_numbers = #tpu.dot_dimension_numbers<[1], [0], [0], [1], [0, 0, 1, 1], [], []>} : vector<10x32xf32>, vector<32x16xf32>, vector<10x16xf32> -> vector<10x16xf32>
    %60 = vector.extract_strided_slice %10 {offsets = [0, 0, 0, 0], sizes = [1, 1, 1, 16], strides = [1, 1, 1, 1]} : vector<2x2x1x16xf32> to vector<1x1x1x16xf32>
    %61 = vector.shape_cast %60 : vector<1x1x1x16xf32> to vector<1x16xf32>
    %62 = vector.broadcast %61 : vector<1x16xf32> to vector<10x16xf32>
    %63 = arith.addf %59, %62 : vector<10x16xf32>
    %cst_66 = arith.constant dense<0.000000e+00> : vector<10x10xf32>
    %64 = tpu.matmul %49, %56, %cst_66 {dimension_numbers = #tpu.dot_dimension_numbers<[1], [1], [0], [0], [0, 0, 1, 0], [], []>} : vector<10x16xf32>, vector<10x16xf32>, vector<10x10xf32> -> vector<10x10xf32>
    %65 = arith.addf %64, %2 : vector<10x10xf32>
    %cst_67 = arith.constant dense<0xFF800000> : vector<10xf32>
    %66 = vector.multi_reduction <maximumf>, %65, %cst_67 [1] : vector<10x10xf32> to vector<10xf32>
    %67 = vector.shape_cast %66 : vector<10xf32> to vector<10x1xf32>
    %68 = vector.broadcast %67 : vector<10x1xf32> to vector<10x10xf32>
    %69 = arith.subf %65, %68 : vector<10x10xf32>
    %70 = math.exp %69 : vector<10x10xf32>
    %cst_68 = arith.constant dense<0.000000e+00> : vector<10xf32>
    %71 = vector.multi_reduction <add>, %70, %cst_68 [1] : vector<10x10xf32> to vector<10xf32>
    %72 = vector.shape_cast %71 : vector<10xf32> to vector<10x1xf32>
    %73 = tpu.reciprocal %72 {approx = true} : vector<10x1xf32> -> vector<10x1xf32>
    %74 = vector.broadcast %73 : vector<10x1xf32> to vector<10x10xf32>
    %75 = arith.mulf %70, %74 : vector<10x10xf32>
    %cst_69 = arith.constant dense<0.000000e+00> : vector<10x16xf32>
    %76 = tpu.matmul %75, %63, %cst_69 {dimension_numbers = #tpu.dot_dimension_numbers<[1], [0], [0], [1], [0, 0, 1, 1], [], []>} : vector<10x10xf32>, vector<10x16xf32>, vector<10x16xf32> -> vector<10x16xf32>
    %77 = vector.extract_strided_slice %11 {offsets = [0, 0, 0, 0], sizes = [1, 1, 16, 32], strides = [1, 1, 1, 1]} : vector<2x2x16x32xf32> to vector<1x1x16x32xf32>
    %78 = vector.shape_cast %77 : vector<1x1x16x32xf32> to vector<16x32xf32>
    %cst_70 = arith.constant dense<0.000000e+00> : vector<10x32xf32>
    %79 = tpu.matmul %76, %78, %cst_70 {dimension_numbers = #tpu.dot_dimension_numbers<[1], [0], [0], [1], [0, 0, 1, 1], [], []>} : vector<10x16xf32>, vector<16x32xf32>, vector<10x32xf32> -> vector<10x32xf32>
    %80 = vector.extract_strided_slice %5 {offsets = [0, 1, 0, 0], sizes = [1, 1, 32, 16], strides = [1, 1, 1, 1]} : vector<2x2x32x16xf32> to vector<1x1x32x16xf32>
    %81 = vector.shape_cast %80 : vector<1x1x32x16xf32> to vector<32x16xf32>
    %cst_71 = arith.constant dense<0.000000e+00> : vector<10x16xf32>
    %82 = tpu.matmul %42, %81, %cst_71 {dimension_numbers = #tpu.dot_dimension_numbers<[1], [0], [0], [1], [0, 0, 1, 1], [], []>} : vector<10x32xf32>, vector<32x16xf32>, vector<10x16xf32> -> vector<10x16xf32>
    %83 = vector.extract_strided_slice %6 {offsets = [0, 1, 0, 0], sizes = [1, 1, 1, 16], strides = [1, 1, 1, 1]} : vector<2x2x1x16xf32> to vector<1x1x1x16xf32>
    %84 = vector.shape_cast %83 : vector<1x1x1x16xf32> to vector<1x16xf32>
    %85 = vector.broadcast %84 : vector<1x16xf32> to vector<10x16xf32>
    %86 = arith.addf %82, %85 : vector<10x16xf32>
    %87 = vector.extract_strided_slice %7 {offsets = [0, 1, 0, 0], sizes = [1, 1, 32, 16], strides = [1, 1, 1, 1]} : vector<2x2x32x16xf32> to vector<1x1x32x16xf32>
    %88 = vector.shape_cast %87 : vector<1x1x32x16xf32> to vector<32x16xf32>
    %cst_72 = arith.constant dense<0.000000e+00> : vector<10x16xf32>
    %89 = tpu.matmul %42, %88, %cst_72 {dimension_numbers = #tpu.dot_dimension_numbers<[1], [0], [0], [1], [0, 0, 1, 1], [], []>} : vector<10x32xf32>, vector<32x16xf32>, vector<10x16xf32> -> vector<10x16xf32>
    %90 = vector.extract_strided_slice %8 {offsets = [0, 1, 0, 0], sizes = [1, 1, 1, 16], strides = [1, 1, 1, 1]} : vector<2x2x1x16xf32> to vector<1x1x1x16xf32>
    %91 = vector.shape_cast %90 : vector<1x1x1x16xf32> to vector<1x16xf32>
    %92 = vector.broadcast %91 : vector<1x16xf32> to vector<10x16xf32>
    %93 = arith.addf %89, %92 : vector<10x16xf32>
    %94 = vector.extract_strided_slice %9 {offsets = [0, 1, 0, 0], sizes = [1, 1, 32, 16], strides = [1, 1, 1, 1]} : vector<2x2x32x16xf32> to vector<1x1x32x16xf32>
    %95 = vector.shape_cast %94 : vector<1x1x32x16xf32> to vector<32x16xf32>
    %cst_73 = arith.constant dense<0.000000e+00> : vector<10x16xf32>
    %96 = tpu.matmul %42, %95, %cst_73 {dimension_numbers = #tpu.dot_dimension_numbers<[1], [0], [0], [1], [0, 0, 1, 1], [], []>} : vector<10x32xf32>, vector<32x16xf32>, vector<10x16xf32> -> vector<10x16xf32>
    %97 = vector.extract_strided_slice %10 {offsets = [0, 1, 0, 0], sizes = [1, 1, 1, 16], strides = [1, 1, 1, 1]} : vector<2x2x1x16xf32> to vector<1x1x1x16xf32>
    %98 = vector.shape_cast %97 : vector<1x1x1x16xf32> to vector<1x16xf32>
    %99 = vector.broadcast %98 : vector<1x16xf32> to vector<10x16xf32>
    %100 = arith.addf %96, %99 : vector<10x16xf32>
    %cst_74 = arith.constant dense<0.000000e+00> : vector<10x10xf32>
    %101 = tpu.matmul %86, %93, %cst_74 {dimension_numbers = #tpu.dot_dimension_numbers<[1], [1], [0], [0], [0, 0, 1, 0], [], []>} : vector<10x16xf32>, vector<10x16xf32>, vector<10x10xf32> -> vector<10x10xf32>
    %102 = arith.addf %101, %2 : vector<10x10xf32>
    %cst_75 = arith.constant dense<0xFF800000> : vector<10xf32>
    %103 = vector.multi_reduction <maximumf>, %102, %cst_75 [1] : vector<10x10xf32> to vector<10xf32>
    %104 = vector.shape_cast %103 : vector<10xf32> to vector<10x1xf32>
    %105 = vector.broadcast %104 : vector<10x1xf32> to vector<10x10xf32>
    %106 = arith.subf %102, %105 : vector<10x10xf32>
    %107 = math.exp %106 : vector<10x10xf32>
    %cst_76 = arith.constant dense<0.000000e+00> : vector<10xf32>
    %108 = vector.multi_reduction <add>, %107, %cst_76 [1] : vector<10x10xf32> to vector<10xf32>
    %109 = vector.shape_cast %108 : vector<10xf32> to vector<10x1xf32>
    %110 = tpu.reciprocal %109 {approx = true} : vector<10x1xf32> -> vector<10x1xf32>
    %111 = vector.broadcast %110 : vector<10x1xf32> to vector<10x10xf32>
    %112 = arith.mulf %107, %111 : vector<10x10xf32>
    %cst_77 = arith.constant dense<0.000000e+00> : vector<10x16xf32>
    %113 = tpu.matmul %112, %100, %cst_77 {dimension_numbers = #tpu.dot_dimension_numbers<[1], [0], [0], [1], [0, 0, 1, 1], [], []>} : vector<10x10xf32>, vector<10x16xf32>, vector<10x16xf32> -> vector<10x16xf32>
    %114 = vector.extract_strided_slice %11 {offsets = [0, 1, 0, 0], sizes = [1, 1, 16, 32], strides = [1, 1, 1, 1]} : vector<2x2x16x32xf32> to vector<1x1x16x32xf32>
    %115 = vector.shape_cast %114 : vector<1x1x16x32xf32> to vector<16x32xf32>
    %cst_78 = arith.constant dense<0.000000e+00> : vector<10x32xf32>
    %116 = tpu.matmul %113, %115, %cst_78 {dimension_numbers = #tpu.dot_dimension_numbers<[1], [0], [0], [1], [0, 0, 1, 1], [], []>} : vector<10x16xf32>, vector<16x32xf32>, vector<10x32xf32> -> vector<10x32xf32>
    %117 = arith.addf %79, %116 : vector<10x32xf32>
    %118 = arith.addf %1, %117 : vector<10x32xf32>
    %119 = vector.extract_strided_slice %12 {offsets = [0, 0, 0], sizes = [1, 1, 32], strides = [1, 1, 1]} : vector<2x1x32xf32> to vector<1x1x32xf32>
    %120 = vector.shape_cast %119 : vector<1x1x32xf32> to vector<1x32xf32>
    %121 = vector.broadcast %120 : vector<1x32xf32> to vector<10x32xf32>
    %122 = arith.addf %118, %121 : vector<10x32xf32>
    %123 = vector.extract_strided_slice %13 {offsets = [0, 0, 0], sizes = [1, 1, 32], strides = [1, 1, 1]} : vector<2x1x32xf32> to vector<1x1x32xf32>
    %124 = vector.shape_cast %123 : vector<1x1x32xf32> to vector<1x32xf32>
    %125 = vector.extract_strided_slice %14 {offsets = [0, 0, 0], sizes = [1, 1, 32], strides = [1, 1, 1]} : vector<2x1x32xf32> to vector<1x1x32xf32>
    %126 = vector.shape_cast %125 : vector<1x1x32xf32> to vector<1x32xf32>
    %cst_79 = arith.constant dense<0.000000e+00> : vector<10xf32>
    %127 = vector.multi_reduction <add>, %122, %cst_79 [1] : vector<10x32xf32> to vector<10xf32>
    %128 = vector.shape_cast %127 : vector<10xf32> to vector<10x1xf32>
    %cst_80 = arith.constant 3.200000e+01 : f32
    %129 = vector.broadcast %cst_80 : f32 to vector<10x1xf32>
    %130 = arith.divf %128, %129 : vector<10x1xf32>
    %131 = vector.broadcast %130 : vector<10x1xf32> to vector<10x32xf32>
    %132 = arith.subf %122, %131 : vector<10x32xf32>
    %133 = arith.mulf %132, %132 : vector<10x32xf32>
    %cst_81 = arith.constant dense<0.000000e+00> : vector<10xf32>
    %134 = vector.multi_reduction <add>, %133, %cst_81 [1] : vector<10x32xf32> to vector<10xf32>
    %135 = vector.shape_cast %134 : vector<10xf32> to vector<10x1xf32>
    %cst_82 = arith.constant 3.200000e+01 : f32
    %136 = vector.broadcast %cst_82 : f32 to vector<10x1xf32>
    %137 = arith.divf %135, %136 : vector<10x1xf32>
    %cst_83 = arith.constant 9.99999974E-6 : f32
    %138 = vector.broadcast %cst_83 : f32 to vector<10x1xf32>
    %139 = arith.addf %137, %138 : vector<10x1xf32>
    %140 = math.rsqrt %139 : vector<10x1xf32>
    %141 = vector.broadcast %140 : vector<10x1xf32> to vector<10x32xf32>
    %142 = arith.mulf %132, %141 : vector<10x32xf32>
    %143 = vector.broadcast %124 : vector<1x32xf32> to vector<10x32xf32>
    %144 = arith.mulf %142, %143 : vector<10x32xf32>
    %145 = vector.broadcast %126 : vector<1x32xf32> to vector<10x32xf32>
    %146 = arith.addf %144, %145 : vector<10x32xf32>
    %147 = vector.extract_strided_slice %15 {offsets = [0, 0, 0], sizes = [1, 32, 128], strides = [1, 1, 1]} : vector<2x32x128xf32> to vector<1x32x128xf32>
    %148 = vector.shape_cast %147 : vector<1x32x128xf32> to vector<32x128xf32>
    %cst_84 = arith.constant dense<0.000000e+00> : vector<10x128xf32>
    %149 = tpu.matmul %146, %148, %cst_84 {dimension_numbers = #tpu.dot_dimension_numbers<[1], [0], [0], [1], [0, 0, 1, 1], [], []>} : vector<10x32xf32>, vector<32x128xf32>, vector<10x128xf32> -> vector<10x128xf32>
    %150 = vector.extract_strided_slice %16 {offsets = [0, 0, 0], sizes = [1, 1, 128], strides = [1, 1, 1]} : vector<2x1x128xf32> to vector<1x1x128xf32>
    %151 = vector.shape_cast %150 : vector<1x1x128xf32> to vector<1x128xf32>
    %152 = vector.broadcast %151 : vector<1x128xf32> to vector<10x128xf32>
    %153 = arith.addf %149, %152 : vector<10x128xf32>
    %cst_85 = arith.constant 5.000000e-01 : f32
    %154 = vector.broadcast %cst_85 : f32 to vector<10x128xf32>
    %155 = arith.mulf %154, %153 : vector<10x128xf32>
    %cst_86 = arith.constant 0.707106769 : f32
    %156 = vector.broadcast %cst_86 : f32 to vector<10x128xf32>
    %157 = arith.mulf %153, %156 : vector<10x128xf32>
    %158 = math.erf %157 : vector<10x128xf32>
    %cst_87 = arith.constant 1.000000e+00 : f32
    %159 = vector.broadcast %cst_87 : f32 to vector<10x128xf32>
    %160 = arith.addf %159, %158 : vector<10x128xf32>
    %161 = arith.mulf %155, %160 : vector<10x128xf32>
    %162 = vector.extract_strided_slice %17 {offsets = [0, 0, 0], sizes = [1, 128, 32], strides = [1, 1, 1]} : vector<2x128x32xf32> to vector<1x128x32xf32>
    %163 = vector.shape_cast %162 : vector<1x128x32xf32> to vector<128x32xf32>
    %cst_88 = arith.constant dense<0.000000e+00> : vector<10x32xf32>
    %164 = tpu.matmul %161, %163, %cst_88 {dimension_numbers = #tpu.dot_dimension_numbers<[1], [0], [0], [1], [0, 0, 1, 1], [], []>} : vector<10x128xf32>, vector<128x32xf32>, vector<10x32xf32> -> vector<10x32xf32>
    %165 = arith.addf %122, %164 : vector<10x32xf32>
    %166 = vector.extract_strided_slice %18 {offsets = [0, 0, 0], sizes = [1, 1, 32], strides = [1, 1, 1]} : vector<2x1x32xf32> to vector<1x1x32xf32>
    %167 = vector.shape_cast %166 : vector<1x1x32xf32> to vector<1x32xf32>
    %168 = vector.broadcast %167 : vector<1x32xf32> to vector<10x32xf32>
    %169 = arith.addf %165, %168 : vector<10x32xf32>
    %170 = vector.extract_strided_slice %3 {offsets = [1, 0, 0], sizes = [1, 1, 32], strides = [1, 1, 1]} : vector<2x1x32xf32> to vector<1x1x32xf32>
    %171 = vector.shape_cast %170 : vector<1x1x32xf32> to vector<1x32xf32>
    %172 = vector.extract_strided_slice %4 {offsets = [1, 0, 0], sizes = [1, 1, 32], strides = [1, 1, 1]} : vector<2x1x32xf32> to vector<1x1x32xf32>
    %173 = vector.shape_cast %172 : vector<1x1x32xf32> to vector<1x32xf32>
    %cst_89 = arith.constant dense<0.000000e+00> : vector<10xf32>
    %174 = vector.multi_reduction <add>, %169, %cst_89 [1] : vector<10x32xf32> to vector<10xf32>
    %175 = vector.shape_cast %174 : vector<10xf32> to vector<10x1xf32>
    %cst_90 = arith.constant 3.200000e+01 : f32
    %176 = vector.broadcast %cst_90 : f32 to vector<10x1xf32>
    %177 = arith.divf %175, %176 : vector<10x1xf32>
    %178 = vector.broadcast %177 : vector<10x1xf32> to vector<10x32xf32>
    %179 = arith.subf %169, %178 : vector<10x32xf32>
    %180 = arith.mulf %179, %179 : vector<10x32xf32>
    %cst_91 = arith.constant dense<0.000000e+00> : vector<10xf32>
    %181 = vector.multi_reduction <add>, %180, %cst_91 [1] : vector<10x32xf32> to vector<10xf32>
    %182 = vector.shape_cast %181 : vector<10xf32> to vector<10x1xf32>
    %cst_92 = arith.constant 3.200000e+01 : f32
    %183 = vector.broadcast %cst_92 : f32 to vector<10x1xf32>
    %184 = arith.divf %182, %183 : vector<10x1xf32>
    %cst_93 = arith.constant 9.99999974E-6 : f32
    %185 = vector.broadcast %cst_93 : f32 to vector<10x1xf32>
    %186 = arith.addf %184, %185 : vector<10x1xf32>
    %187 = math.rsqrt %186 : vector<10x1xf32>
    %188 = vector.broadcast %187 : vector<10x1xf32> to vector<10x32xf32>
    %189 = arith.mulf %179, %188 : vector<10x32xf32>
    %190 = vector.broadcast %171 : vector<1x32xf32> to vector<10x32xf32>
    %191 = arith.mulf %189, %190 : vector<10x32xf32>
    %192 = vector.broadcast %173 : vector<1x32xf32> to vector<10x32xf32>
    %193 = arith.addf %191, %192 : vector<10x32xf32>
    %194 = vector.extract_strided_slice %5 {offsets = [1, 0, 0, 0], sizes = [1, 1, 32, 16], strides = [1, 1, 1, 1]} : vector<2x2x32x16xf32> to vector<1x1x32x16xf32>
    %195 = vector.shape_cast %194 : vector<1x1x32x16xf32> to vector<32x16xf32>
    %cst_94 = arith.constant dense<0.000000e+00> : vector<10x16xf32>
    %196 = tpu.matmul %193, %195, %cst_94 {dimension_numbers = #tpu.dot_dimension_numbers<[1], [0], [0], [1], [0, 0, 1, 1], [], []>} : vector<10x32xf32>, vector<32x16xf32>, vector<10x16xf32> -> vector<10x16xf32>
    %197 = vector.extract_strided_slice %6 {offsets = [1, 0, 0, 0], sizes = [1, 1, 1, 16], strides = [1, 1, 1, 1]} : vector<2x2x1x16xf32> to vector<1x1x1x16xf32>
    %198 = vector.shape_cast %197 : vector<1x1x1x16xf32> to vector<1x16xf32>
    %199 = vector.broadcast %198 : vector<1x16xf32> to vector<10x16xf32>
    %200 = arith.addf %196, %199 : vector<10x16xf32>
    %201 = vector.extract_strided_slice %7 {offsets = [1, 0, 0, 0], sizes = [1, 1, 32, 16], strides = [1, 1, 1, 1]} : vector<2x2x32x16xf32> to vector<1x1x32x16xf32>
    %202 = vector.shape_cast %201 : vector<1x1x32x16xf32> to vector<32x16xf32>
    %cst_95 = arith.constant dense<0.000000e+00> : vector<10x16xf32>
    %203 = tpu.matmul %193, %202, %cst_95 {dimension_numbers = #tpu.dot_dimension_numbers<[1], [0], [0], [1], [0, 0, 1, 1], [], []>} : vector<10x32xf32>, vector<32x16xf32>, vector<10x16xf32> -> vector<10x16xf32>
    %204 = vector.extract_strided_slice %8 {offsets = [1, 0, 0, 0], sizes = [1, 1, 1, 16], strides = [1, 1, 1, 1]} : vector<2x2x1x16xf32> to vector<1x1x1x16xf32>
    %205 = vector.shape_cast %204 : vector<1x1x1x16xf32> to vector<1x16xf32>
    %206 = vector.broadcast %205 : vector<1x16xf32> to vector<10x16xf32>
    %207 = arith.addf %203, %206 : vector<10x16xf32>
    %208 = vector.extract_strided_slice %9 {offsets = [1, 0, 0, 0], sizes = [1, 1, 32, 16], strides = [1, 1, 1, 1]} : vector<2x2x32x16xf32> to vector<1x1x32x16xf32>
    %209 = vector.shape_cast %208 : vector<1x1x32x16xf32> to vector<32x16xf32>
    %cst_96 = arith.constant dense<0.000000e+00> : vector<10x16xf32>
    %210 = tpu.matmul %193, %209, %cst_96 {dimension_numbers = #tpu.dot_dimension_numbers<[1], [0], [0], [1], [0, 0, 1, 1], [], []>} : vector<10x32xf32>, vector<32x16xf32>, vector<10x16xf32> -> vector<10x16xf32>
    %211 = vector.extract_strided_slice %10 {offsets = [1, 0, 0, 0], sizes = [1, 1, 1, 16], strides = [1, 1, 1, 1]} : vector<2x2x1x16xf32> to vector<1x1x1x16xf32>
    %212 = vector.shape_cast %211 : vector<1x1x1x16xf32> to vector<1x16xf32>
    %213 = vector.broadcast %212 : vector<1x16xf32> to vector<10x16xf32>
    %214 = arith.addf %210, %213 : vector<10x16xf32>
    %cst_97 = arith.constant dense<0.000000e+00> : vector<10x10xf32>
    %215 = tpu.matmul %200, %207, %cst_97 {dimension_numbers = #tpu.dot_dimension_numbers<[1], [1], [0], [0], [0, 0, 1, 0], [], []>} : vector<10x16xf32>, vector<10x16xf32>, vector<10x10xf32> -> vector<10x10xf32>
    %216 = arith.addf %215, %2 : vector<10x10xf32>
    %cst_98 = arith.constant dense<0xFF800000> : vector<10xf32>
    %217 = vector.multi_reduction <maximumf>, %216, %cst_98 [1] : vector<10x10xf32> to vector<10xf32>
    %218 = vector.shape_cast %217 : vector<10xf32> to vector<10x1xf32>
    %219 = vector.broadcast %218 : vector<10x1xf32> to vector<10x10xf32>
    %220 = arith.subf %216, %219 : vector<10x10xf32>
    %221 = math.exp %220 : vector<10x10xf32>
    %cst_99 = arith.constant dense<0.000000e+00> : vector<10xf32>
    %222 = vector.multi_reduction <add>, %221, %cst_99 [1] : vector<10x10xf32> to vector<10xf32>
    %223 = vector.shape_cast %222 : vector<10xf32> to vector<10x1xf32>
    %224 = tpu.reciprocal %223 {approx = true} : vector<10x1xf32> -> vector<10x1xf32>
    %225 = vector.broadcast %224 : vector<10x1xf32> to vector<10x10xf32>
    %226 = arith.mulf %221, %225 : vector<10x10xf32>
    %cst_100 = arith.constant dense<0.000000e+00> : vector<10x16xf32>
    %227 = tpu.matmul %226, %214, %cst_100 {dimension_numbers = #tpu.dot_dimension_numbers<[1], [0], [0], [1], [0, 0, 1, 1], [], []>} : vector<10x10xf32>, vector<10x16xf32>, vector<10x16xf32> -> vector<10x16xf32>
    %228 = vector.extract_strided_slice %11 {offsets = [1, 0, 0, 0], sizes = [1, 1, 16, 32], strides = [1, 1, 1, 1]} : vector<2x2x16x32xf32> to vector<1x1x16x32xf32>
    %229 = vector.shape_cast %228 : vector<1x1x16x32xf32> to vector<16x32xf32>
    %cst_101 = arith.constant dense<0.000000e+00> : vector<10x32xf32>
    %230 = tpu.matmul %227, %229, %cst_101 {dimension_numbers = #tpu.dot_dimension_numbers<[1], [0], [0], [1], [0, 0, 1, 1], [], []>} : vector<10x16xf32>, vector<16x32xf32>, vector<10x32xf32> -> vector<10x32xf32>
    %231 = vector.extract_strided_slice %5 {offsets = [1, 1, 0, 0], sizes = [1, 1, 32, 16], strides = [1, 1, 1, 1]} : vector<2x2x32x16xf32> to vector<1x1x32x16xf32>
    %232 = vector.shape_cast %231 : vector<1x1x32x16xf32> to vector<32x16xf32>
    %cst_102 = arith.constant dense<0.000000e+00> : vector<10x16xf32>
    %233 = tpu.matmul %193, %232, %cst_102 {dimension_numbers = #tpu.dot_dimension_numbers<[1], [0], [0], [1], [0, 0, 1, 1], [], []>} : vector<10x32xf32>, vector<32x16xf32>, vector<10x16xf32> -> vector<10x16xf32>
    %234 = vector.extract_strided_slice %6 {offsets = [1, 1, 0, 0], sizes = [1, 1, 1, 16], strides = [1, 1, 1, 1]} : vector<2x2x1x16xf32> to vector<1x1x1x16xf32>
    %235 = vector.shape_cast %234 : vector<1x1x1x16xf32> to vector<1x16xf32>
    %236 = vector.broadcast %235 : vector<1x16xf32> to vector<10x16xf32>
    %237 = arith.addf %233, %236 : vector<10x16xf32>
    %238 = vector.extract_strided_slice %7 {offsets = [1, 1, 0, 0], sizes = [1, 1, 32, 16], strides = [1, 1, 1, 1]} : vector<2x2x32x16xf32> to vector<1x1x32x16xf32>
    %239 = vector.shape_cast %238 : vector<1x1x32x16xf32> to vector<32x16xf32>
    %cst_103 = arith.constant dense<0.000000e+00> : vector<10x16xf32>
    %240 = tpu.matmul %193, %239, %cst_103 {dimension_numbers = #tpu.dot_dimension_numbers<[1], [0], [0], [1], [0, 0, 1, 1], [], []>} : vector<10x32xf32>, vector<32x16xf32>, vector<10x16xf32> -> vector<10x16xf32>
    %241 = vector.extract_strided_slice %8 {offsets = [1, 1, 0, 0], sizes = [1, 1, 1, 16], strides = [1, 1, 1, 1]} : vector<2x2x1x16xf32> to vector<1x1x1x16xf32>
    %242 = vector.shape_cast %241 : vector<1x1x1x16xf32> to vector<1x16xf32>
    %243 = vector.broadcast %242 : vector<1x16xf32> to vector<10x16xf32>
    %244 = arith.addf %240, %243 : vector<10x16xf32>
    %245 = vector.extract_strided_slice %9 {offsets = [1, 1, 0, 0], sizes = [1, 1, 32, 16], strides = [1, 1, 1, 1]} : vector<2x2x32x16xf32> to vector<1x1x32x16xf32>
    %246 = vector.shape_cast %245 : vector<1x1x32x16xf32> to vector<32x16xf32>
    %cst_104 = arith.constant dense<0.000000e+00> : vector<10x16xf32>
    %247 = tpu.matmul %193, %246, %cst_104 {dimension_numbers = #tpu.dot_dimension_numbers<[1], [0], [0], [1], [0, 0, 1, 1], [], []>} : vector<10x32xf32>, vector<32x16xf32>, vector<10x16xf32> -> vector<10x16xf32>
    %248 = vector.extract_strided_slice %10 {offsets = [1, 1, 0, 0], sizes = [1, 1, 1, 16], strides = [1, 1, 1, 1]} : vector<2x2x1x16xf32> to vector<1x1x1x16xf32>
    %249 = vector.shape_cast %248 : vector<1x1x1x16xf32> to vector<1x16xf32>
    %250 = vector.broadcast %249 : vector<1x16xf32> to vector<10x16xf32>
    %251 = arith.addf %247, %250 : vector<10x16xf32>
    %cst_105 = arith.constant dense<0.000000e+00> : vector<10x10xf32>
    %252 = tpu.matmul %237, %244, %cst_105 {dimension_numbers = #tpu.dot_dimension_numbers<[1], [1], [0], [0], [0, 0, 1, 0], [], []>} : vector<10x16xf32>, vector<10x16xf32>, vector<10x10xf32> -> vector<10x10xf32>
    %253 = arith.addf %252, %2 : vector<10x10xf32>
    %cst_106 = arith.constant dense<0xFF800000> : vector<10xf32>
    %254 = vector.multi_reduction <maximumf>, %253, %cst_106 [1] : vector<10x10xf32> to vector<10xf32>
    %255 = vector.shape_cast %254 : vector<10xf32> to vector<10x1xf32>
    %256 = vector.broadcast %255 : vector<10x1xf32> to vector<10x10xf32>
    %257 = arith.subf %253, %256 : vector<10x10xf32>
    %258 = math.exp %257 : vector<10x10xf32>
    %cst_107 = arith.constant dense<0.000000e+00> : vector<10xf32>
    %259 = vector.multi_reduction <add>, %258, %cst_107 [1] : vector<10x10xf32> to vector<10xf32>
    %260 = vector.shape_cast %259 : vector<10xf32> to vector<10x1xf32>
    %261 = tpu.reciprocal %260 {approx = true} : vector<10x1xf32> -> vector<10x1xf32>
    %262 = vector.broadcast %261 : vector<10x1xf32> to vector<10x10xf32>
    %263 = arith.mulf %258, %262 : vector<10x10xf32>
    %cst_108 = arith.constant dense<0.000000e+00> : vector<10x16xf32>
    %264 = tpu.matmul %263, %251, %cst_108 {dimension_numbers = #tpu.dot_dimension_numbers<[1], [0], [0], [1], [0, 0, 1, 1], [], []>} : vector<10x10xf32>, vector<10x16xf32>, vector<10x16xf32> -> vector<10x16xf32>
    %265 = vector.extract_strided_slice %11 {offsets = [1, 1, 0, 0], sizes = [1, 1, 16, 32], strides = [1, 1, 1, 1]} : vector<2x2x16x32xf32> to vector<1x1x16x32xf32>
    %266 = vector.shape_cast %265 : vector<1x1x16x32xf32> to vector<16x32xf32>
    %cst_109 = arith.constant dense<0.000000e+00> : vector<10x32xf32>
    %267 = tpu.matmul %264, %266, %cst_109 {dimension_numbers = #tpu.dot_dimension_numbers<[1], [0], [0], [1], [0, 0, 1, 1], [], []>} : vector<10x16xf32>, vector<16x32xf32>, vector<10x32xf32> -> vector<10x32xf32>
    %268 = arith.addf %230, %267 : vector<10x32xf32>
    %269 = arith.addf %169, %268 : vector<10x32xf32>
    %270 = vector.extract_strided_slice %12 {offsets = [1, 0, 0], sizes = [1, 1, 32], strides = [1, 1, 1]} : vector<2x1x32xf32> to vector<1x1x32xf32>
    %271 = vector.shape_cast %270 : vector<1x1x32xf32> to vector<1x32xf32>
    %272 = vector.broadcast %271 : vector<1x32xf32> to vector<10x32xf32>
    %273 = arith.addf %269, %272 : vector<10x32xf32>
    %274 = vector.extract_strided_slice %13 {offsets = [1, 0, 0], sizes = [1, 1, 32], strides = [1, 1, 1]} : vector<2x1x32xf32> to vector<1x1x32xf32>
    %275 = vector.shape_cast %274 : vector<1x1x32xf32> to vector<1x32xf32>
    %276 = vector.extract_strided_slice %14 {offsets = [1, 0, 0], sizes = [1, 1, 32], strides = [1, 1, 1]} : vector<2x1x32xf32> to vector<1x1x32xf32>
    %277 = vector.shape_cast %276 : vector<1x1x32xf32> to vector<1x32xf32>
    %cst_110 = arith.constant dense<0.000000e+00> : vector<10xf32>
    %278 = vector.multi_reduction <add>, %273, %cst_110 [1] : vector<10x32xf32> to vector<10xf32>
    %279 = vector.shape_cast %278 : vector<10xf32> to vector<10x1xf32>
    %cst_111 = arith.constant 3.200000e+01 : f32
    %280 = vector.broadcast %cst_111 : f32 to vector<10x1xf32>
    %281 = arith.divf %279, %280 : vector<10x1xf32>
    %282 = vector.broadcast %281 : vector<10x1xf32> to vector<10x32xf32>
    %283 = arith.subf %273, %282 : vector<10x32xf32>
    %284 = arith.mulf %283, %283 : vector<10x32xf32>
    %cst_112 = arith.constant dense<0.000000e+00> : vector<10xf32>
    %285 = vector.multi_reduction <add>, %284, %cst_112 [1] : vector<10x32xf32> to vector<10xf32>
    %286 = vector.shape_cast %285 : vector<10xf32> to vector<10x1xf32>
    %cst_113 = arith.constant 3.200000e+01 : f32
    %287 = vector.broadcast %cst_113 : f32 to vector<10x1xf32>
    %288 = arith.divf %286, %287 : vector<10x1xf32>
    %cst_114 = arith.constant 9.99999974E-6 : f32
    %289 = vector.broadcast %cst_114 : f32 to vector<10x1xf32>
    %290 = arith.addf %288, %289 : vector<10x1xf32>
    %291 = math.rsqrt %290 : vector<10x1xf32>
    %292 = vector.broadcast %291 : vector<10x1xf32> to vector<10x32xf32>
    %293 = arith.mulf %283, %292 : vector<10x32xf32>
    %294 = vector.broadcast %275 : vector<1x32xf32> to vector<10x32xf32>
    %295 = arith.mulf %293, %294 : vector<10x32xf32>
    %296 = vector.broadcast %277 : vector<1x32xf32> to vector<10x32xf32>
    %297 = arith.addf %295, %296 : vector<10x32xf32>
    %298 = vector.extract_strided_slice %15 {offsets = [1, 0, 0], sizes = [1, 32, 128], strides = [1, 1, 1]} : vector<2x32x128xf32> to vector<1x32x128xf32>
    %299 = vector.shape_cast %298 : vector<1x32x128xf32> to vector<32x128xf32>
    %cst_115 = arith.constant dense<0.000000e+00> : vector<10x128xf32>
    %300 = tpu.matmul %297, %299, %cst_115 {dimension_numbers = #tpu.dot_dimension_numbers<[1], [0], [0], [1], [0, 0, 1, 1], [], []>} : vector<10x32xf32>, vector<32x128xf32>, vector<10x128xf32> -> vector<10x128xf32>
    %301 = vector.extract_strided_slice %16 {offsets = [1, 0, 0], sizes = [1, 1, 128], strides = [1, 1, 1]} : vector<2x1x128xf32> to vector<1x1x128xf32>
    %302 = vector.shape_cast %301 : vector<1x1x128xf32> to vector<1x128xf32>
    %303 = vector.broadcast %302 : vector<1x128xf32> to vector<10x128xf32>
    %304 = arith.addf %300, %303 : vector<10x128xf32>
    %cst_116 = arith.constant 5.000000e-01 : f32
    %305 = vector.broadcast %cst_116 : f32 to vector<10x128xf32>
    %306 = arith.mulf %305, %304 : vector<10x128xf32>
    %cst_117 = arith.constant 0.707106769 : f32
    %307 = vector.broadcast %cst_117 : f32 to vector<10x128xf32>
    %308 = arith.mulf %304, %307 : vector<10x128xf32>
    %309 = math.erf %308 : vector<10x128xf32>
    %cst_118 = arith.constant 1.000000e+00 : f32
    %310 = vector.broadcast %cst_118 : f32 to vector<10x128xf32>
    %311 = arith.addf %310, %309 : vector<10x128xf32>
    %312 = arith.mulf %306, %311 : vector<10x128xf32>
    %313 = vector.extract_strided_slice %17 {offsets = [1, 0, 0], sizes = [1, 128, 32], strides = [1, 1, 1]} : vector<2x128x32xf32> to vector<1x128x32xf32>
    %314 = vector.shape_cast %313 : vector<1x128x32xf32> to vector<128x32xf32>
    %cst_119 = arith.constant dense<0.000000e+00> : vector<10x32xf32>
    %315 = tpu.matmul %312, %314, %cst_119 {dimension_numbers = #tpu.dot_dimension_numbers<[1], [0], [0], [1], [0, 0, 1, 1], [], []>} : vector<10x128xf32>, vector<128x32xf32>, vector<10x32xf32> -> vector<10x32xf32>
    %316 = arith.addf %273, %315 : vector<10x32xf32>
    %317 = vector.extract_strided_slice %18 {offsets = [1, 0, 0], sizes = [1, 1, 32], strides = [1, 1, 1]} : vector<2x1x32xf32> to vector<1x1x32xf32>
    %318 = vector.shape_cast %317 : vector<1x1x32xf32> to vector<1x32xf32>
    %319 = vector.broadcast %318 : vector<1x32xf32> to vector<10x32xf32>
    %320 = arith.addf %316, %319 : vector<10x32xf32>
    %c0_120 = arith.constant 0 : index
    %c0_121 = arith.constant 0 : index
    %321 = vector.load %arg20[%c0_120, %c0_121] : memref<1x32xf32, #tpu.memory_space<vmem>>, vector<1x32xf32>
    %c0_122 = arith.constant 0 : index
    %c0_123 = arith.constant 0 : index
    %322 = vector.load %arg21[%c0_122, %c0_123] : memref<1x32xf32, #tpu.memory_space<vmem>>, vector<1x32xf32>
    %cst_124 = arith.constant dense<0.000000e+00> : vector<10xf32>
    %323 = vector.multi_reduction <add>, %320, %cst_124 [1] : vector<10x32xf32> to vector<10xf32>
    %324 = vector.shape_cast %323 : vector<10xf32> to vector<10x1xf32>
    %cst_125 = arith.constant 3.200000e+01 : f32
    %325 = vector.broadcast %cst_125 : f32 to vector<10x1xf32>
    %326 = arith.divf %324, %325 : vector<10x1xf32>
    %327 = vector.broadcast %326 : vector<10x1xf32> to vector<10x32xf32>
    %328 = arith.subf %320, %327 : vector<10x32xf32>
    %329 = arith.mulf %328, %328 : vector<10x32xf32>
    %cst_126 = arith.constant dense<0.000000e+00> : vector<10xf32>
    %330 = vector.multi_reduction <add>, %329, %cst_126 [1] : vector<10x32xf32> to vector<10xf32>
    %331 = vector.shape_cast %330 : vector<10xf32> to vector<10x1xf32>
    %cst_127 = arith.constant 3.200000e+01 : f32
    %332 = vector.broadcast %cst_127 : f32 to vector<10x1xf32>
    %333 = arith.divf %331, %332 : vector<10x1xf32>
    %cst_128 = arith.constant 9.99999974E-6 : f32
    %334 = vector.broadcast %cst_128 : f32 to vector<10x1xf32>
    %335 = arith.addf %333, %334 : vector<10x1xf32>
    %336 = math.rsqrt %335 : vector<10x1xf32>
    %337 = vector.broadcast %336 : vector<10x1xf32> to vector<10x32xf32>
    %338 = arith.mulf %328, %337 : vector<10x32xf32>
    %339 = vector.broadcast %321 : vector<1x32xf32> to vector<10x32xf32>
    %340 = arith.mulf %338, %339 : vector<10x32xf32>
    %341 = vector.broadcast %322 : vector<1x32xf32> to vector<10x32xf32>
    %342 = arith.addf %340, %341 : vector<10x32xf32>
    %c0_129 = arith.constant 0 : index
    %c0_130 = arith.constant 0 : index
    %c0_131 = arith.constant 0 : index
    %343 = vector.load %arg3[%c0_129, %c0_130, %c0_131] : memref<6x10x1xf32, #tpu.memory_space<vmem>>, vector<6x10x1xf32>
    %c0_132 = arith.constant 0 : index
    %c0_133 = arith.constant 0 : index
    %c0_134 = arith.constant 0 : index
    %344 = vector.load %arg22[%c0_132, %c0_133, %c0_134] : memref<6x32x128xf32, #tpu.memory_space<vmem>>, vector<6x32x128xf32>
    %345 = vector.extract_strided_slice %343 {offsets = [0, 0, 0], sizes = [1, 10, 1], strides = [1, 1, 1]} : vector<6x10x1xf32> to vector<1x10x1xf32>
    %346 = vector.shape_cast %345 : vector<1x10x1xf32> to vector<10x1xf32>
    %347 = vector.broadcast %346 : vector<10x1xf32> to vector<10x32xf32>
    %348 = arith.mulf %342, %347 : vector<10x32xf32>
    %349 = vector.extract_strided_slice %344 {offsets = [0, 0, 0], sizes = [1, 32, 128], strides = [1, 1, 1]} : vector<6x32x128xf32> to vector<1x32x128xf32>
    %350 = vector.shape_cast %349 : vector<1x32x128xf32> to vector<32x128xf32>
    %cst_135 = arith.constant dense<0.000000e+00> : vector<10x128xf32>
    %351 = tpu.matmul %348, %350, %cst_135 {dimension_numbers = #tpu.dot_dimension_numbers<[1], [0], [0], [1], [0, 0, 1, 1], [], []>} : vector<10x32xf32>, vector<32x128xf32>, vector<10x128xf32> -> vector<10x128xf32>
    %352 = vector.extract_strided_slice %343 {offsets = [1, 0, 0], sizes = [1, 10, 1], strides = [1, 1, 1]} : vector<6x10x1xf32> to vector<1x10x1xf32>
    %353 = vector.shape_cast %352 : vector<1x10x1xf32> to vector<10x1xf32>
    %354 = vector.broadcast %353 : vector<10x1xf32> to vector<10x32xf32>
    %355 = arith.mulf %342, %354 : vector<10x32xf32>
    %356 = vector.extract_strided_slice %344 {offsets = [1, 0, 0], sizes = [1, 32, 128], strides = [1, 1, 1]} : vector<6x32x128xf32> to vector<1x32x128xf32>
    %357 = vector.shape_cast %356 : vector<1x32x128xf32> to vector<32x128xf32>
    %cst_136 = arith.constant dense<0.000000e+00> : vector<10x128xf32>
    %358 = tpu.matmul %355, %357, %cst_136 {dimension_numbers = #tpu.dot_dimension_numbers<[1], [0], [0], [1], [0, 0, 1, 1], [], []>} : vector<10x32xf32>, vector<32x128xf32>, vector<10x128xf32> -> vector<10x128xf32>
    %359 = arith.addf %351, %358 : vector<10x128xf32>
    %360 = vector.extract_strided_slice %343 {offsets = [2, 0, 0], sizes = [1, 10, 1], strides = [1, 1, 1]} : vector<6x10x1xf32> to vector<1x10x1xf32>
    %361 = vector.shape_cast %360 : vector<1x10x1xf32> to vector<10x1xf32>
    %362 = vector.broadcast %361 : vector<10x1xf32> to vector<10x32xf32>
    %363 = arith.mulf %342, %362 : vector<10x32xf32>
    %364 = vector.extract_strided_slice %344 {offsets = [2, 0, 0], sizes = [1, 32, 128], strides = [1, 1, 1]} : vector<6x32x128xf32> to vector<1x32x128xf32>
    %365 = vector.shape_cast %364 : vector<1x32x128xf32> to vector<32x128xf32>
    %cst_137 = arith.constant dense<0.000000e+00> : vector<10x128xf32>
    %366 = tpu.matmul %363, %365, %cst_137 {dimension_numbers = #tpu.dot_dimension_numbers<[1], [0], [0], [1], [0, 0, 1, 1], [], []>} : vector<10x32xf32>, vector<32x128xf32>, vector<10x128xf32> -> vector<10x128xf32>
    %367 = arith.addf %359, %366 : vector<10x128xf32>
    %368 = vector.extract_strided_slice %343 {offsets = [3, 0, 0], sizes = [1, 10, 1], strides = [1, 1, 1]} : vector<6x10x1xf32> to vector<1x10x1xf32>
    %369 = vector.shape_cast %368 : vector<1x10x1xf32> to vector<10x1xf32>
    %370 = vector.broadcast %369 : vector<10x1xf32> to vector<10x32xf32>
    %371 = arith.mulf %342, %370 : vector<10x32xf32>
    %372 = vector.extract_strided_slice %344 {offsets = [3, 0, 0], sizes = [1, 32, 128], strides = [1, 1, 1]} : vector<6x32x128xf32> to vector<1x32x128xf32>
    %373 = vector.shape_cast %372 : vector<1x32x128xf32> to vector<32x128xf32>
    %cst_138 = arith.constant dense<0.000000e+00> : vector<10x128xf32>
    %374 = tpu.matmul %371, %373, %cst_138 {dimension_numbers = #tpu.dot_dimension_numbers<[1], [0], [0], [1], [0, 0, 1, 1], [], []>} : vector<10x32xf32>, vector<32x128xf32>, vector<10x128xf32> -> vector<10x128xf32>
    %375 = arith.addf %367, %374 : vector<10x128xf32>
    %376 = vector.extract_strided_slice %343 {offsets = [4, 0, 0], sizes = [1, 10, 1], strides = [1, 1, 1]} : vector<6x10x1xf32> to vector<1x10x1xf32>
    %377 = vector.shape_cast %376 : vector<1x10x1xf32> to vector<10x1xf32>
    %378 = vector.broadcast %377 : vector<10x1xf32> to vector<10x32xf32>
    %379 = arith.mulf %342, %378 : vector<10x32xf32>
    %380 = vector.extract_strided_slice %344 {offsets = [4, 0, 0], sizes = [1, 32, 128], strides = [1, 1, 1]} : vector<6x32x128xf32> to vector<1x32x128xf32>
    %381 = vector.shape_cast %380 : vector<1x32x128xf32> to vector<32x128xf32>
    %cst_139 = arith.constant dense<0.000000e+00> : vector<10x128xf32>
    %382 = tpu.matmul %379, %381, %cst_139 {dimension_numbers = #tpu.dot_dimension_numbers<[1], [0], [0], [1], [0, 0, 1, 1], [], []>} : vector<10x32xf32>, vector<32x128xf32>, vector<10x128xf32> -> vector<10x128xf32>
    %383 = arith.addf %375, %382 : vector<10x128xf32>
    %384 = vector.extract_strided_slice %343 {offsets = [5, 0, 0], sizes = [1, 10, 1], strides = [1, 1, 1]} : vector<6x10x1xf32> to vector<1x10x1xf32>
    %385 = vector.shape_cast %384 : vector<1x10x1xf32> to vector<10x1xf32>
    %386 = vector.broadcast %385 : vector<10x1xf32> to vector<10x32xf32>
    %387 = arith.mulf %342, %386 : vector<10x32xf32>
    %388 = vector.extract_strided_slice %344 {offsets = [5, 0, 0], sizes = [1, 32, 128], strides = [1, 1, 1]} : vector<6x32x128xf32> to vector<1x32x128xf32>
    %389 = vector.shape_cast %388 : vector<1x32x128xf32> to vector<32x128xf32>
    %cst_140 = arith.constant dense<0.000000e+00> : vector<10x128xf32>
    %390 = tpu.matmul %387, %389, %cst_140 {dimension_numbers = #tpu.dot_dimension_numbers<[1], [0], [0], [1], [0, 0, 1, 1], [], []>} : vector<10x32xf32>, vector<32x128xf32>, vector<10x128xf32> -> vector<10x128xf32>
    %391 = arith.addf %383, %390 : vector<10x128xf32>
    %c0_141 = arith.constant 0 : index
    %c0_142 = arith.constant 0 : index
    %c0_143 = arith.constant 0 : index
    %392 = vector.load %arg23[%c0_141, %c0_142, %c0_143] : memref<1x10x128xf32, #tpu.memory_space<vmem>>, vector<1x10x128xf32>
    %393 = vector.shape_cast %392 : vector<1x10x128xf32> to vector<10x128xf32>
    %394 = vector.shape_cast %391 : vector<10x128xf32> to vector<1x10x128xf32>
    tpu.vector_store %arg23[%c0_141, %c0_142, %c0_143], %394 {strides = array<i32>} : memref<1x10x128xf32, #tpu.memory_space<vmem>>, vector<1x10x128xf32>,
    return
  }
  func.func @transform_0(%arg0: i32) -> (i32, i32, i32) {
    %c0_i32 = arith.constant 0 : i32
    %c0_i32_0 = arith.constant 0 : i32
    %c0_i32_1 = arith.constant 0 : i32
    return %arg0, %c0_i32, %c0_i32_0 : i32, i32, i32
  }
  func.func @transform_1(%arg0: i32) -> (i32, i32) {
    %c0_i32 = arith.constant 0 : i32
    %c0_i32_0 = arith.constant 0 : i32
    %c0_i32_1 = arith.constant 0 : i32
    return %c0_i32, %c0_i32_0 : i32, i32
  }
  func.func @transform_2(%arg0: i32) -> (i32, i32, i32) {
    %c0_i32 = arith.constant 0 : i32
    %c0_i32_0 = arith.constant 0 : i32
    %c0_i32_1 = arith.constant 0 : i32
    %c0_i32_2 = arith.constant 0 : i32
    return %c0_i32, %c0_i32_0, %c0_i32_1 : i32, i32, i32
  }
  func.func @transform_3(%arg0: i32) -> (i32, i32, i32) {
    %c0_i32 = arith.constant 0 : i32
    %c0_i32_0 = arith.constant 0 : i32
    %c0_i32_1 = arith.constant 0 : i32
    %c0_i32_2 = arith.constant 0 : i32
    return %c0_i32, %c0_i32_0, %c0_i32_1 : i32, i32, i32
  }
  func.func @transform_4(%arg0: i32) -> (i32, i32, i32) {
    %c0_i32 = arith.constant 0 : i32
    %c0_i32_0 = arith.constant 0 : i32
    %c0_i32_1 = arith.constant 0 : i32
    %c0_i32_2 = arith.constant 0 : i32
    return %c0_i32, %c0_i32_0, %c0_i32_1 : i32, i32, i32
  }
  func.func @transform_5(%arg0: i32) -> (i32, i32, i32, i32) {
    %c0_i32 = arith.constant 0 : i32
    %c0_i32_0 = arith.constant 0 : i32
    %c0_i32_1 = arith.constant 0 : i32
    %c0_i32_2 = arith.constant 0 : i32
    %c0_i32_3 = arith.constant 0 : i32
    return %c0_i32, %c0_i32_0, %c0_i32_1, %c0_i32_2 : i32, i32, i32, i32
  }
  func.func @transform_6(%arg0: i32) -> (i32, i32, i32, i32) {
    %c0_i32 = arith.constant 0 : i32
    %c0_i32_0 = arith.constant 0 : i32
    %c0_i32_1 = arith.constant 0 : i32
    %c0_i32_2 = arith.constant 0 : i32
    %c0_i32_3 = arith.constant 0 : i32
    return %c0_i32, %c0_i32_0, %c0_i32_1, %c0_i32_2 : i32, i32, i32, i32
  }
  func.func @transform_7(%arg0: i32) -> (i32, i32, i32, i32) {
    %c0_i32 = arith.constant 0 : i32
    %c0_i32_0 = arith.constant 0 : i32
    %c0_i32_1 = arith.constant 0 : i32
    %c0_i32_2 = arith.constant 0 : i32
    %c0_i32_3 = arith.constant 0 : i32
    return %c0_i32, %c0_i32_0, %c0_i32_1, %c0_i32_2 : i32, i32, i32, i32
  }
  func.func @transform_8(%arg0: i32) -> (i32, i32, i32, i32) {
    %c0_i32 = arith.constant 0 : i32
    %c0_i32_0 = arith.constant 0 : i32
    %c0_i32_1 = arith.constant 0 : i32
    %c0_i32_2 = arith.constant 0 : i32
    %c0_i32_3 = arith.constant 0 : i32
    return %c0_i32, %c0_i32_0, %c0_i32_1, %c0_i32_2 : i32, i32, i32, i32
  }
  func.func @transform_9(%arg0: i32) -> (i32, i32, i32, i32) {
    %c0_i32 = arith.constant 0 : i32
    %c0_i32_0 = arith.constant 0 : i32
    %c0_i32_1 = arith.constant 0 : i32
    %c0_i32_2 = arith.constant 0 : i32
    %c0_i32_3 = arith.constant 0 : i32
    return %c0_i32, %c0_i32_0, %c0_i32_1, %c0_i32_2 : i32, i32, i32, i32
  }
  func.func @transform_10(%arg0: i32) -> (i32, i32, i32, i32) {
    %c0_i32 = arith.constant 0 : i32
    %c0_i32_0 = arith.constant 0 : i32
    %c0_i32_1 = arith.constant 0 : i32
    %c0_i32_2 = arith.constant 0 : i32
    %c0_i32_3 = arith.constant 0 : i32
    return %c0_i32, %c0_i32_0, %c0_i32_1, %c0_i32_2 : i32, i32, i32, i32
  }
  func.func @transform_11(%arg0: i32) -> (i32, i32, i32, i32) {
    %c0_i32 = arith.constant 0 : i32
    %c0_i32_0 = arith.constant 0 : i32
    %c0_i32_1 = arith.constant 0 : i32
    %c0_i32_2 = arith.constant 0 : i32
    %c0_i32_3 = arith.constant 0 : i32
    return %c0_i32, %c0_i32_0, %c0_i32_1, %c0_i32_2 : i32, i32, i32, i32
  }
  func.func @transform_12(%arg0: i32) -> (i32, i32, i32) {
    %c0_i32 = arith.constant 0 : i32
    %c0_i32_0 = arith.constant 0 : i32
    %c0_i32_1 = arith.constant 0 : i32
    %c0_i32_2 = arith.constant 0 : i32
    return %c0_i32, %c0_i32_0, %c0_i32_1 : i32, i32, i32
  }
  func.func @transform_13(%arg0: i32) -> (i32, i32, i32) {
    %c0_i32 = arith.constant 0 : i32
    %c0_i32_0 = arith.constant 0 : i32
    %c0_i32_1 = arith.constant 0 : i32
    %c0_i32_2 = arith.constant 0 : i32
    return %c0_i32, %c0_i32_0, %c0_i32_1 : i32, i32, i32
  }
  func.func @transform_14(%arg0: i32) -> (i32, i32, i32) {
    %c0_i32 = arith.constant 0 : i32
    %c0_i32_0 = arith.constant 0 : i32
    %c0_i32_1 = arith.constant 0 : i32
    %c0_i32_2 = arith.constant 0 : i32
    return %c0_i32, %c0_i32_0, %c0_i32_1 : i32, i32, i32
  }
  func.func @transform_15(%arg0: i32) -> (i32, i32, i32) {
    %c0_i32 = arith.constant 0 : i32
    %c0_i32_0 = arith.constant 0 : i32
    %c0_i32_1 = arith.constant 0 : i32
    %c0_i32_2 = arith.constant 0 : i32
    return %c0_i32, %c0_i32_0, %c0_i32_1 : i32, i32, i32
  }
  func.func @transform_16(%arg0: i32) -> (i32, i32, i32) {
    %c0_i32 = arith.constant 0 : i32
    %c0_i32_0 = arith.constant 0 : i32
    %c0_i32_1 = arith.constant 0 : i32
    %c0_i32_2 = arith.constant 0 : i32
    return %c0_i32, %c0_i32_0, %c0_i32_1 : i32, i32, i32
  }
  func.func @transform_17(%arg0: i32) -> (i32, i32, i32) {
    %c0_i32 = arith.constant 0 : i32
    %c0_i32_0 = arith.constant 0 : i32
    %c0_i32_1 = arith.constant 0 : i32
    %c0_i32_2 = arith.constant 0 : i32
    return %c0_i32, %c0_i32_0, %c0_i32_1 : i32, i32, i32
  }
  func.func @transform_18(%arg0: i32) -> (i32, i32, i32) {
    %c0_i32 = arith.constant 0 : i32
    %c0_i32_0 = arith.constant 0 : i32
    %c0_i32_1 = arith.constant 0 : i32
    %c0_i32_2 = arith.constant 0 : i32
    return %c0_i32, %c0_i32_0, %c0_i32_1 : i32, i32, i32
  }
  func.func @transform_19(%arg0: i32) -> (i32, i32) {
    %c0_i32 = arith.constant 0 : i32
    %c0_i32_0 = arith.constant 0 : i32
    %c0_i32_1 = arith.constant 0 : i32
    return %c0_i32, %c0_i32_0 : i32, i32
  }
  func.func @transform_20(%arg0: i32) -> (i32, i32) {
    %c0_i32 = arith.constant 0 : i32
    %c0_i32_0 = arith.constant 0 : i32
    %c0_i32_1 = arith.constant 0 : i32
    return %c0_i32, %c0_i32_0 : i32, i32
  }
  func.func @transform_21(%arg0: i32) -> (i32, i32, i32) {
    %c0_i32 = arith.constant 0 : i32
    %c0_i32_0 = arith.constant 0 : i32
    %c0_i32_1 = arith.constant 0 : i32
    %c0_i32_2 = arith.constant 0 : i32
    return %c0_i32, %c0_i32_0, %c0_i32_1 : i32, i32, i32
  }
  func.func @transform_22(%arg0: i32) -> (i32, i32, i32) {
    %c0_i32 = arith.constant 0 : i32
    %c0_i32_0 = arith.constant 0 : i32
    %c0_i32_1 = arith.constant 0 : i32
    return %arg0, %c0_i32, %c0_i32_0 : i32, i32, i32
  }
}

</mosaic_0001>

<llo_original>
// kernel: tpu_custom_call.1
$region0: #{tpu_custom_call.1}
  #allocation0 [shape = 'u32[]', space=smem, size = 0x4, offset = 0x4, fixed_abs, tag = 'smem constant byte address 0x4 - core index']
  #allocation1 [shape = 'u32[144,128]{1,0:T(1,128)}', space=vmem, size = 0x12000, scoped, tag = 'internal scratch']
  %s0 = inlined_call_operand.vmem [shape: f32[2,10,32], index: 0, kind: input, shape index: {}]
  %s1 = inlined_call_operand.vmem [shape: f32[10,10], index: 1, kind: input, shape index: {}]
  %s2 = inlined_call_operand.vmem [shape: f32[6,10,1], index: 2, kind: input, shape index: {}]
  %s3 = inlined_call_operand.vmem [shape: f32[2,1,32], index: 3, kind: input, shape index: {}]
  %s4 = inlined_call_operand.vmem [shape: f32[2,1,32], index: 4, kind: input, shape index: {}]
  %s5 = inlined_call_operand.vmem [shape: f32[2,2,32,16], index: 5, kind: input, shape index: {}]
  %s6 = inlined_call_operand.vmem [shape: f32[2,2,1,16], index: 6, kind: input, shape index: {}]
  %s7 = inlined_call_operand.vmem [shape: f32[2,2,32,16], index: 7, kind: input, shape index: {}]
  %s8 = inlined_call_operand.vmem [shape: f32[2,2,1,16], index: 8, kind: input, shape index: {}]
  %s9 = inlined_call_operand.vmem [shape: f32[2,2,32,16], index: 9, kind: input, shape index: {}]
  %s10 = inlined_call_operand.vmem [shape: f32[2,2,1,16], index: 10, kind: input, shape index: {}]
  %s11 = inlined_call_operand.vmem [shape: f32[2,2,16,32], index: 11, kind: input, shape index: {}]
  %s12 = inlined_call_operand.vmem [shape: f32[2,1,32], index: 12, kind: input, shape index: {}]
  %s13 = inlined_call_operand.vmem [shape: f32[2,1,32], index: 13, kind: input, shape index: {}]
  %s14 = inlined_call_operand.vmem [shape: f32[2,1,32], index: 14, kind: input, shape index: {}]
  %s15 = inlined_call_operand.vmem [shape: f32[2,32,128], index: 15, kind: input, shape index: {}]
  %s16 = inlined_call_operand.vmem [shape: f32[2,1,128], index: 16, kind: input, shape index: {}]
  %s17 = inlined_call_operand.vmem [shape: f32[2,128,32], index: 17, kind: input, shape index: {}]
  %s18 = inlined_call_operand.vmem [shape: f32[2,1,32], index: 18, kind: input, shape index: {}]
  %s19 = inlined_call_operand.vmem [shape: f32[1,32], index: 19, kind: input, shape index: {}]
  %s20 = inlined_call_operand.vmem [shape: f32[1,32], index: 20, kind: input, shape index: {}]
  %s21 = inlined_call_operand.vmem [shape: f32[6,32,128], index: 21, kind: input, shape index: {}]
  %s22 = inlined_call_operand.vmem [shape: f32[2,10,128], index: 22, kind: output, shape index: {}]
  %s23 = sld [smem:[#allocation0]]
  $region121: #{tpu_custom_call.1} parent=0
    _
  %s25 = ssub.s32 1, %s23
  %s26 = scalar_select 0, %s25, %s23
  loop: start=0, step=1, limit=4
  $region2: #{tpu_custom_call.1} parent=0 // loop_pre_header
    _
  $region3: #{tpu_custom_call.1} parent=0 // loop_header
    %s28 = sphi 0, %s32
    %p29 = scmp.ge.s32.totalorder %s28, 4
    %s38 = sphi 0, %s40
    %s41 = sphi 0, %s38
    %s42 = sphi 0, %s41
    %s58 = sphi 0, %s42
    %s62 = sphi 0, %s62
    %s64 = sphi 0, %s62
    %s65 = sphi 0, %s64
    %s79 = sphi 0, %s65
    %s83 = sphi 0, %s83
    %s85 = sphi 0, %s83
    %s86 = sphi 0, %s85
    %s100 = sphi 0, %s86
    %s104 = sphi 0, %s104
    %s106 = sphi 0, %s104
    %s107 = sphi 0, %s106
    %s121 = sphi 0, %s107
    %s125 = sphi 0, %s125
    %s127 = sphi 0, %s125
    %s128 = sphi 0, %s127
    %s142 = sphi 0, %s128
    %s146 = sphi 0, %s146
    %s148 = sphi 0, %s146
    %s149 = sphi 0, %s148
    %s163 = sphi 0, %s149
    %s167 = sphi 0, %s167
    %s169 = sphi 0, %s167
    %s170 = sphi 0, %s169
    %s184 = sphi 0, %s170
    %s188 = sphi 0, %s188
    %s190 = sphi 0, %s188
    %s191 = sphi 0, %s190
    %s205 = sphi 0, %s191
    %s209 = sphi 0, %s209
    %s211 = sphi 0, %s209
    %s212 = sphi 0, %s211
    %s226 = sphi 0, %s212
    %s230 = sphi 0, %s230
    %s232 = sphi 0, %s230
    %s233 = sphi 0, %s232
    %s247 = sphi 0, %s233
    %s251 = sphi 0, %s251
    %s253 = sphi 0, %s251
    %s254 = sphi 0, %s253
    %s268 = sphi 0, %s254
    %s272 = sphi 0, %s272
    %s274 = sphi 0, %s272
    %s275 = sphi 0, %s274
    %s289 = sphi 0, %s275
    %s293 = sphi 0, %s293
    %s295 = sphi 0, %s293
    %s296 = sphi 0, %s295
    %s310 = sphi 0, %s296
    %s314 = sphi 0, %s314
    %s316 = sphi 0, %s314
    %s317 = sphi 0, %s316
    %s331 = sphi 0, %s317
    %s335 = sphi 0, %s335
    %s337 = sphi 0, %s335
    %s338 = sphi 0, %s337
    %s352 = sphi 0, %s338
    %s356 = sphi 0, %s356
    %s358 = sphi 0, %s356
    %s359 = sphi 0, %s358
    %s373 = sphi 0, %s359
    %s377 = sphi 0, %s377
    %s379 = sphi 0, %s377
    %s380 = sphi 0, %s379
    %s394 = sphi 0, %s380
    %s398 = sphi 0, %s398
    %s400 = sphi 0, %s398
    %s401 = sphi 0, %s400
    %s415 = sphi 0, %s401
    %s419 = sphi 0, %s419
    %s421 = sphi 0, %s419
    %s422 = sphi 0, %s421
    %s436 = sphi 0, %s422
    %s440 = sphi 0, %s440
    %s442 = sphi 0, %s440
    %s443 = sphi 0, %s442
    %s457 = sphi 0, %s443
    %s461 = sphi 0, %s461
    %s463 = sphi 0, %s461
    %s464 = sphi 0, %s463
    %s478 = sphi 0, %s464
    %s482 = sphi 0, %s482
    %s484 = sphi 0, %s482
    %s485 = sphi 0, %s484
    %s499 = sphi 0, %s485
    %s505 = sphi 0, %s507
    %s508 = sphi 0, %s505
    %s509 = sphi 0, %s508
    %s525 = sphi 0, %s509
  $region4: #{tpu_custom_call.1} parent=0 // loop_header_branch
    %31 = sbr.rel (%p29) target = $region8
  $region5: #{tpu_custom_call.1} parent=0 // loop_body
    %s33 = ssub.s32 %s28, 1
    %s34 = ssub.s32 %s28, 2
    %s35 = sadd.s32 %s28, 1
    %s36 = ssub.s32 %s28, %s35
    %p37 = scmp.eq.s32.totalorder %s36, 0
    %s39 = sadd.s32 %s38, 1
    %s40 = scalar_select %p37, %s38, %s39
    %p43 = pneg %p37
    %p44 = scmp.eq.s32.totalorder %s28, 1
    %p45 = por %p43, %p44
    %p46 = scmp.ne.s32.totalorder %s38, %s41
    %p47 = scmp.eq.s32.totalorder %s28, 0
    %p48 = por %p46, %p47
    %p49 = scmp.ne.s32.totalorder %s38, %s41
    %p50 = scmp.eq.s32.totalorder %s33, 1
    %p51 = por %p49, %p50
    %p52 = scmp.ne.s32.totalorder %s41, %s42
    %p53 = scmp.eq.s32.totalorder %s33, 0
    %p54 = por %p52, %p53
    %p55 = scmp.ne.s32.totalorder %s41, %s42
    %p56 = scmp.eq.s32.totalorder %s34, 1
    %p57 = por %p55, %p56
    %p59 = scmp.ne.s32.totalorder %s42, %s58
    %p60 = scmp.eq.s32.totalorder %s34, 0
    %p61 = por %p59, %p60
    %s63 = sadd.s32 %s62, 1
    %p66 = scmp.eq.s32.totalorder %s28, 1
    %p67 = scmp.ne.s32.totalorder %s62, %s64
    %p68 = scmp.eq.s32.totalorder %s28, 0
    %p69 = por %p67, %p68
    %p70 = scmp.ne.s32.totalorder %s62, %s64
    %p71 = scmp.eq.s32.totalorder %s33, 1
    %p72 = por %p70, %p71
    %p73 = scmp.ne.s32.totalorder %s64, %s65
    %p74 = scmp.eq.s32.totalorder %s33, 0
    %p75 = por %p73, %p74
    %p76 = scmp.ne.s32.totalorder %s64, %s65
    %p77 = scmp.eq.s32.totalorder %s34, 1
    %p78 = por %p76, %p77
    %p80 = scmp.ne.s32.totalorder %s65, %s79
    %p81 = scmp.eq.s32.totalorder %s34, 0
    %p82 = por %p80, %p81
    %s84 = sadd.s32 %s83, 1
    %p87 = scmp.eq.s32.totalorder %s28, 1
    %p88 = scmp.ne.s32.totalorder %s83, %s85
    %p89 = scmp.eq.s32.totalorder %s28, 0
    %p90 = por %p88, %p89
    %p91 = scmp.ne.s32.totalorder %s83, %s85
    %p92 = scmp.eq.s32.totalorder %s33, 1
    %p93 = por %p91, %p92
    %p94 = scmp.ne.s32.totalorder %s85, %s86
    %p95 = scmp.eq.s32.totalorder %s33, 0
    %p96 = por %p94, %p95
    %p97 = scmp.ne.s32.totalorder %s85, %s86
    %p98 = scmp.eq.s32.totalorder %s34, 1
    %p99 = por %p97, %p98
    %p101 = scmp.ne.s32.totalorder %s86, %s100
    %p102 = scmp.eq.s32.totalorder %s34, 0
    %p103 = por %p101, %p102
    %s105 = sadd.s32 %s104, 1
    %p108 = scmp.eq.s32.totalorder %s28, 1
    %p109 = scmp.ne.s32.totalorder %s104, %s106
    %p110 = scmp.eq.s32.totalorder %s28, 0
    %p111 = por %p109, %p110
    %p112 = scmp.ne.s32.totalorder %s104, %s106
    %p113 = scmp.eq.s32.totalorder %s33, 1
    %p114 = por %p112, %p113
    %p115 = scmp.ne.s32.totalorder %s106, %s107
    %p116 = scmp.eq.s32.totalorder %s33, 0
    %p117 = por %p115, %p116
    %p118 = scmp.ne.s32.totalorder %s106, %s107
    %p119 = scmp.eq.s32.totalorder %s34, 1
    %p120 = por %p118, %p119
    %p122 = scmp.ne.s32.totalorder %s107, %s121
    %p123 = scmp.eq.s32.totalorder %s34, 0
    %p124 = por %p122, %p123
    %s126 = sadd.s32 %s125, 1
    %p129 = scmp.eq.s32.totalorder %s28, 1
    %p130 = scmp.ne.s32.totalorder %s125, %s127
    %p131 = scmp.eq.s32.totalorder %s28, 0
    %p132 = por %p130, %p131
    %p133 = scmp.ne.s32.totalorder %s125, %s127
    %p134 = scmp.eq.s32.totalorder %s33, 1
    %p135 = por %p133, %p134
    %p136 = scmp.ne.s32.totalorder %s127, %s128
    %p137 = scmp.eq.s32.totalorder %s33, 0
    %p138 = por %p136, %p137
    %p139 = scmp.ne.s32.totalorder %s127, %s128
    %p140 = scmp.eq.s32.totalorder %s34, 1
    %p141 = por %p139, %p140
    %p143 = scmp.ne.s32.totalorder %s128, %s142
    %p144 = scmp.eq.s32.totalorder %s34, 0
    %p145 = por %p143, %p144
    %s147 = sadd.s32 %s146, 1
    %p150 = scmp.eq.s32.totalorder %s28, 1
    %p151 = scmp.ne.s32.totalorder %s146, %s148
    %p152 = scmp.eq.s32.totalorder %s28, 0
    %p153 = por %p151, %p152
    %p154 = scmp.ne.s32.totalorder %s146, %s148
    %p155 = scmp.eq.s32.totalorder %s33, 1
    %p156 = por %p154, %p155
    %p157 = scmp.ne.s32.totalorder %s148, %s149
    %p158 = scmp.eq.s32.totalorder %s33, 0
    %p159 = por %p157, %p158
    %p160 = scmp.ne.s32.totalorder %s148, %s149
    %p161 = scmp.eq.s32.totalorder %s34, 1
    %p162 = por %p160, %p161
    %p164 = scmp.ne.s32.totalorder %s149, %s163
    %p165 = scmp.eq.s32.totalorder %s34, 0
    %p166 = por %p164, %p165
    %s168 = sadd.s32 %s167, 1
    %p171 = scmp.eq.s32.totalorder %s28, 1
    %p172 = scmp.ne.s32.totalorder %s167, %s169
    %p173 = scmp.eq.s32.totalorder %s28, 0
    %p174 = por %p172, %p173
    %p175 = scmp.ne.s32.totalorder %s167, %s169
    %p176 = scmp.eq.s32.totalorder %s33, 1
    %p177 = por %p175, %p176
    %p178 = scmp.ne.s32.totalorder %s169, %s170
    %p179 = scmp.eq.s32.totalorder %s33, 0
    %p180 = por %p178, %p179
    %p181 = scmp.ne.s32.totalorder %s169, %s170
    %p182 = scmp.eq.s32.totalorder %s34, 1
    %p183 = por %p181, %p182
    %p185 = scmp.ne.s32.totalorder %s170, %s184
    %p186 = scmp.eq.s32.totalorder %s34, 0
    %p187 = por %p185, %p186
    %s189 = sadd.s32 %s188, 1
    %p192 = scmp.eq.s32.totalorder %s28, 1
    %p193 = scmp.ne.s32.totalorder %s188, %s190
    %p194 = scmp.eq.s32.totalorder %s28, 0
    %p195 = por %p193, %p194
    %p196 = scmp.ne.s32.totalorder %s188, %s190
    %p197 = scmp.eq.s32.totalorder %s33, 1
    %p198 = por %p196, %p197
    %p199 = scmp.ne.s32.totalorder %s190, %s191
    %p200 = scmp.eq.s32.totalorder %s33, 0
    %p201 = por %p199, %p200
    %p202 = scmp.ne.s32.totalorder %s190, %s191
    %p203 = scmp.eq.s32.totalorder %s34, 1
    %p204 = por %p202, %p203
    %p206 = scmp.ne.s32.totalorder %s191, %s205
    %p207 = scmp.eq.s32.totalorder %s34, 0
    %p208 = por %p206, %p207
    %s210 = sadd.s32 %s209, 1
    %p213 = scmp.eq.s32.totalorder %s28, 1
    %p214 = scmp.ne.s32.totalorder %s209, %s211
    %p215 = scmp.eq.s32.totalorder %s28, 0
    %p216 = por %p214, %p215
    %p217 = scmp.ne.s32.totalorder %s209, %s211
    %p218 = scmp.eq.s32.totalorder %s33, 1
    %p219 = por %p217, %p218
    %p220 = scmp.ne.s32.totalorder %s211, %s212
    %p221 = scmp.eq.s32.totalorder %s33, 0
    %p222 = por %p220, %p221
    %p223 = scmp.ne.s32.totalorder %s211, %s212
    %p224 = scmp.eq.s32.totalorder %s34, 1
    %p225 = por %p223, %p224
    %p227 = scmp.ne.s32.totalorder %s212, %s226
    %p228 = scmp.eq.s32.totalorder %s34, 0
    %p229 = por %p227, %p228
    %s231 = sadd.s32 %s230, 1
    %p234 = scmp.eq.s32.totalorder %s28, 1
    %p235 = scmp.ne.s32.totalorder %s230, %s232
    %p236 = scmp.eq.s32.totalorder %s28, 0
    %p237 = por %p235, %p236
    %p238 = scmp.ne.s32.totalorder %s230, %s232
    %p239 = scmp.eq.s32.totalorder %s33, 1
    %p240 = por %p238, %p239
    %p241 = scmp.ne.s32.totalorder %s232, %s233
    %p242 = scmp.eq.s32.totalorder %s33, 0
    %p243 = por %p241, %p242
    %p244 = scmp.ne.s32.totalorder %s232, %s233
    %p245 = scmp.eq.s32.totalorder %s34, 1
    %p246 = por %p244, %p245
    %p248 = scmp.ne.s32.totalorder %s233, %s247
    %p249 = scmp.eq.s32.totalorder %s34, 0
    %p250 = por %p248, %p249
    %s252 = sadd.s32 %s251, 1
    %p255 = scmp.eq.s32.totalorder %s28, 1
    %p256 = scmp.ne.s32.totalorder %s251, %s253
    %p257 = scmp.eq.s32.totalorder %s28, 0
    %p258 = por %p256, %p257
    %p259 = scmp.ne.s32.totalorder %s251, %s253
    %p260 = scmp.eq.s32.totalorder %s33, 1
    %p261 = por %p259, %p260
    %p262 = scmp.ne.s32.totalorder %s253, %s254
    %p263 = scmp.eq.s32.totalorder %s33, 0
    %p264 = por %p262, %p263
    %p265 = scmp.ne.s32.totalorder %s253, %s254
    %p266 = scmp.eq.s32.totalorder %s34, 1
    %p267 = por %p265, %p266
    %p269 = scmp.ne.s32.totalorder %s254, %s268
    %p270 = scmp.eq.s32.totalorder %s34, 0
    %p271 = por %p269, %p270
    %s273 = sadd.s32 %s272, 1
    %p276 = scmp.eq.s32.totalorder %s28, 1
    %p277 = scmp.ne.s32.totalorder %s272, %s274
    %p278 = scmp.eq.s32.totalorder %s28, 0
    %p279 = por %p277, %p278
    %p280 = scmp.ne.s32.totalorder %s272, %s274
    %p281 = scmp.eq.s32.totalorder %s33, 1
    %p282 = por %p280, %p281
    %p283 = scmp.ne.s32.totalorder %s274, %s275
    %p284 = scmp.eq.s32.totalorder %s33, 0
    %p285 = por %p283, %p284
    %p286 = scmp.ne.s32.totalorder %s274, %s275
    %p287 = scmp.eq.s32.totalorder %s34, 1
    %p288 = por %p286, %p287
    %p290 = scmp.ne.s32.totalorder %s275, %s289
    %p291 = scmp.eq.s32.totalorder %s34, 0
    %p292 = por %p290, %p291
    %s294 = sadd.s32 %s293, 1
    %p297 = scmp.eq.s32.totalorder %s28, 1
    %p298 = scmp.ne.s32.totalorder %s293, %s295
    %p299 = scmp.eq.s32.totalorder %s28, 0
    %p300 = por %p298, %p299
    %p301 = scmp.ne.s32.totalorder %s293, %s295
    %p302 = scmp.eq.s32.totalorder %s33, 1
    %p303 = por %p301, %p302
    %p304 = scmp.ne.s32.totalorder %s295, %s296
    %p305 = scmp.eq.s32.totalorder %s33, 0
    %p306 = por %p304, %p305
    %p307 = scmp.ne.s32.totalorder %s295, %s296
    %p308 = scmp.eq.s32.totalorder %s34, 1
    %p309 = por %p307, %p308
    %p311 = scmp.ne.s32.totalorder %s296, %s310
    %p312 = scmp.eq.s32.totalorder %s34, 0
    %p313 = por %p311, %p312
    %s315 = sadd.s32 %s314, 1
    %p318 = scmp.eq.s32.totalorder %s28, 1
    %p319 = scmp.ne.s32.totalorder %s314, %s316
    %p320 = scmp.eq.s32.totalorder %s28, 0
    %p321 = por %p319, %p320
    %p322 = scmp.ne.s32.totalorder %s314, %s316
    %p323 = scmp.eq.s32.totalorder %s33, 1
    %p324 = por %p322, %p323
    %p325 = scmp.ne.s32.totalorder %s316, %s317
    %p326 = scmp.eq.s32.totalorder %s33, 0
    %p327 = por %p325, %p326
    %p328 = scmp.ne.s32.totalorder %s316, %s317
    %p329 = scmp.eq.s32.totalorder %s34, 1
    %p330 = por %p328, %p329
    %p332 = scmp.ne.s32.totalorder %s317, %s331
    %p333 = scmp.eq.s32.totalorder %s34, 0
    %p334 = por %p332, %p333
    %s336 = sadd.s32 %s335, 1
    %p339 = scmp.eq.s32.totalorder %s28, 1
    %p340 = scmp.ne.s32.totalorder %s335, %s337
    %p341 = scmp.eq.s32.totalorder %s28, 0
    %p342 = por %p340, %p341
    %p343 = scmp.ne.s32.totalorder %s335, %s337
    %p344 = scmp.eq.s32.totalorder %s33, 1
    %p345 = por %p343, %p344
    %p346 = scmp.ne.s32.totalorder %s337, %s338
    %p347 = scmp.eq.s32.totalorder %s33, 0
    %p348 = por %p346, %p347
    %p349 = scmp.ne.s32.totalorder %s337, %s338
    %p350 = scmp.eq.s32.totalorder %s34, 1
    %p351 = por %p349, %p350
    %p353 = scmp.ne.s32.totalorder %s338, %s352
    %p354 = scmp.eq.s32.totalorder %s34, 0
    %p355 = por %p353, %p354
    %s357 = sadd.s32 %s356, 1
    %p360 = scmp.eq.s32.totalorder %s28, 1
    %p361 = scmp.ne.s32.totalorder %s356, %s358
    %p362 = scmp.eq.s32.totalorder %s28, 0
    %p363 = por %p361, %p362
    %p364 = scmp.ne.s32.totalorder %s356, %s358
    %p365 = scmp.eq.s32.totalorder %s33, 1
    %p366 = por %p364, %p365
    %p367 = scmp.ne.s32.totalorder %s358, %s359
    %p368 = scmp.eq.s32.totalorder %s33, 0
    %p369 = por %p367, %p368
    %p370 = scmp.ne.s32.totalorder %s358, %s359
    %p371 = scmp.eq.s32.totalorder %s34, 1
    %p372 = por %p370, %p371
    %p374 = scmp.ne.s32.totalorder %s359, %s373
    %p375 = scmp.eq.s32.totalorder %s34, 0
    %p376 = por %p374, %p375
    %s378 = sadd.s32 %s377, 1
    %p381 = scmp.eq.s32.totalorder %s28, 1
    %p382 = scmp.ne.s32.totalorder %s377, %s379
    %p383 = scmp.eq.s32.totalorder %s28, 0
    %p384 = por %p382, %p383
    %p385 = scmp.ne.s32.totalorder %s377, %s379
    %p386 = scmp.eq.s32.totalorder %s33, 1
    %p387 = por %p385, %p386
    %p388 = scmp.ne.s32.totalorder %s379, %s380
    %p389 = scmp.eq.s32.totalorder %s33, 0
    %p390 = por %p388, %p389
    %p391 = scmp.ne.s32.totalorder %s379, %s380
    %p392 = scmp.eq.s32.totalorder %s34, 1
    %p393 = por %p391, %p392
    %p395 = scmp.ne.s32.totalorder %s380, %s394
    %p396 = scmp.eq.s32.totalorder %s34, 0
    %p397 = por %p395, %p396
    %s399 = sadd.s32 %s398, 1
    %p402 = scmp.eq.s32.totalorder %s28, 1
    %p403 = scmp.ne.s32.totalorder %s398, %s400
    %p404 = scmp.eq.s32.totalorder %s28, 0
    %p405 = por %p403, %p404
    %p406 = scmp.ne.s32.totalorder %s398, %s400
    %p407 = scmp.eq.s32.totalorder %s33, 1
    %p408 = por %p406, %p407
    %p409 = scmp.ne.s32.totalorder %s400, %s401
    %p410 = scmp.eq.s32.totalorder %s33, 0
    %p411 = por %p409, %p410
    %p412 = scmp.ne.s32.totalorder %s400, %s401
    %p413 = scmp.eq.s32.totalorder %s34, 1
    %p414 = por %p412, %p413
    %p416 = scmp.ne.s32.totalorder %s401, %s415
    %p417 = scmp.eq.s32.totalorder %s34, 0
    %p418 = por %p416, %p417
    %s420 = sadd.s32 %s419, 1
    %p423 = scmp.eq.s32.totalorder %s28, 1
    %p424 = scmp.ne.s32.totalorder %s419, %s421
    %p425 = scmp.eq.s32.totalorder %s28, 0
    %p426 = por %p424, %p425
    %p427 = scmp.ne.s32.totalorder %s419, %s421
    %p428 = scmp.eq.s32.totalorder %s33, 1
    %p429 = por %p427, %p428
    %p430 = scmp.ne.s32.totalorder %s421, %s422
    %p431 = scmp.eq.s32.totalorder %s33, 0
    %p432 = por %p430, %p431
    %p433 = scmp.ne.s32.totalorder %s421, %s422
    %p434 = scmp.eq.s32.totalorder %s34, 1
    %p435 = por %p433, %p434
    %p437 = scmp.ne.s32.totalorder %s422, %s436
    %p438 = scmp.eq.s32.totalorder %s34, 0
    %p439 = por %p437, %p438
    %s441 = sadd.s32 %s440, 1
    %p444 = scmp.eq.s32.totalorder %s28, 1
    %p445 = scmp.ne.s32.totalorder %s440, %s442
    %p446 = scmp.eq.s32.totalorder %s28, 0
    %p447 = por %p445, %p446
    %p448 = scmp.ne.s32.totalorder %s440, %s442
    %p449 = scmp.eq.s32.totalorder %s33, 1
    %p450 = por %p448, %p449
    %p451 = scmp.ne.s32.totalorder %s442, %s443
    %p452 = scmp.eq.s32.totalorder %s33, 0
    %p453 = por %p451, %p452
    %p454 = scmp.ne.s32.totalorder %s442, %s443
    %p455 = scmp.eq.s32.totalorder %s34, 1
    %p456 = por %p454, %p455
    %p458 = scmp.ne.s32.totalorder %s443, %s457
    %p459 = scmp.eq.s32.totalorder %s34, 0
    %p460 = por %p458, %p459
    %s462 = sadd.s32 %s461, 1
    %p465 = scmp.eq.s32.totalorder %s28, 1
    %p466 = scmp.ne.s32.totalorder %s461, %s463
    %p467 = scmp.eq.s32.totalorder %s28, 0
    %p468 = por %p466, %p467
    %p469 = scmp.ne.s32.totalorder %s461, %s463
    %p470 = scmp.eq.s32.totalorder %s33, 1
    %p471 = por %p469, %p470
    %p472 = scmp.ne.s32.totalorder %s463, %s464
    %p473 = scmp.eq.s32.totalorder %s33, 0
    %p474 = por %p472, %p473
    %p475 = scmp.ne.s32.totalorder %s463, %s464
    %p476 = scmp.eq.s32.totalorder %s34, 1
    %p477 = por %p475, %p476
    %p479 = scmp.ne.s32.totalorder %s464, %s478
    %p480 = scmp.eq.s32.totalorder %s34, 0
    %p481 = por %p479, %p480
    %s483 = sadd.s32 %s482, 1
    %p486 = scmp.eq.s32.totalorder %s28, 1
    %p487 = scmp.ne.s32.totalorder %s482, %s484
    %p488 = scmp.eq.s32.totalorder %s28, 0
    %p489 = por %p487, %p488
    %p490 = scmp.ne.s32.totalorder %s482, %s484
    %p491 = scmp.eq.s32.totalorder %s33, 1
    %p492 = por %p490, %p491
    %p493 = scmp.ne.s32.totalorder %s484, %s485
    %p494 = scmp.eq.s32.totalorder %s33, 0
    %p495 = por %p493, %p494
    %p496 = scmp.ne.s32.totalorder %s484, %s485
    %p497 = scmp.eq.s32.totalorder %s34, 1
    %p498 = por %p496, %p497
    %p500 = scmp.ne.s32.totalorder %s485, %s499
    %p501 = scmp.eq.s32.totalorder %s34, 0
    %p502 = por %p500, %p501
    %s503 = ssub.s32 %s28, %s35
    %p504 = scmp.eq.s32.totalorder %s503, 0
    %s506 = sadd.s32 %s505, 1
    %s507 = scalar_select %p504, %s505, %s506
    %p510 = pneg %p504
    %p511 = scmp.eq.s32.totalorder %s28, 1
    %p512 = por %p510, %p511
    %p513 = scmp.ne.s32.totalorder %s505, %s508
    %p514 = scmp.eq.s32.totalorder %s28, 0
    %p515 = por %p513, %p514
    %p516 = scmp.ne.s32.totalorder %s505, %s508
    %p517 = scmp.eq.s32.totalorder %s33, 1
    %p518 = por %p516, %p517
    %p519 = scmp.ne.s32.totalorder %s508, %s509
    %p520 = scmp.eq.s32.totalorder %s33, 0
    %p521 = por %p519, %p520
    %p522 = scmp.ne.s32.totalorder %s508, %s509
    %p523 = scmp.eq.s32.totalorder %s34, 1
    %p524 = por %p522, %p523
    %p526 = scmp.ne.s32.totalorder %s509, %s525
    %p527 = scmp.eq.s32.totalorder %s34, 0
    %p528 = por %p526, %p527
    %p529 = scmp.le.s32.totalorder 1, %s28
    %p530 = scmp.lt.s32.totalorder %s28, 3
    %p531 = pnand %p529, %p530
    %p532 = pneg %p531
    // Predicated region
    $region9: #{tpu_custom_call.1} parent=5 // pred_check
      _
    $region10: #{tpu_custom_call.1} parent=5 // pred_check_branch
      %534 = sbr.rel (%p531) target = $region12
    $region11: #{tpu_custom_call.1} parent=5 // pred_region
      %s535 = ssub.s32 %s28, 1
      // Predicated region
      $region13: #{tpu_custom_call.1} parent=11 // pred_check
        %p536 = pneg %p75
      $region14: #{tpu_custom_call.1} parent=11 // pred_check_branch
        %538 = sbr.rel (%p536) target = $region16
      $region15: #{tpu_custom_call.1} parent=11 // pred_region
        _
      $region16: #{tpu_custom_call.1} parent=11 // pred_fallthru
        _
      // Predicated region
      $region17: #{tpu_custom_call.1} parent=11 // pred_check
        %p539 = pneg %p96
      $region18: #{tpu_custom_call.1} parent=11 // pred_check_branch
        %541 = sbr.rel (%p539) target = $region20
      $region19: #{tpu_custom_call.1} parent=11 // pred_region
        _
      $region20: #{tpu_custom_call.1} parent=11 // pred_fallthru
        _
      // Predicated region
      $region21: #{tpu_custom_call.1} parent=11 // pred_check
        %p542 = pneg %p117
      $region22: #{tpu_custom_call.1} parent=11 // pred_check_branch
        %544 = sbr.rel (%p542) target = $region24
      $region23: #{tpu_custom_call.1} parent=11 // pred_region
        _
      $region24: #{tpu_custom_call.1} parent=11 // pred_fallthru
        _
      // Predicated region
      $region25: #{tpu_custom_call.1} parent=11 // pred_check
        %p545 = pneg %p138
      $region26: #{tpu_custom_call.1} parent=11 // pred_check_branch
        %547 = sbr.rel (%p545) target = $region28
      $region27: #{tpu_custom_call.1} parent=11 // pred_region
        _
      $region28: #{tpu_custom_call.1} parent=11 // pred_fallthru
        _
      // Predicated region
      $region29: #{tpu_custom_call.1} parent=11 // pred_check
        %p548 = pneg %p159
      $region30: #{tpu_custom_call.1} parent=11 // pred_check_branch
        %550 = sbr.rel (%p548) target = $region32
      $region31: #{tpu_custom_call.1} parent=11 // pred_region
        _
      $region32: #{tpu_custom_call.1} parent=11 // pred_fallthru
        _
      // Predicated region
      $region33: #{tpu_custom_call.1} parent=11 // pred_check
        %p551 = pneg %p180
      $region34: #{tpu_custom_call.1} parent=11 // pred_check_branch
        %553 = sbr.rel (%p551) target = $region36
      $region35: #{tpu_custom_call.1} parent=11 // pred_region
        _
      $region36: #{tpu_custom_call.1} parent=11 // pred_fallthru
        _
      // Predicated region
      $region37: #{tpu_custom_call.1} parent=11 // pred_check
        %p554 = pneg %p201
      $region38: #{tpu_custom_call.1} parent=11 // pred_check_branch
        %556 = sbr.rel (%p554) target = $region40
      $region39: #{tpu_custom_call.1} parent=11 // pred_region
        _
      $region40: #{tpu_custom_call.1} parent=11 // pred_fallthru
        _
      // Predicated region
      $region41: #{tpu_custom_call.1} parent=11 // pred_check
        %p557 = pneg %p222
      $region42: #{tpu_custom_call.1} parent=11 // pred_check_branch
        %559 = sbr.rel (%p557) target = $region44
      $region43: #{tpu_custom_call.1} parent=11 // pred_region
        _
      $region44: #{tpu_custom_call.1} parent=11 // pred_fallthru
        _
      // Predicated region
      $region45: #{tpu_custom_call.1} parent=11 // pred_check
        %p560 = pneg %p243
      $region46: #{tpu_custom_call.1} parent=11 // pred_check_branch
        %562 = sbr.rel (%p560) target = $region48
      $region47: #{tpu_custom_call.1} parent=11 // pred_region
        _
      $region48: #{tpu_custom_call.1} parent=11 // pred_fallthru
        _
      // Predicated region
      $region49: #{tpu_custom_call.1} parent=11 // pred_check
        %p563 = pneg %p264
      $region50: #{tpu_custom_call.1} parent=11 // pred_check_branch
        %565 = sbr.rel (%p563) target = $region52
      $region51: #{tpu_custom_call.1} parent=11 // pred_region
        _
      $region52: #{tpu_custom_call.1} parent=11 // pred_fallthru
        _
      // Predicated region
      $region53: #{tpu_custom_call.1} parent=11 // pred_check
        %p566 = pneg %p285
      $region54: #{tpu_custom_call.1} parent=11 // pred_check_branch
        %568 = sbr.rel (%p566) target = $region56
      $region55: #{tpu_custom_call.1} parent=11 // pred_region
        _
      $region56: #{tpu_custom_call.1} parent=11 // pred_fallthru
        _
      // Predicated region
      $region57: #{tpu_custom_call.1} parent=11 // pred_check
        %p569 = pneg %p306
      $region58: #{tpu_custom_call.1} parent=11 // pred_check_branch
        %571 = sbr.rel (%p569) target = $region60
      $region59: #{tpu_custom_call.1} parent=11 // pred_region
        _
      $region60: #{tpu_custom_call.1} parent=11 // pred_fallthru
        _
      // Predicated region
      $region61: #{tpu_custom_call.1} parent=11 // pred_check
        %p572 = pneg %p327
      $region62: #{tpu_custom_call.1} parent=11 // pred_check_branch
        %574 = sbr.rel (%p572) target = $region64
      $region63: #{tpu_custom_call.1} parent=11 // pred_region
        _
      $region64: #{tpu_custom_call.1} parent=11 // pred_fallthru
        _
      // Predicated region
      $region65: #{tpu_custom_call.1} parent=11 // pred_check
        %p575 = pneg %p348
      $region66: #{tpu_custom_call.1} parent=11 // pred_check_branch
        %577 = sbr.rel (%p575) target = $region68
      $region67: #{tpu_custom_call.1} parent=11 // pred_region
        _
      $region68: #{tpu_custom_call.1} parent=11 // pred_fallthru
        _
      // Predicated region
      $region69: #{tpu_custom_call.1} parent=11 // pred_check
        %p578 = pneg %p369
      $region70: #{tpu_custom_call.1} parent=11 // pred_check_branch
        %580 = sbr.rel (%p578) target = $region72
      $region71: #{tpu_custom_call.1} parent=11 // pred_region
        _
      $region72: #{tpu_custom_call.1} parent=11 // pred_fallthru
        _
      // Predicated region
      $region73: #{tpu_custom_call.1} parent=11 // pred_check
        %p581 = pneg %p390
      $region74: #{tpu_custom_call.1} parent=11 // pred_check_branch
        %583 = sbr.rel (%p581) target = $region76
      $region75: #{tpu_custom_call.1} parent=11 // pred_region
        _
      $region76: #{tpu_custom_call.1} parent=11 // pred_fallthru
        _
      // Predicated region
      $region77: #{tpu_custom_call.1} parent=11 // pred_check
        %p584 = pneg %p411
      $region78: #{tpu_custom_call.1} parent=11 // pred_check_branch
        %586 = sbr.rel (%p584) target = $region80
      $region79: #{tpu_custom_call.1} parent=11 // pred_region
        _
      $region80: #{tpu_custom_call.1} parent=11 // pred_fallthru
        _
      // Predicated region
      $region81: #{tpu_custom_call.1} parent=11 // pred_check
        %p587 = pneg %p432
      $region82: #{tpu_custom_call.1} parent=11 // pred_check_branch
        %589 = sbr.rel (%p587) target = $region84
      $region83: #{tpu_custom_call.1} parent=11 // pred_region
        _
      $region84: #{tpu_custom_call.1} parent=11 // pred_fallthru
        _
      // Predicated region
      $region85: #{tpu_custom_call.1} parent=11 // pred_check
        %p590 = pneg %p453
      $region86: #{tpu_custom_call.1} parent=11 // pred_check_branch
        %592 = sbr.rel (%p590) target = $region88
      $region87: #{tpu_custom_call.1} parent=11 // pred_region
        _
      $region88: #{tpu_custom_call.1} parent=11 // pred_fallthru
        _
      // Predicated region
      $region89: #{tpu_custom_call.1} parent=11 // pred_check
        %p593 = pneg %p474
      $region90: #{tpu_custom_call.1} parent=11 // pred_check_branch
        %595 = sbr.rel (%p593) target = $region92
      $region91: #{tpu_custom_call.1} parent=11 // pred_region
        _
      $region92: #{tpu_custom_call.1} parent=11 // pred_fallthru
        _
      // Predicated region
      $region93: #{tpu_custom_call.1} parent=11 // pred_check
        %p596 = pneg %p495
      $region94: #{tpu_custom_call.1} parent=11 // pred_check_branch
        %598 = sbr.rel (%p596) target = $region96
      $region95: #{tpu_custom_call.1} parent=11 // pred_region
        _
      $region96: #{tpu_custom_call.1} parent=11 // pred_fallthru
        _
    $region12: #{tpu_custom_call.1} parent=5 // pred_fallthru
      _
    %p599 = scmp.lt.s32.totalorder %s28, 2
    // Predicated region
    $region97: #{tpu_custom_call.1} parent=5 // pred_check
      %p600 = pneg %p599
    $region98: #{tpu_custom_call.1} parent=5 // pred_check_branch
      %602 = sbr.rel (%p600) target = $region100
    $region99: #{tpu_custom_call.1} parent=5 // pred_region
      // Predicated region
      $region101: #{tpu_custom_call.1} parent=99 // pred_check
        %p603 = pneg %p48
      $region102: #{tpu_custom_call.1} parent=99 // pred_check_branch
        %605 = sbr.rel (%p603) target = $region104
      $region103: #{tpu_custom_call.1} parent=99 // pred_region
        %p606 = scmp.lt.s32.totalorder %s28, 1
        %s607 = scalar_select %p606, %s28, 1
        %s608 = smul.addr %s607, 2
        %s609 = smul.addr %s608, 8
        %s610 = scalar_lea.vmem %s0, %s609
      $region104: #{tpu_custom_call.1} parent=99 // pred_fallthru
        _
    $region100: #{tpu_custom_call.1} parent=5 // pred_fallthru
      _
    %p611 = scmp.le.s32.totalorder 1, %s28
    %p612 = scmp.lt.s32.totalorder %s28, 3
    %p613 = pnand %p611, %p612
    %p614 = pneg %p613
    // Predicated region
    $region105: #{tpu_custom_call.1} parent=5 // pred_check
      _
    $region106: #{tpu_custom_call.1} parent=5 // pred_check_branch
      %616 = sbr.rel (%p613) target = $region108
    $region107: #{tpu_custom_call.1} parent=5 // pred_region
      %s617 = ssub.s32 %s28, 1
      %p618 = scmp.lt.s32.totalorder %s33, 1
      %s619 = scalar_select %p618, %s33, 1
      %s620 = smul.addr %s619, 2
      %s621 = smul.addr %s620, 8
      %s622 = scalar_lea.vmem %s0, %s621
      %p623 = pneg %p54
      %p624 = pneg %p51
      %p625 = pneg %p75
      %p626 = pneg %p72
      %p627 = pneg %p96
      %p628 = pneg %p93
      %p629 = pneg %p117
      %p630 = pneg %p114
      %p631 = pneg %p138
      %p632 = pneg %p135
      %p633 = pneg %p159
      %p634 = pneg %p156
      %p635 = pneg %p180
      %p636 = pneg %p177
      %p637 = pneg %p201
      %p638 = pneg %p198
      %p639 = pneg %p222
      %p640 = pneg %p219
      %p641 = pneg %p243
      %p642 = pneg %p240
      %p643 = pneg %p264
      %p644 = pneg %p261
      %p645 = pneg %p285
      %p646 = pneg %p282
      %p647 = pneg %p306
      %p648 = pneg %p303
      %p649 = pneg %p327
      %p650 = pneg %p324
      %p651 = pneg %p348
      %p652 = pneg %p345
      %p653 = pneg %p369
      %p654 = pneg %p366
      %p655 = pneg %p390
      %p656 = pneg %p387
      %p657 = pneg %p411
      %p658 = pneg %p408
      %p659 = pneg %p432
      %p660 = pneg %p429
      %p661 = pneg %p453
      %p662 = pneg %p450
      %p663 = pneg %p474
      %p664 = pneg %p471
      %p665 = pneg %p495
      %p666 = pneg %p492
      %p667 = pneg %p521
      %p668 = pneg %p518
      %p669 = scmp.lt.s32.totalorder %s33, 1
      %s670 = scalar_select %p669, %s33, 1
      %s671 = smul.addr %s670, 2
      %s672 = smul.addr %s671, 8
      %s673 = scalar_lea.vmem %s22, %s672
      %p674 = scmp.lt.s32.totalorder %s33, 1
      %s675 = scalar_select %p674, %s33, 1
      %s676 = smul.addr %s675, 2
      %s677 = smul.addr %s676, 8
      %s678 = scalar_lea.vmem %s0, %s677
      %p679 = scmp.lt.s32.totalorder %s33, 1
      %s680 = scalar_select %p679, %s33, 1
      %s681 = smul.addr %s680, 2
      %s682 = smul.addr %s681, 8
      %s683 = scalar_lea.vmem %s22, %s682
      %v684 = vld [vmem:[%s678] sm:$0xff]
      %v685 = vld [vmem:[%s678 + $0x8] sm:$0x3]
      %v686 = vld [vmem:[%s1] sm:$0xff]
      %v687 = vld [vmem:[%s1 + $0x8] sm:$0x3]
      %v688 = vld [vmem:[%s3] sm:$0x1]
      %v689 = vld [vmem:[%s3 + $0x1] sm:$0x1]
      %v690 = vld [vmem:[%s4] sm:$0x1]
      %v691 = vld [vmem:[%s4 + $0x1] sm:$0x1]
      %v692 = vld [vmem:[%s5] sm:$0xff]
      %v693 = vld [vmem:[%s5 + $0x8] sm:$0xff]
      %v694 = vld [vmem:[%s5 + $0x10] sm:$0xff]
      %v695 = vld [vmem:[%s5 + $0x18] sm:$0xff]
      %v696 = vld [vmem:[%s5 + $0x20] sm:$0xff]
      %v697 = vld [vmem:[%s5 + $0x28] sm:$0xff]
      %v698 = vld [vmem:[%s5 + $0x30] sm:$0xff]
      %v699 = vld [vmem:[%s5 + $0x38] sm:$0xff]
      %v700 = vld [vmem:[%s5 + $0x40] sm:$0xff]
      %v701 = vld [vmem:[%s5 + $0x48] sm:$0xff]
      %v702 = vld [vmem:[%s5 + $0x50] sm:$0xff]
      %v703 = vld [vmem:[%s5 + $0x58] sm:$0xff]
      %v704 = vld [vmem:[%s5 + $0x60] sm:$0xff]
      %v705 = vld [vmem:[%s5 + $0x68] sm:$0xff]
      %v706 = vld [vmem:[%s5 + $0x70] sm:$0xff]
      %v707 = vld [vmem:[%s5 + $0x78] sm:$0xff]
      %v708 = vld [vmem:[%s6] sm:$0x1]
      %v709 = vld [vmem:[%s6 + $0x1] sm:$0x1]
      %v710 = vld [vmem:[%s6 + $0x2] sm:$0x1]
      %v711 = vld [vmem:[%s6 + $0x3] sm:$0x1]
      %v712 = vld [vmem:[%s7] sm:$0xff]
      %v713 = vld [vmem:[%s7 + $0x8] sm:$0xff]
      %v714 = vld [vmem:[%s7 + $0x10] sm:$0xff]
      %v715 = vld [vmem:[%s7 + $0x18] sm:$0xff]
      %v716 = vld [vmem:[%s7 + $0x20] sm:$0xff]
      %v717 = vld [vmem:[%s7 + $0x28] sm:$0xff]
      %v718 = vld [vmem:[%s7 + $0x30] sm:$0xff]
      %v719 = vld [vmem:[%s7 + $0x38] sm:$0xff]
      %v720 = vld [vmem:[%s7 + $0x40] sm:$0xff]
      %v721 = vld [vmem:[%s7 + $0x48] sm:$0xff]
      %v722 = vld [vmem:[%s7 + $0x50] sm:$0xff]
      %v723 = vld [vmem:[%s7 + $0x58] sm:$0xff]
      %v724 = vld [vmem:[%s7 + $0x60] sm:$0xff]
      %v725 = vld [vmem:[%s7 + $0x68] sm:$0xff]
      %v726 = vld [vmem:[%s7 + $0x70] sm:$0xff]
      %v727 = vld [vmem:[%s7 + $0x78] sm:$0xff]
      %v728 = vld [vmem:[%s8] sm:$0x1]
      %v729 = vld [vmem:[%s8 + $0x1] sm:$0x1]
      %v730 = vld [vmem:[%s8 + $0x2] sm:$0x1]
      %v731 = vld [vmem:[%s8 + $0x3] sm:$0x1]
      %v732 = vld [vmem:[%s9] sm:$0xff]
      %v733 = vld [vmem:[%s9 + $0x8] sm:$0xff]
      %v734 = vld [vmem:[%s9 + $0x10] sm:$0xff]
      %v735 = vld [vmem:[%s9 + $0x18] sm:$0xff]
      %v736 = vld [vmem:[%s9 + $0x20] sm:$0xff]
      %v737 = vld [vmem:[%s9 + $0x28] sm:$0xff]
      %v738 = vld [vmem:[%s9 + $0x30] sm:$0xff]
      %v739 = vld [vmem:[%s9 + $0x38] sm:$0xff]
      %v740 = vld [vmem:[%s9 + $0x40] sm:$0xff]
      %v741 = vld [vmem:[%s9 + $0x48] sm:$0xff]
      %v742 = vld [vmem:[%s9 + $0x50] sm:$0xff]
      %v743 = vld [vmem:[%s9 + $0x58] sm:$0xff]
      %v744 = vld [vmem:[%s9 + $0x60] sm:$0xff]
      %v745 = vld [vmem:[%s9 + $0x68] sm:$0xff]
      %v746 = vld [vmem:[%s9 + $0x70] sm:$0xff]
      %v747 = vld [vmem:[%s9 + $0x78] sm:$0xff]
      %v748 = vld [vmem:[%s10] sm:$0x1]
      %v749 = vld [vmem:[%s10 + $0x1] sm:$0x1]
      %v750 = vld [vmem:[%s10 + $0x2] sm:$0x1]
      %v751 = vld [vmem:[%s10 + $0x3] sm:$0x1]
      %v752 = vld [vmem:[%s11] sm:$0xff]
      %v753 = vld [vmem:[%s11 + $0x8] sm:$0xff]
      %v754 = vld [vmem:[%s11 + $0x10] sm:$0xff]
      %v755 = vld [vmem:[%s11 + $0x18] sm:$0xff]
      %v756 = vld [vmem:[%s11 + $0x20] sm:$0xff]
      %v757 = vld [vmem:[%s11 + $0x28] sm:$0xff]
      %v758 = vld [vmem:[%s11 + $0x30] sm:$0xff]
      %v759 = vld [vmem:[%s11 + $0x38] sm:$0xff]
      %v760 = vld [vmem:[%s12] sm:$0x1]
      %v761 = vld [vmem:[%s12 + $0x1] sm:$0x1]
      %v762 = vld [vmem:[%s13] sm:$0x1]
      %v763 = vld [vmem:[%s13 + $0x1] sm:$0x1]
      %v764 = vld [vmem:[%s14] sm:$0x1]
      %v765 = vld [vmem:[%s14 + $0x1] sm:$0x1]
      %v766 = vld [vmem:[%s15] sm:$0xff]
      %v767 = vld [vmem:[%s15 + $0x8] sm:$0xff]
      %v768 = vld [vmem:[%s15 + $0x10] sm:$0xff]
      %v769 = vld [vmem:[%s15 + $0x18] sm:$0xff]
      %v770 = vld [vmem:[%s15 + $0x20] sm:$0xff]
      %v771 = vld [vmem:[%s15 + $0x28] sm:$0xff]
      %v772 = vld [vmem:[%s15 + $0x30] sm:$0xff]
      %v773 = vld [vmem:[%s15 + $0x38] sm:$0xff]
      %v774 = vld [vmem:[%s16] sm:$0x1]
      %v775 = vld [vmem:[%s16 + $0x1] sm:$0x1]
      %v776 = vld [vmem:[%s17] sm:$0xff]
      %v777 = vld [vmem:[%s17 + $0x8] sm:$0xff]
      %v778 = vld [vmem:[%s17 + $0x10] sm:$0xff]
      %v779 = vld [vmem:[%s17 + $0x18] sm:$0xff]
      %v780 = vld [vmem:[%s17 + $0x20] sm:$0xff]
      %v781 = vld [vmem:[%s17 + $0x28] sm:$0xff]
      %v782 = vld [vmem:[%s17 + $0x30] sm:$0xff]
      %v783 = vld [vmem:[%s17 + $0x38] sm:$0xff]
      %v784 = vld [vmem:[%s17 + $0x40] sm:$0xff]
      %v785 = vld [vmem:[%s17 + $0x48] sm:$0xff]
      %v786 = vld [vmem:[%s17 + $0x50] sm:$0xff]
      %v787 = vld [vmem:[%s17 + $0x58] sm:$0xff]
      %v788 = vld [vmem:[%s17 + $0x60] sm:$0xff]
      %v789 = vld [vmem:[%s17 + $0x68] sm:$0xff]
      %v790 = vld [vmem:[%s17 + $0x70] sm:$0xff]
      %v791 = vld [vmem:[%s17 + $0x78] sm:$0xff]
      %v792 = vld [vmem:[%s17 + $0x80] sm:$0xff]
      %v793 = vld [vmem:[%s17 + $0x88] sm:$0xff]
      %v794 = vld [vmem:[%s17 + $0x90] sm:$0xff]
      %v795 = vld [vmem:[%s17 + $0x98] sm:$0xff]
      %v796 = vld [vmem:[%s17 + $0xa0] sm:$0xff]
      %v797 = vld [vmem:[%s17 + $0xa8] sm:$0xff]
      %v798 = vld [vmem:[%s17 + $0xb0] sm:$0xff]
      %v799 = vld [vmem:[%s17 + $0xb8] sm:$0xff]
      %v800 = vld [vmem:[%s17 + $0xc0] sm:$0xff]
      %v801 = vld [vmem:[%s17 + $0xc8] sm:$0xff]
      %v802 = vld [vmem:[%s17 + $0xd0] sm:$0xff]
      %v803 = vld [vmem:[%s17 + $0xd8] sm:$0xff]
      %v804 = vld [vmem:[%s17 + $0xe0] sm:$0xff]
      %v805 = vld [vmem:[%s17 + $0xe8] sm:$0xff]
      %v806 = vld [vmem:[%s17 + $0xf0] sm:$0xff]
      %v807 = vld [vmem:[%s17 + $0xf8] sm:$0xff]
      %v808 = vld [vmem:[%s18] sm:$0x1]
      %v809 = vld [vmem:[%s18 + $0x1] sm:$0x1]
      %vm810 = vcmask 261120
      %v811 = vsel %vm810, %v684, 0.0
      %812 = vadd.xlane.f32.xlu0 %v811
      %v813 = vpop.xlane.xlu0 %812
      %vm814 = vcmask 254976
      %v815 = vsel %vm814, %v685, 0.0
      %816 = vadd.xlane.f32.xlu0 %v815
      %v817 = vpop.xlane.xlu0 %816
      %v818 = vrcp.pop 32.0
      %v819 = vmul.f32 %v813, %v818
      %v820 = vmul.f32 %v817, %v818
      %v821 = vsub.f32 %v684, %v819
      %v822 = vsub.f32 %v685, %v820
      %v823 = vmul.f32 %v821, %v821
      %v824 = vmul.f32 %v822, %v822
      %v825 = vsel %vm810, %v823, 0.0
      %826 = vadd.xlane.f32.xlu0 %v825
      %v827 = vpop.xlane.xlu0 %826
      %v828 = vsel %vm814, %v824, 0.0
      %829 = vadd.xlane.f32.xlu0 %v828
      %v830 = vpop.xlane.xlu0 %829
      %v831 = vmul.f32 %v827, %v818
      %v832 = vmul.f32 %v830, %v818
      %v833 = vadd.f32 %v831, 1e-05
      %v834 = vadd.f32 %v832, 1e-05
      %v835 = vrsqrt.pop %v833
      %v836 = vrsqrt.pop %v834
      %v837 = vmul.f32 %v821, %v835
      %v838 = vmul.f32 %v822, %v836
      %v840 = vlaneseq
      %v841 = vshrl.u32 %v840, 7
      %v842 = vsub.s32 0, %v841
      %v843 = vrot.slane %v688, %v842
      %v845 = vmul.f32 %v837, %v843
      %v846 = vmul.f32 %v838, %v843
      %v848 = vlaneseq
      %v849 = vshrl.u32 %v848, 7
      %v850 = vsub.s32 0, %v849
      %v851 = vrot.slane %v690, %v850
      %v853 = vadd.f32 %v845, %v851
      %v854 = vadd.f32 %v846, %v851
      %v856 = vlaneseq
      %v857 = vshrl.u32 %v856, 7
      %v858 = vsub.s32 0, %v857
      %v859 = vrot.slane %v708, %v858
      %v862 = vsel %vm810, %v853, 0
      %v865 = vsel %vm810, %v854, 0
      %867 = vmatprep.subr.mxu0 0.0
      %868 = vmatpush1.msra.mxu0 %v692
      %869 = vmatprep.subr.mxu0 0.0
      %870 = vmatpush1.msra.mxu0 %v693
      %871 = vmatprep.subr.mxu0 0.0
      %872 = vmatpush1.msra.mxu0 %v694
      %873 = vmatprep.subr.mxu0 0.0
      %874 = vmatpush1.msra.mxu0 %v695
      %875 = vmatprep.subr.mxu0 0.0
      %876 = vmatpush1.msra.mxu0 0.0
      %877 = vmatprep.subr.mxu0 0.0
      %878 = vmatpush1.msra.mxu0 0.0
      %879 = vmatprep.subr.mxu0 0.0
      %880 = vmatpush1.msra.mxu0 0.0
      %881 = vmatprep.subr.mxu0 0.0
      %882 = vmatpush1.msra.mxu0 0.0
      %883 = vmatprep.subr.mxu0 0.0
      %884 = vmatpush1.msra.mxu0 0.0
      %885 = vmatprep.subr.mxu0 0.0
      %886 = vmatpush1.msra.mxu0 0.0
      %887 = vmatprep.subr.mxu0 0.0
      %888 = vmatpush1.msra.mxu0 0.0
      %889 = vmatprep.subr.mxu0 0.0
      %890 = vmatpush1.msra.mxu0 0.0
      %891 = vmatprep.subr.mxu0 0.0
      %892 = vmatpush1.msra.mxu0 0.0
      %893 = vmatprep.subr.mxu0 0.0
      %894 = vmatpush1.msra.mxu0 0.0
      %895 = vmatprep.subr.mxu0 0.0
      %896 = vmatpush1.msra.mxu0 0.0
      %897 = vmatprep.subr.mxu0 0.0
      %898 = vmatpush1.msra.mxu0 0.0
      %899 = vmatprep.subr.mxu0 0.0
      %900 = vmatpush1.msra.mxu0 0.0
      %901 = vmatprep.subr.mxu0 0.0
      %902 = vmatpush1.msra.mxu0 0.0
      %903 = vmatprep.subr.mxu0 0.0
      %904 = vmatpush1.msra.mxu0 0.0
      %905 = vmatprep.subr.mxu0 0.0
      %906 = vmatpush1.msra.mxu0 0.0
      %907 = vmatprep.subr.mxu0 0.0
      %908 = vmatpush1.msra.mxu0 0.0
      %909 = vmatprep.subr.mxu0 0.0
      %910 = vmatpush1.msra.mxu0 0.0
      %911 = vmatprep.subr.mxu0 0.0
      %912 = vmatpush1.msra.mxu0 0.0
      %913 = vmatprep.subr.mxu0 0.0
      %914 = vmatpush1.msra.mxu0 0.0
      %915 = vmatprep.subr.mxu0 0.0
      %916 = vmatpush1.msra.mxu0 0.0
      %917 = vmatprep.subr.mxu0 0.0
      %918 = vmatpush1.msra.mxu0 0.0
      %919 = vmatprep.subr.mxu0 0.0
      %920 = vmatpush1.msra.mxu0 0.0
      %921 = vmatprep.subr.mxu0 0.0
      %922 = vmatpush1.msra.mxu0 0.0
      %923 = vmatprep.subr.mxu0 0.0
      %924 = vmatpush1.msra.mxu0 0.0
      %925 = vmatprep.subr.mxu0 0.0
      %926 = vmatpush1.msra.mxu0 0.0
      %927 = vmatprep.subr.mxu0 0.0
      %928 = vmatpush1.msra.mxu0 0.0
      %929 = vmatprep.subr.mxu0 0.0
      %930 = vmatpush1.msra.mxu0 0.0
      %931 = vmatprep.mubr.f32.mxu0 0.0
      %932 = vmatmul.mubr.f32.gmra.mrb[0].mxu0 %v862
      %v933 = vpop.f32.mrb[0].mxu0
      %v934 = vadd.f32 %v859, %v933
      %v935 = vpop.f32.mrb[0].mxu0
      %936 = vmatprep.mubr.f32.mxu0 0.0
      %937 = vmatmul.mubr.f32.gmra.mrb[0].mxu0 %v865
      %v938 = vpop.f32.mrb[0].mxu0
      %v939 = vadd.f32 %v859, %v938
      %v940 = vpop.f32.mrb[0].mxu0
      %941 = vdwg.mxu0
      %v943 = vlaneseq
      %v944 = vshrl.u32 %v943, 7
      %v945 = vsub.s32 0, %v944
      %v946 = vrot.slane %v728, %v945
      %948 = vmatprep.subr.mxu0 0.0
      %949 = vmatpush1.msra.mxu0 %v712
      %950 = vmatprep.subr.mxu0 0.0
      %951 = vmatpush1.msra.mxu0 %v713
      %952 = vmatprep.subr.mxu0 0.0
      %953 = vmatpush1.msra.mxu0 %v714
      %954 = vmatprep.subr.mxu0 0.0
      %955 = vmatpush1.msra.mxu0 %v715
      %956 = vmatprep.subr.mxu0 0.0
      %957 = vmatpush1.msra.mxu0 0.0
      %958 = vmatprep.subr.mxu0 0.0
      %959 = vmatpush1.msra.mxu0 0.0
      %960 = vmatprep.subr.mxu0 0.0
      %961 = vmatpush1.msra.mxu0 0.0
      %962 = vmatprep.subr.mxu0 0.0
      %963 = vmatpush1.msra.mxu0 0.0
      %964 = vmatprep.subr.mxu0 0.0
      %965 = vmatpush1.msra.mxu0 0.0
      %966 = vmatprep.subr.mxu0 0.0
      %967 = vmatpush1.msra.mxu0 0.0
      %968 = vmatprep.subr.mxu0 0.0
      %969 = vmatpush1.msra.mxu0 0.0
      %970 = vmatprep.subr.mxu0 0.0
      %971 = vmatpush1.msra.mxu0 0.0
      %972 = vmatprep.subr.mxu0 0.0
      %973 = vmatpush1.msra.mxu0 0.0
      %974 = vmatprep.subr.mxu0 0.0
      %975 = vmatpush1.msra.mxu0 0.0
      %976 = vmatprep.subr.mxu0 0.0
      %977 = vmatpush1.msra.mxu0 0.0
      %978 = vmatprep.subr.mxu0 0.0
      %979 = vmatpush1.msra.mxu0 0.0
      %980 = vmatprep.subr.mxu0 0.0
      %981 = vmatpush1.msra.mxu0 0.0
      %982 = vmatprep.subr.mxu0 0.0
      %983 = vmatpush1.msra.mxu0 0.0
      %984 = vmatprep.subr.mxu0 0.0
      %985 = vmatpush1.msra.mxu0 0.0
      %986 = vmatprep.subr.mxu0 0.0
      %987 = vmatpush1.msra.mxu0 0.0
      %988 = vmatprep.subr.mxu0 0.0
      %989 = vmatpush1.msra.mxu0 0.0
      %990 = vmatprep.subr.mxu0 0.0
      %991 = vmatpush1.msra.mxu0 0.0
      %992 = vmatprep.subr.mxu0 0.0
      %993 = vmatpush1.msra.mxu0 0.0
      %994 = vmatprep.subr.mxu0 0.0
      %995 = vmatpush1.msra.mxu0 0.0
      %996 = vmatprep.subr.mxu0 0.0
      %997 = vmatpush1.msra.mxu0 0.0
      %998 = vmatprep.subr.mxu0 0.0
      %999 = vmatpush1.msra.mxu0 0.0
      %1000 = vmatprep.subr.mxu0 0.0
      %1001 = vmatpush1.msra.mxu0 0.0
      %1002 = vmatprep.subr.mxu0 0.0
      %1003 = vmatpush1.msra.mxu0 0.0
      %1004 = vmatprep.subr.mxu0 0.0
      %1005 = vmatpush1.msra.mxu0 0.0
      %1006 = vmatprep.subr.mxu0 0.0
      %1007 = vmatpush1.msra.mxu0 0.0
      %1008 = vmatprep.subr.mxu0 0.0
      %1009 = vmatpush1.msra.mxu0 0.0
      %1010 = vmatprep.subr.mxu0 0.0
      %1011 = vmatpush1.msra.mxu0 0.0
      %1012 = vmatprep.mubr.f32.mxu0 0.0
      %1013 = vmatmul.mubr.f32.gmra.mrb[0].mxu0 %v862
      %v1014 = vpop.f32.mrb[0].mxu0
      %v1015 = vadd.f32 %v946, %v1014
      %v1016 = vpop.f32.mrb[0].mxu0
      %1017 = vmatprep.mubr.f32.mxu0 0.0
      %1018 = vmatmul.mubr.f32.gmra.mrb[0].mxu0 %v865
      %v1019 = vpop.f32.mrb[0].mxu0
      %v1020 = vadd.f32 %v946, %v1019
      %v1021 = vpop.f32.mrb[0].mxu0
      %1022 = vdwg.mxu0
      %v1024 = vlaneseq
      %v1025 = vshrl.u32 %v1024, 7
      %v1026 = vsub.s32 0, %v1025
      %v1027 = vrot.slane %v748, %v1026
      %1029 = vmatprep.subr.mxu0 0.0
      %1030 = vmatpush1.msra.mxu0 %v732
      %1031 = vmatprep.subr.mxu0 0.0
      %1032 = vmatpush1.msra.mxu0 %v733
      %1033 = vmatprep.subr.mxu0 0.0
      %1034 = vmatpush1.msra.mxu0 %v734
      %1035 = vmatprep.subr.mxu0 0.0
      %1036 = vmatpush1.msra.mxu0 %v735
      %1037 = vmatprep.subr.mxu0 0.0
      %1038 = vmatpush1.msra.mxu0 0.0
      %1039 = vmatprep.subr.mxu0 0.0
      %1040 = vmatpush1.msra.mxu0 0.0
      %1041 = vmatprep.subr.mxu0 0.0
      %1042 = vmatpush1.msra.mxu0 0.0
      %1043 = vmatprep.subr.mxu0 0.0
      %1044 = vmatpush1.msra.mxu0 0.0
      %1045 = vmatprep.subr.mxu0 0.0
      %1046 = vmatpush1.msra.mxu0 0.0
      %1047 = vmatprep.subr.mxu0 0.0
      %1048 = vmatpush1.msra.mxu0 0.0
      %1049 = vmatprep.subr.mxu0 0.0
      %1050 = vmatpush1.msra.mxu0 0.0
      %1051 = vmatprep.subr.mxu0 0.0
      %1052 = vmatpush1.msra.mxu0 0.0
      %1053 = vmatprep.subr.mxu0 0.0
      %1054 = vmatpush1.msra.mxu0 0.0
      %1055 = vmatprep.subr.mxu0 0.0
      %1056 = vmatpush1.msra.mxu0 0.0
      %1057 = vmatprep.subr.mxu0 0.0
      %1058 = vmatpush1.msra.mxu0 0.0
      %1059 = vmatprep.subr.mxu0 0.0
      %1060 = vmatpush1.msra.mxu0 0.0
      %1061 = vmatprep.subr.mxu0 0.0
      %1062 = vmatpush1.msra.mxu0 0.0
      %1063 = vmatprep.subr.mxu0 0.0
      %1064 = vmatpush1.msra.mxu0 0.0
      %1065 = vmatprep.subr.mxu0 0.0
      %1066 = vmatpush1.msra.mxu0 0.0
      %1067 = vmatprep.subr.mxu0 0.0
      %1068 = vmatpush1.msra.mxu0 0.0
      %1069 = vmatprep.subr.mxu0 0.0
      %1070 = vmatpush1.msra.mxu0 0.0
      %1071 = vmatprep.subr.mxu0 0.0
      %1072 = vmatpush1.msra.mxu0 0.0
      %1073 = vmatprep.subr.mxu0 0.0
      %1074 = vmatpush1.msra.mxu0 0.0
      %1075 = vmatprep.subr.mxu0 0.0
      %1076 = vmatpush1.msra.mxu0 0.0
      %1077 = vmatprep.subr.mxu0 0.0
      %1078 = vmatpush1.msra.mxu0 0.0
      %1079 = vmatprep.subr.mxu0 0.0
      %1080 = vmatpush1.msra.mxu0 0.0
      %1081 = vmatprep.subr.mxu0 0.0
      %1082 = vmatpush1.msra.mxu0 0.0
      %1083 = vmatprep.subr.mxu0 0.0
      %1084 = vmatpush1.msra.mxu0 0.0
      %1085 = vmatprep.subr.mxu0 0.0
      %1086 = vmatpush1.msra.mxu0 0.0
      %1087 = vmatprep.subr.mxu0 0.0
      %1088 = vmatpush1.msra.mxu0 0.0
      %1089 = vmatprep.subr.mxu0 0.0
      %1090 = vmatpush1.msra.mxu0 0.0
      %1091 = vmatprep.subr.mxu0 0.0
      %1092 = vmatpush1.msra.mxu0 0.0
      %1093 = vmatprep.mubr.f32.mxu0 0.0
      %1094 = vmatmul.mubr.f32.gmra.mrb[0].mxu0 %v862
      %v1095 = vpop.f32.mrb[0].mxu0
      %v1096 = vadd.f32 %v1027, %v1095
      %v1097 = vpop.f32.mrb[0].mxu0
      %1098 = vmatprep.mubr.f32.mxu0 0.0
      %1099 = vmatmul.mubr.f32.gmra.mrb[0].mxu0 %v865
      %v1100 = vpop.f32.mrb[0].mxu0
      %v1101 = vadd.f32 %v1027, %v1100
      %v1102 = vpop.f32.mrb[0].mxu0
      %1103 = vdwg.mxu0
      %vm1104 = vcmask 130048
      %v1106 = vsel %vm1104, %v934, 0
      %v1109 = vsel %vm1104, %v939, 0
      %v1112 = vsel %vm1104, %v1015, 0
      %v1115 = vsel %vm1104, %v1020, 0
      %1117 = vmatprep.subr.mxu0 0.0
      %1118 = vmatpush1.xpose.msra.mxu0 %v1112
      %1119 = vmatprep.subr.mxu0 0.0
      %1120 = vmatpush1.xpose.msra.mxu0 %v1115
      %1121 = vmatprep.subr.mxu0 0.0
      %1122 = vmatpush1.xpose.msra.mxu0 0.0
      %1123 = vmatprep.subr.mxu0 0.0
      %1124 = vmatpush1.xpose.msra.mxu0 0.0
      %1125 = vmatprep.subr.mxu0 0.0
      %1126 = vmatpush1.xpose.msra.mxu0 0.0
      %1127 = vmatprep.subr.mxu0 0.0
      %1128 = vmatpush1.xpose.msra.mxu0 0.0
      %1129 = vmatprep.subr.mxu0 0.0
      %1130 = vmatpush1.xpose.msra.mxu0 0.0
      %1131 = vmatprep.subr.mxu0 0.0
      %1132 = vmatpush1.xpose.msra.mxu0 0.0
      %1133 = vmatprep.subr.mxu0 0.0
      %1134 = vmatpush1.xpose.msra.mxu0 0.0
      %1135 = vmatprep.subr.mxu0 0.0
      %1136 = vmatpush1.xpose.msra.mxu0 0.0
      %1137 = vmatprep.subr.mxu0 0.0
      %1138 = vmatpush1.xpose.msra.mxu0 0.0
      %1139 = vmatprep.subr.mxu0 0.0
      %1140 = vmatpush1.xpose.msra.mxu0 0.0
      %1141 = vmatprep.subr.mxu0 0.0
      %1142 = vmatpush1.xpose.msra.mxu0 0.0
      %1143 = vmatprep.subr.mxu0 0.0
      %1144 = vmatpush1.xpose.msra.mxu0 0.0
      %1145 = vmatprep.subr.mxu0 0.0
      %1146 = vmatpush1.xpose.msra.mxu0 0.0
      %1147 = vmatprep.subr.mxu0 0.0
      %1148 = vmatpush1.xpose.msra.mxu0 0.0
      %1149 = vmatprep.subr.mxu0 0.0
      %1150 = vmatpush1.xpose.msra.mxu0 0.0
      %1151 = vmatprep.subr.mxu0 0.0
      %1152 = vmatpush1.xpose.msra.mxu0 0.0
      %1153 = vmatprep.subr.mxu0 0.0
      %1154 = vmatpush1.xpose.msra.mxu0 0.0
      %1155 = vmatprep.subr.mxu0 0.0
      %1156 = vmatpush1.xpose.msra.mxu0 0.0
      %1157 = vmatprep.subr.mxu0 0.0
      %1158 = vmatpush1.xpose.msra.mxu0 0.0
      %1159 = vmatprep.subr.mxu0 0.0
      %1160 = vmatpush1.xpose.msra.mxu0 0.0
      %1161 = vmatprep.subr.mxu0 0.0
      %1162 = vmatpush1.xpose.msra.mxu0 0.0
      %1163 = vmatprep.subr.mxu0 0.0
      %1164 = vmatpush1.xpose.msra.mxu0 0.0
      %1165 = vmatprep.subr.mxu0 0.0
      %1166 = vmatpush1.xpose.msra.mxu0 0.0
      %1167 = vmatprep.subr.mxu0 0.0
      %1168 = vmatpush1.xpose.msra.mxu0 0.0
      %1169 = vmatprep.subr.mxu0 0.0
      %1170 = vmatpush1.xpose.msra.mxu0 0.0
      %1171 = vmatprep.subr.mxu0 0.0
      %1172 = vmatpush1.xpose.msra.mxu0 0.0
      %1173 = vmatprep.subr.mxu0 0.0
      %1174 = vmatpush1.xpose.msra.mxu0 0.0
      %1175 = vmatprep.subr.mxu0 0.0
      %1176 = vmatpush1.xpose.msra.mxu0 0.0
      %1177 = vmatprep.subr.mxu0 0.0
      %1178 = vmatpush1.xpose.msra.mxu0 0.0
      %1179 = vmatprep.subr.mxu0 0.0
      %1180 = vmatpush1.xpose.msra.mxu0 0.0
      %1181 = vmatprep.mubr.f32.mxu0 0.0
      %1182 = vmatmul.mubr.f32.gmra.mrb[0].mxu0 %v1106
      %v1183 = vpop.f32.mrb[0].mxu0
      %v1184 = vadd.f32 %v686, %v1183
      %v1185 = vpop.f32.mrb[0].mxu0
      %1186 = vmatprep.mubr.f32.mxu0 0.0
      %1187 = vmatmul.mubr.f32.gmra.mrb[0].mxu0 %v1109
      %v1188 = vpop.f32.mrb[0].mxu0
      %v1189 = vadd.f32 %v687, %v1188
      %v1190 = vpop.f32.mrb[0].mxu0
      %1191 = vdwg.mxu0
      %vm1192 = vcmask 80896
      %v1193 = vsel %vm1192, %v1184, -inf
      %1194 = vmax.xlane.f32.xlu0 %v1193
      %v1195 = vpop.xlane.xlu0 %1194
      %vm1196 = vcmask 74752
      %v1197 = vsel %vm1196, %v1189, -inf
      %1198 = vmax.xlane.f32.xlu0 %v1197
      %v1199 = vpop.xlane.xlu0 %1198
      %v1200 = vsub.f32 %v1184, %v1195
      %v1201 = vsub.f32 %v1189, %v1199
      %v1202 = vmul.f32 %v1200, 1.442695
      %v1203 = vpow.pop %v1202
      %v1204 = vmul.f32 %v1201, 1.442695
      %v1205 = vpow.pop %v1204
      %v1206 = vsel %vm1192, %v1203, 0.0
      %1207 = vadd.xlane.f32.xlu0 %v1206
      %v1208 = vpop.xlane.xlu0 %1207
      %v1209 = vsel %vm1196, %v1205, 0.0
      %1210 = vadd.xlane.f32.xlu0 %v1209
      %v1211 = vpop.xlane.xlu0 %1210
      %v1212 = vrcp.pop %v1208
      %v1213 = vrcp.pop %v1211
      %v1214 = vmul.f32 %v1203, %v1212
      %v1215 = vmul.f32 %v1205, %v1213
      %v1217 = vsel %vm1192, %v1214, 0
      %v1220 = vsel %vm1192, %v1215, 0
      %vm1222 = vcmask 1041408
      %v1224 = vsel %vm1222, %v1101, 0
      %1226 = vmatprep.subr.mxu0 0.0
      %1227 = vmatpush1.msra.mxu0 %v1096
      %1228 = vmatprep.subr.mxu0 0.0
      %1229 = vmatpush1.msra.mxu0 %v1224
      %1230 = vmatprep.subr.mxu0 0.0
      %1231 = vmatpush1.msra.mxu0 0.0
      %1232 = vmatprep.subr.mxu0 0.0
      %1233 = vmatpush1.msra.mxu0 0.0
      %1234 = vmatprep.subr.mxu0 0.0
      %1235 = vmatpush1.msra.mxu0 0.0
      %1236 = vmatprep.subr.mxu0 0.0
      %1237 = vmatpush1.msra.mxu0 0.0
      %1238 = vmatprep.subr.mxu0 0.0
      %1239 = vmatpush1.msra.mxu0 0.0
      %1240 = vmatprep.subr.mxu0 0.0
      %1241 = vmatpush1.msra.mxu0 0.0
      %1242 = vmatprep.subr.mxu0 0.0
      %1243 = vmatpush1.msra.mxu0 0.0
      %1244 = vmatprep.subr.mxu0 0.0
      %1245 = vmatpush1.msra.mxu0 0.0
      %1246 = vmatprep.subr.mxu0 0.0
      %1247 = vmatpush1.msra.mxu0 0.0
      %1248 = vmatprep.subr.mxu0 0.0
      %1249 = vmatpush1.msra.mxu0 0.0
      %1250 = vmatprep.subr.mxu0 0.0
      %1251 = vmatpush1.msra.mxu0 0.0
      %1252 = vmatprep.subr.mxu0 0.0
      %1253 = vmatpush1.msra.mxu0 0.0
      %1254 = vmatprep.subr.mxu0 0.0
      %1255 = vmatpush1.msra.mxu0 0.0
      %1256 = vmatprep.subr.mxu0 0.0
      %1257 = vmatpush1.msra.mxu0 0.0
      %1258 = vmatprep.subr.mxu0 0.0
      %1259 = vmatpush1.msra.mxu0 0.0
      %1260 = vmatprep.subr.mxu0 0.0
      %1261 = vmatpush1.msra.mxu0 0.0
      %1262 = vmatprep.subr.mxu0 0.0
      %1263 = vmatpush1.msra.mxu0 0.0
      %1264 = vmatprep.subr.mxu0 0.0
      %1265 = vmatpush1.msra.mxu0 0.0
      %1266 = vmatprep.subr.mxu0 0.0
      %1267 = vmatpush1.msra.mxu0 0.0
      %1268 = vmatprep.subr.mxu0 0.0
      %1269 = vmatpush1.msra.mxu0 0.0
      %1270 = vmatprep.subr.mxu0 0.0
      %1271 = vmatpush1.msra.mxu0 0.0
      %1272 = vmatprep.subr.mxu0 0.0
      %1273 = vmatpush1.msra.mxu0 0.0
      %1274 = vmatprep.subr.mxu0 0.0
      %1275 = vmatpush1.msra.mxu0 0.0
      %1276 = vmatprep.subr.mxu0 0.0
      %1277 = vmatpush1.msra.mxu0 0.0
      %1278 = vmatprep.subr.mxu0 0.0
      %1279 = vmatpush1.msra.mxu0 0.0
      %1280 = vmatprep.subr.mxu0 0.0
      %1281 = vmatpush1.msra.mxu0 0.0
      %1282 = vmatprep.subr.mxu0 0.0
      %1283 = vmatpush1.msra.mxu0 0.0
      %1284 = vmatprep.subr.mxu0 0.0
      %1285 = vmatpush1.msra.mxu0 0.0
      %1286 = vmatprep.subr.mxu0 0.0
      %1287 = vmatpush1.msra.mxu0 0.0
      %1288 = vmatprep.subr.mxu0 0.0
      %1289 = vmatpush1.msra.mxu0 0.0
      %1290 = vmatprep.mubr.f32.mxu0 0.0
      %1291 = vmatmul.mubr.f32.gmra.mrb[0].mxu0 %v1217
      %v1292 = vpop.f32.mrb[0].mxu0
      %v1293 = vadd.f32 0.0, %v1292
      %v1294 = vpop.f32.mrb[0].mxu0
      %1295 = vmatprep.mubr.f32.mxu0 0.0
      %1296 = vmatmul.mubr.f32.gmra.mrb[0].mxu0 %v1220
      %v1297 = vpop.f32.mrb[0].mxu0
      %v1298 = vadd.f32 0.0, %v1297
      %v1299 = vpop.f32.mrb[0].mxu0
      %1300 = vdwg.mxu0
      %v1302 = vlaneseq
      %v1303 = vshrl.u32 %v1302, 7
      %v1304 = vsub.s32 0, %v1303
      %v1305 = vrot.slane %v709, %v1304
      %1307 = vmatprep.subr.mxu0 0.0
      %1308 = vmatpush1.msra.mxu0 %v696
      %1309 = vmatprep.subr.mxu0 0.0
      %1310 = vmatpush1.msra.mxu0 %v697
      %1311 = vmatprep.subr.mxu0 0.0
      %1312 = vmatpush1.msra.mxu0 %v698
      %1313 = vmatprep.subr.mxu0 0.0
      %1314 = vmatpush1.msra.mxu0 %v699
      %1315 = vmatprep.subr.mxu0 0.0
      %1316 = vmatpush1.msra.mxu0 0.0
      %1317 = vmatprep.subr.mxu0 0.0
      %1318 = vmatpush1.msra.mxu0 0.0
      %1319 = vmatprep.subr.mxu0 0.0
      %1320 = vmatpush1.msra.mxu0 0.0
      %1321 = vmatprep.subr.mxu0 0.0
      %1322 = vmatpush1.msra.mxu0 0.0
      %1323 = vmatprep.subr.mxu0 0.0
      %1324 = vmatpush1.msra.mxu0 0.0
      %1325 = vmatprep.subr.mxu0 0.0
      %1326 = vmatpush1.msra.mxu0 0.0
      %1327 = vmatprep.subr.mxu0 0.0
      %1328 = vmatpush1.msra.mxu0 0.0
      %1329 = vmatprep.subr.mxu0 0.0
      %1330 = vmatpush1.msra.mxu0 0.0
      %1331 = vmatprep.subr.mxu0 0.0
      %1332 = vmatpush1.msra.mxu0 0.0
      %1333 = vmatprep.subr.mxu0 0.0
      %1334 = vmatpush1.msra.mxu0 0.0
      %1335 = vmatprep.subr.mxu0 0.0
      %1336 = vmatpush1.msra.mxu0 0.0
      %1337 = vmatprep.subr.mxu0 0.0
      %1338 = vmatpush1.msra.mxu0 0.0
      %1339 = vmatprep.subr.mxu0 0.0
      %1340 = vmatpush1.msra.mxu0 0.0
      %1341 = vmatprep.subr.mxu0 0.0
      %1342 = vmatpush1.msra.mxu0 0.0
      %1343 = vmatprep.subr.mxu0 0.0
      %1344 = vmatpush1.msra.mxu0 0.0
      %1345 = vmatprep.subr.mxu0 0.0
      %1346 = vmatpush1.msra.mxu0 0.0
      %1347 = vmatprep.subr.mxu0 0.0
      %1348 = vmatpush1.msra.mxu0 0.0
      %1349 = vmatprep.subr.mxu0 0.0
      %1350 = vmatpush1.msra.mxu0 0.0
      %1351 = vmatprep.subr.mxu0 0.0
      %1352 = vmatpush1.msra.mxu0 0.0
      %1353 = vmatprep.subr.mxu0 0.0
      %1354 = vmatpush1.msra.mxu0 0.0
      %1355 = vmatprep.subr.mxu0 0.0
      %1356 = vmatpush1.msra.mxu0 0.0
      %1357 = vmatprep.subr.mxu0 0.0
      %1358 = vmatpush1.msra.mxu0 0.0
      %1359 = vmatprep.subr.mxu0 0.0
      %1360 = vmatpush1.msra.mxu0 0.0
      %1361 = vmatprep.subr.mxu0 0.0
      %1362 = vmatpush1.msra.mxu0 0.0
      %1363 = vmatprep.subr.mxu0 0.0
      %1364 = vmatpush1.msra.mxu0 0.0
      %1365 = vmatprep.subr.mxu0 0.0
      %1366 = vmatpush1.msra.mxu0 0.0
      %1367 = vmatprep.subr.mxu0 0.0
      %1368 = vmatpush1.msra.mxu0 0.0
      %1369 = vmatprep.subr.mxu0 0.0
      %1370 = vmatpush1.msra.mxu0 0.0
      %1371 = vmatprep.mubr.f32.mxu0 0.0
      %1372 = vmatmul.mubr.f32.gmra.mrb[0].mxu0 %v862
      %v1373 = vpop.f32.mrb[0].mxu0
      %v1374 = vadd.f32 %v1305, %v1373
      %v1375 = vpop.f32.mrb[0].mxu0
      %1376 = vmatprep.mubr.f32.mxu0 0.0
      %1377 = vmatmul.mubr.f32.gmra.mrb[0].mxu0 %v865
      %v1378 = vpop.f32.mrb[0].mxu0
      %v1379 = vadd.f32 %v1305, %v1378
      %v1380 = vpop.f32.mrb[0].mxu0
      %1381 = vdwg.mxu0
      %v1383 = vlaneseq
      %v1384 = vshrl.u32 %v1383, 7
      %v1385 = vsub.s32 0, %v1384
      %v1386 = vrot.slane %v729, %v1385
      %1388 = vmatprep.subr.mxu0 0.0
      %1389 = vmatpush1.msra.mxu0 %v716
      %1390 = vmatprep.subr.mxu0 0.0
      %1391 = vmatpush1.msra.mxu0 %v717
      %1392 = vmatprep.subr.mxu0 0.0
      %1393 = vmatpush1.msra.mxu0 %v718
      %1394 = vmatprep.subr.mxu0 0.0
      %1395 = vmatpush1.msra.mxu0 %v719
      %1396 = vmatprep.subr.mxu0 0.0
      %1397 = vmatpush1.msra.mxu0 0.0
      %1398 = vmatprep.subr.mxu0 0.0
      %1399 = vmatpush1.msra.mxu0 0.0
      %1400 = vmatprep.subr.mxu0 0.0
      %1401 = vmatpush1.msra.mxu0 0.0
      %1402 = vmatprep.subr.mxu0 0.0
      %1403 = vmatpush1.msra.mxu0 0.0
      %1404 = vmatprep.subr.mxu0 0.0
      %1405 = vmatpush1.msra.mxu0 0.0
      %1406 = vmatprep.subr.mxu0 0.0
      %1407 = vmatpush1.msra.mxu0 0.0
      %1408 = vmatprep.subr.mxu0 0.0
      %1409 = vmatpush1.msra.mxu0 0.0
      %1410 = vmatprep.subr.mxu0 0.0
      %1411 = vmatpush1.msra.mxu0 0.0
      %1412 = vmatprep.subr.mxu0 0.0
      %1413 = vmatpush1.msra.mxu0 0.0
      %1414 = vmatprep.subr.mxu0 0.0
      %1415 = vmatpush1.msra.mxu0 0.0
      %1416 = vmatprep.subr.mxu0 0.0
      %1417 = vmatpush1.msra.mxu0 0.0
      %1418 = vmatprep.subr.mxu0 0.0
      %1419 = vmatpush1.msra.mxu0 0.0
      %1420 = vmatprep.subr.mxu0 0.0
      %1421 = vmatpush1.msra.mxu0 0.0
      %1422 = vmatprep.subr.mxu0 0.0
      %1423 = vmatpush1.msra.mxu0 0.0
      %1424 = vmatprep.subr.mxu0 0.0
      %1425 = vmatpush1.msra.mxu0 0.0
      %1426 = vmatprep.subr.mxu0 0.0
      %1427 = vmatpush1.msra.mxu0 0.0
      %1428 = vmatprep.subr.mxu0 0.0
      %1429 = vmatpush1.msra.mxu0 0.0
      %1430 = vmatprep.subr.mxu0 0.0
      %1431 = vmatpush1.msra.mxu0 0.0
      %1432 = vmatprep.subr.mxu0 0.0
      %1433 = vmatpush1.msra.mxu0 0.0
      %1434 = vmatprep.subr.mxu0 0.0
      %1435 = vmatpush1.msra.mxu0 0.0
      %1436 = vmatprep.subr.mxu0 0.0
      %1437 = vmatpush1.msra.mxu0 0.0
      %1438 = vmatprep.subr.mxu0 0.0
      %1439 = vmatpush1.msra.mxu0 0.0
      %1440 = vmatprep.subr.mxu0 0.0
      %1441 = vmatpush1.msra.mxu0 0.0
      %1442 = vmatprep.subr.mxu0 0.0
      %1443 = vmatpush1.msra.mxu0 0.0
      %1444 = vmatprep.subr.mxu0 0.0
      %1445 = vmatpush1.msra.mxu0 0.0
      %1446 = vmatprep.subr.mxu0 0.0
      %1447 = vmatpush1.msra.mxu0 0.0
      %1448 = vmatprep.subr.mxu0 0.0
      %1449 = vmatpush1.msra.mxu0 0.0
      %1450 = vmatprep.subr.mxu0 0.0
      %1451 = vmatpush1.msra.mxu0 0.0
      %1452 = vmatprep.mubr.f32.mxu0 0.0
      %1453 = vmatmul.mubr.f32.gmra.mrb[0].mxu0 %v862
      %v1454 = vpop.f32.mrb[0].mxu0
      %v1455 = vadd.f32 %v1386, %v1454
      %v1456 = vpop.f32.mrb[0].mxu0
      %1457 = vmatprep.mubr.f32.mxu0 0.0
      %1458 = vmatmul.mubr.f32.gmra.mrb[0].mxu0 %v865
      %v1459 = vpop.f32.mrb[0].mxu0
      %v1460 = vadd.f32 %v1386, %v1459
      %v1461 = vpop.f32.mrb[0].mxu0
      %1462 = vdwg.mxu0
      %v1464 = vlaneseq
      %v1465 = vshrl.u32 %v1464, 7
      %v1466 = vsub.s32 0, %v1465
      %v1467 = vrot.slane %v749, %v1466
      %1469 = vmatprep.subr.mxu0 0.0
      %1470 = vmatpush1.msra.mxu0 %v736
      %1471 = vmatprep.subr.mxu0 0.0
      %1472 = vmatpush1.msra.mxu0 %v737
      %1473 = vmatprep.subr.mxu0 0.0
      %1474 = vmatpush1.msra.mxu0 %v738
      %1475 = vmatprep.subr.mxu0 0.0
      %1476 = vmatpush1.msra.mxu0 %v739
      %1477 = vmatprep.subr.mxu0 0.0
      %1478 = vmatpush1.msra.mxu0 0.0
      %1479 = vmatprep.subr.mxu0 0.0
      %1480 = vmatpush1.msra.mxu0 0.0
      %1481 = vmatprep.subr.mxu0 0.0
      %1482 = vmatpush1.msra.mxu0 0.0
      %1483 = vmatprep.subr.mxu0 0.0
      %1484 = vmatpush1.msra.mxu0 0.0
      %1485 = vmatprep.subr.mxu0 0.0
      %1486 = vmatpush1.msra.mxu0 0.0
      %1487 = vmatprep.subr.mxu0 0.0
      %1488 = vmatpush1.msra.mxu0 0.0
      %1489 = vmatprep.subr.mxu0 0.0
      %1490 = vmatpush1.msra.mxu0 0.0
      %1491 = vmatprep.subr.mxu0 0.0
      %1492 = vmatpush1.msra.mxu0 0.0
      %1493 = vmatprep.subr.mxu0 0.0
      %1494 = vmatpush1.msra.mxu0 0.0
      %1495 = vmatprep.subr.mxu0 0.0
      %1496 = vmatpush1.msra.mxu0 0.0
      %1497 = vmatprep.subr.mxu0 0.0
      %1498 = vmatpush1.msra.mxu0 0.0
      %1499 = vmatprep.subr.mxu0 0.0
      %1500 = vmatpush1.msra.mxu0 0.0
      %1501 = vmatprep.subr.mxu0 0.0
      %1502 = vmatpush1.msra.mxu0 0.0
      %1503 = vmatprep.subr.mxu0 0.0
      %1504 = vmatpush1.msra.mxu0 0.0
      %1505 = vmatprep.subr.mxu0 0.0
      %1506 = vmatpush1.msra.mxu0 0.0
      %1507 = vmatprep.subr.mxu0 0.0
      %1508 = vmatpush1.msra.mxu0 0.0
      %1509 = vmatprep.subr.mxu0 0.0
      %1510 = vmatpush1.msra.mxu0 0.0
      %1511 = vmatprep.subr.mxu0 0.0
      %1512 = vmatpush1.msra.mxu0 0.0
      %1513 = vmatprep.subr.mxu0 0.0
      %1514 = vmatpush1.msra.mxu0 0.0
      %1515 = vmatprep.subr.mxu0 0.0
      %1516 = vmatpush1.msra.mxu0 0.0
      %1517 = vmatprep.subr.mxu0 0.0
      %1518 = vmatpush1.msra.mxu0 0.0
      %1519 = vmatprep.subr.mxu0 0.0
      %1520 = vmatpush1.msra.mxu0 0.0
      %1521 = vmatprep.subr.mxu0 0.0
      %1522 = vmatpush1.msra.mxu0 0.0
      %1523 = vmatprep.subr.mxu0 0.0
      %1524 = vmatpush1.msra.mxu0 0.0
      %1525 = vmatprep.subr.mxu0 0.0
      %1526 = vmatpush1.msra.mxu0 0.0
      %1527 = vmatprep.subr.mxu0 0.0
      %1528 = vmatpush1.msra.mxu0 0.0
      %1529 = vmatprep.subr.mxu0 0.0
      %1530 = vmatpush1.msra.mxu0 0.0
      %1531 = vmatprep.subr.mxu0 0.0
      %1532 = vmatpush1.msra.mxu0 0.0
      %1533 = vmatprep.mubr.f32.mxu0 0.0
      %1534 = vmatmul.mubr.f32.gmra.mrb[0].mxu0 %v862
      %v1535 = vpop.f32.mrb[0].mxu0
      %v1536 = vadd.f32 %v1467, %v1535
      %v1537 = vpop.f32.mrb[0].mxu0
      %1538 = vmatprep.mubr.f32.mxu0 0.0
      %1539 = vmatmul.mubr.f32.gmra.mrb[0].mxu0 %v865
      %v1540 = vpop.f32.mrb[0].mxu0
      %v1541 = vadd.f32 %v1467, %v1540
      %v1542 = vpop.f32.mrb[0].mxu0
      %1543 = vdwg.mxu0
      %v1545 = vsel %vm1104, %v1374, 0
      %v1548 = vsel %vm1104, %v1379, 0
      %v1551 = vsel %vm1104, %v1455, 0
      %v1554 = vsel %vm1104, %v1460, 0
      %1556 = vmatprep.subr.mxu0 0.0
      %1557 = vmatpush1.xpose.msra.mxu0 %v1551
      %1558 = vmatprep.subr.mxu0 0.0
      %1559 = vmatpush1.xpose.msra.mxu0 %v1554
      %1560 = vmatprep.subr.mxu0 0.0
      %1561 = vmatpush1.xpose.msra.mxu0 0.0
      %1562 = vmatprep.subr.mxu0 0.0
      %1563 = vmatpush1.xpose.msra.mxu0 0.0
      %1564 = vmatprep.subr.mxu0 0.0
      %1565 = vmatpush1.xpose.msra.mxu0 0.0
      %1566 = vmatprep.subr.mxu0 0.0
      %1567 = vmatpush1.xpose.msra.mxu0 0.0
      %1568 = vmatprep.subr.mxu0 0.0
      %1569 = vmatpush1.xpose.msra.mxu0 0.0
      %1570 = vmatprep.subr.mxu0 0.0
      %1571 = vmatpush1.xpose.msra.mxu0 0.0
      %1572 = vmatprep.subr.mxu0 0.0
      %1573 = vmatpush1.xpose.msra.mxu0 0.0
      %1574 = vmatprep.subr.mxu0 0.0
      %1575 = vmatpush1.xpose.msra.mxu0 0.0
      %1576 = vmatprep.subr.mxu0 0.0
      %1577 = vmatpush1.xpose.msra.mxu0 0.0
      %1578 = vmatprep.subr.mxu0 0.0
      %1579 = vmatpush1.xpose.msra.mxu0 0.0
      %1580 = vmatprep.subr.mxu0 0.0
      %1581 = vmatpush1.xpose.msra.mxu0 0.0
      %1582 = vmatprep.subr.mxu0 0.0
      %1583 = vmatpush1.xpose.msra.mxu0 0.0
      %1584 = vmatprep.subr.mxu0 0.0
      %1585 = vmatpush1.xpose.msra.mxu0 0.0
      %1586 = vmatprep.subr.mxu0 0.0
      %1587 = vmatpush1.xpose.msra.mxu0 0.0
      %1588 = vmatprep.subr.mxu0 0.0
      %1589 = vmatpush1.xpose.msra.mxu0 0.0
      %1590 = vmatprep.subr.mxu0 0.0
      %1591 = vmatpush1.xpose.msra.mxu0 0.0
      %1592 = vmatprep.subr.mxu0 0.0
      %1593 = vmatpush1.xpose.msra.mxu0 0.0
      %1594 = vmatprep.subr.mxu0 0.0
      %1595 = vmatpush1.xpose.msra.mxu0 0.0
      %1596 = vmatprep.subr.mxu0 0.0
      %1597 = vmatpush1.xpose.msra.mxu0 0.0
      %1598 = vmatprep.subr.mxu0 0.0
      %1599 = vmatpush1.xpose.msra.mxu0 0.0
      %1600 = vmatprep.subr.mxu0 0.0
      %1601 = vmatpush1.xpose.msra.mxu0 0.0
      %1602 = vmatprep.subr.mxu0 0.0
      %1603 = vmatpush1.xpose.msra.mxu0 0.0
      %1604 = vmatprep.subr.mxu0 0.0
      %1605 = vmatpush1.xpose.msra.mxu0 0.0
      %1606 = vmatprep.subr.mxu0 0.0
      %1607 = vmatpush1.xpose.msra.mxu0 0.0
      %1608 = vmatprep.subr.mxu0 0.0
      %1609 = vmatpush1.xpose.msra.mxu0 0.0
      %1610 = vmatprep.subr.mxu0 0.0
      %1611 = vmatpush1.xpose.msra.mxu0 0.0
      %1612 = vmatprep.subr.mxu0 0.0
      %1613 = vmatpush1.xpose.msra.mxu0 0.0
      %1614 = vmatprep.subr.mxu0 0.0
      %1615 = vmatpush1.xpose.msra.mxu0 0.0
      %1616 = vmatprep.subr.mxu0 0.0
      %1617 = vmatpush1.xpose.msra.mxu0 0.0
      %1618 = vmatprep.subr.mxu0 0.0
      %1619 = vmatpush1.xpose.msra.mxu0 0.0
      %1620 = vmatprep.mubr.f32.mxu0 0.0
      %1621 = vmatmul.mubr.f32.gmra.mrb[0].mxu0 %v1545
      %v1622 = vpop.f32.mrb[0].mxu0
      %v1623 = vadd.f32 %v686, %v1622
      %v1624 = vpop.f32.mrb[0].mxu0
      %1625 = vmatprep.mubr.f32.mxu0 0.0
      %1626 = vmatmul.mubr.f32.gmra.mrb[0].mxu0 %v1548
      %v1627 = vpop.f32.mrb[0].mxu0
      %v1628 = vadd.f32 %v687, %v1627
      %v1629 = vpop.f32.mrb[0].mxu0
      %1630 = vdwg.mxu0
      %v1631 = vsel %vm1192, %v1623, -inf
      %1632 = vmax.xlane.f32.xlu0 %v1631
      %v1633 = vpop.xlane.xlu0 %1632
      %v1634 = vsel %vm1196, %v1628, -inf
      %1635 = vmax.xlane.f32.xlu0 %v1634
      %v1636 = vpop.xlane.xlu0 %1635
      %v1637 = vsub.f32 %v1623, %v1633
      %v1638 = vsub.f32 %v1628, %v1636
      %v1639 = vmul.f32 %v1637, 1.442695
      %v1640 = vpow.pop %v1639
      %v1641 = vmul.f32 %v1638, 1.442695
      %v1642 = vpow.pop %v1641
      %v1643 = vsel %vm1192, %v1640, 0.0
      %1644 = vadd.xlane.f32.xlu0 %v1643
      %v1645 = vpop.xlane.xlu0 %1644
      %v1646 = vsel %vm1196, %v1642, 0.0
      %1647 = vadd.xlane.f32.xlu0 %v1646
      %v1648 = vpop.xlane.xlu0 %1647
      %v1649 = vrcp.pop %v1645
      %v1650 = vrcp.pop %v1648
      %v1651 = vmul.f32 %v1640, %v1649
      %v1652 = vmul.f32 %v1642, %v1650
      %v1654 = vsel %vm1192, %v1651, 0
      %v1657 = vsel %vm1192, %v1652, 0
      %v1660 = vsel %vm1222, %v1541, 0
      %1662 = vmatprep.subr.mxu0 0.0
      %1663 = vmatpush1.msra.mxu0 %v1536
      %1664 = vmatprep.subr.mxu0 0.0
      %1665 = vmatpush1.msra.mxu0 %v1660
      %1666 = vmatprep.subr.mxu0 0.0
      %1667 = vmatpush1.msra.mxu0 0.0
      %1668 = vmatprep.subr.mxu0 0.0
      %1669 = vmatpush1.msra.mxu0 0.0
      %1670 = vmatprep.subr.mxu0 0.0
      %1671 = vmatpush1.msra.mxu0 0.0
      %1672 = vmatprep.subr.mxu0 0.0
      %1673 = vmatpush1.msra.mxu0 0.0
      %1674 = vmatprep.subr.mxu0 0.0
      %1675 = vmatpush1.msra.mxu0 0.0
      %1676 = vmatprep.subr.mxu0 0.0
      %1677 = vmatpush1.msra.mxu0 0.0
      %1678 = vmatprep.subr.mxu0 0.0
      %1679 = vmatpush1.msra.mxu0 0.0
      %1680 = vmatprep.subr.mxu0 0.0
      %1681 = vmatpush1.msra.mxu0 0.0
      %1682 = vmatprep.subr.mxu0 0.0
      %1683 = vmatpush1.msra.mxu0 0.0
      %1684 = vmatprep.subr.mxu0 0.0
      %1685 = vmatpush1.msra.mxu0 0.0
      %1686 = vmatprep.subr.mxu0 0.0
      %1687 = vmatpush1.msra.mxu0 0.0
      %1688 = vmatprep.subr.mxu0 0.0
      %1689 = vmatpush1.msra.mxu0 0.0
      %1690 = vmatprep.subr.mxu0 0.0
      %1691 = vmatpush1.msra.mxu0 0.0
      %1692 = vmatprep.subr.mxu0 0.0
      %1693 = vmatpush1.msra.mxu0 0.0
      %1694 = vmatprep.subr.mxu0 0.0
      %1695 = vmatpush1.msra.mxu0 0.0
      %1696 = vmatprep.subr.mxu0 0.0
      %1697 = vmatpush1.msra.mxu0 0.0
      %1698 = vmatprep.subr.mxu0 0.0
      %1699 = vmatpush1.msra.mxu0 0.0
      %1700 = vmatprep.subr.mxu0 0.0
      %1701 = vmatpush1.msra.mxu0 0.0
      %1702 = vmatprep.subr.mxu0 0.0
      %1703 = vmatpush1.msra.mxu0 0.0
      %1704 = vmatprep.subr.mxu0 0.0
      %1705 = vmatpush1.msra.mxu0 0.0
      %1706 = vmatprep.subr.mxu0 0.0
      %1707 = vmatpush1.msra.mxu0 0.0
      %1708 = vmatprep.subr.mxu0 0.0
      %1709 = vmatpush1.msra.mxu0 0.0
      %1710 = vmatprep.subr.mxu0 0.0
      %1711 = vmatpush1.msra.mxu0 0.0
      %1712 = vmatprep.subr.mxu0 0.0
      %1713 = vmatpush1.msra.mxu0 0.0
      %1714 = vmatprep.subr.mxu0 0.0
      %1715 = vmatpush1.msra.mxu0 0.0
      %1716 = vmatprep.subr.mxu0 0.0
      %1717 = vmatpush1.msra.mxu0 0.0
      %1718 = vmatprep.subr.mxu0 0.0
      %1719 = vmatpush1.msra.mxu0 0.0
      %1720 = vmatprep.subr.mxu0 0.0
      %1721 = vmatpush1.msra.mxu0 0.0
      %1722 = vmatprep.subr.mxu0 0.0
      %1723 = vmatpush1.msra.mxu0 0.0
      %1724 = vmatprep.subr.mxu0 0.0
      %1725 = vmatpush1.msra.mxu0 0.0
      %1726 = vmatprep.mubr.f32.mxu0 0.0
      %1727 = vmatmul.mubr.f32.gmra.mrb[0].mxu0 %v1654
      %v1728 = vpop.f32.mrb[0].mxu0
      %v1729 = vadd.f32 0.0, %v1728
      %v1730 = vpop.f32.mrb[0].mxu0
      %1731 = vmatprep.mubr.f32.mxu0 0.0
      %1732 = vmatmul.mubr.f32.gmra.mrb[0].mxu0 %v1657
      %v1733 = vpop.f32.mrb[0].mxu0
      %v1734 = vadd.f32 0.0, %v1733
      %v1735 = vpop.f32.mrb[0].mxu0
      %1736 = vdwg.mxu0
      %v1738 = vsel %vm1104, %v1729, 0
      %v1741 = vsel %vm1104, %v1734, 0
      %1743 = vmatprep.subr.mxu0 0.0
      %1744 = vmatpush1.msra.mxu0 %v754
      %1745 = vmatprep.subr.mxu0 0.0
      %1746 = vmatpush1.msra.mxu0 %v755
      %1747 = vmatprep.subr.mxu0 0.0
      %1748 = vmatpush1.msra.mxu0 0.0
      %1749 = vmatprep.subr.mxu0 0.0
      %1750 = vmatpush1.msra.mxu0 0.0
      %1751 = vmatprep.subr.mxu0 0.0
      %1752 = vmatpush1.msra.mxu0 0.0
      %1753 = vmatprep.subr.mxu0 0.0
      %1754 = vmatpush1.msra.mxu0 0.0
      %1755 = vmatprep.subr.mxu0 0.0
      %1756 = vmatpush1.msra.mxu0 0.0
      %1757 = vmatprep.subr.mxu0 0.0
      %1758 = vmatpush1.msra.mxu0 0.0
      %1759 = vmatprep.subr.mxu0 0.0
      %1760 = vmatpush1.msra.mxu0 0.0
      %1761 = vmatprep.subr.mxu0 0.0
      %1762 = vmatpush1.msra.mxu0 0.0
      %1763 = vmatprep.subr.mxu0 0.0
      %1764 = vmatpush1.msra.mxu0 0.0
      %1765 = vmatprep.subr.mxu0 0.0
      %1766 = vmatpush1.msra.mxu0 0.0
      %1767 = vmatprep.subr.mxu0 0.0
      %1768 = vmatpush1.msra.mxu0 0.0
      %1769 = vmatprep.subr.mxu0 0.0
      %1770 = vmatpush1.msra.mxu0 0.0
      %1771 = vmatprep.subr.mxu0 0.0
      %1772 = vmatpush1.msra.mxu0 0.0
      %1773 = vmatprep.subr.mxu0 0.0
      %1774 = vmatpush1.msra.mxu0 0.0
      %1775 = vmatprep.subr.mxu0 0.0
      %1776 = vmatpush1.msra.mxu0 0.0
      %1777 = vmatprep.subr.mxu0 0.0
      %1778 = vmatpush1.msra.mxu0 0.0
      %1779 = vmatprep.subr.mxu0 0.0
      %1780 = vmatpush1.msra.mxu0 0.0
      %1781 = vmatprep.subr.mxu0 0.0
      %1782 = vmatpush1.msra.mxu0 0.0
      %1783 = vmatprep.subr.mxu0 0.0
      %1784 = vmatpush1.msra.mxu0 0.0
      %1785 = vmatprep.subr.mxu0 0.0
      %1786 = vmatpush1.msra.mxu0 0.0
      %1787 = vmatprep.subr.mxu0 0.0
      %1788 = vmatpush1.msra.mxu0 0.0
      %1789 = vmatprep.subr.mxu0 0.0
      %1790 = vmatpush1.msra.mxu0 0.0
      %1791 = vmatprep.subr.mxu0 0.0
      %1792 = vmatpush1.msra.mxu0 0.0
      %1793 = vmatprep.subr.mxu0 0.0
      %1794 = vmatpush1.msra.mxu0 0.0
      %1795 = vmatprep.subr.mxu0 0.0
      %1796 = vmatpush1.msra.mxu0 0.0
      %1797 = vmatprep.subr.mxu0 0.0
      %1798 = vmatpush1.msra.mxu0 0.0
      %1799 = vmatprep.subr.mxu0 0.0
      %1800 = vmatpush1.msra.mxu0 0.0
      %1801 = vmatprep.subr.mxu0 0.0
      %1802 = vmatpush1.msra.mxu0 0.0
      %1803 = vmatprep.subr.mxu0 0.0
      %1804 = vmatpush1.msra.mxu0 0.0
      %1805 = vmatprep.subr.mxu0 0.0
      %1806 = vmatpush1.msra.mxu0 0.0
      %1807 = vmatprep.mubr.f32.mxu0 0.0
      %1808 = vmatmul.mubr.f32.gmra.mrb[0].mxu0 %v1738
      %v1809 = vpop.f32.mrb[0].mxu0
      %v1810 = vadd.f32 0.0, %v1809
      %v1811 = vpop.f32.mrb[0].mxu0
      %1812 = vmatprep.mubr.f32.mxu0 0.0
      %1813 = vmatmul.mubr.f32.gmra.mrb[0].mxu0 %v1741
      %v1814 = vpop.f32.mrb[0].mxu0
      %v1815 = vadd.f32 0.0, %v1814
      %v1816 = vpop.f32.mrb[0].mxu0
      %1817 = vdwg.mxu0
      %v1819 = vsel %vm1104, %v1293, 0
      %v1822 = vsel %vm1104, %v1298, 0
      %1824 = vmatprep.subr.mxu0 0.0
      %1825 = vmatpush1.msra.mxu0 %v752
      %1826 = vmatprep.subr.mxu0 0.0
      %1827 = vmatpush1.msra.mxu0 %v753
      %1828 = vmatprep.subr.mxu0 0.0
      %1829 = vmatpush1.msra.mxu0 0.0
      %1830 = vmatprep.subr.mxu0 0.0
      %1831 = vmatpush1.msra.mxu0 0.0
      %1832 = vmatprep.subr.mxu0 0.0
      %1833 = vmatpush1.msra.mxu0 0.0
      %1834 = vmatprep.subr.mxu0 0.0
      %1835 = vmatpush1.msra.mxu0 0.0
      %1836 = vmatprep.subr.mxu0 0.0
      %1837 = vmatpush1.msra.mxu0 0.0
      %1838 = vmatprep.subr.mxu0 0.0
      %1839 = vmatpush1.msra.mxu0 0.0
      %1840 = vmatprep.subr.mxu0 0.0
      %1841 = vmatpush1.msra.mxu0 0.0
      %1842 = vmatprep.subr.mxu0 0.0
      %1843 = vmatpush1.msra.mxu0 0.0
      %1844 = vmatprep.subr.mxu0 0.0
      %1845 = vmatpush1.msra.mxu0 0.0
      %1846 = vmatprep.subr.mxu0 0.0
      %1847 = vmatpush1.msra.mxu0 0.0
      %1848 = vmatprep.subr.mxu0 0.0
      %1849 = vmatpush1.msra.mxu0 0.0
      %1850 = vmatprep.subr.mxu0 0.0
      %1851 = vmatpush1.msra.mxu0 0.0
      %1852 = vmatprep.subr.mxu0 0.0
      %1853 = vmatpush1.msra.mxu0 0.0
      %1854 = vmatprep.subr.mxu0 0.0
      %1855 = vmatpush1.msra.mxu0 0.0
      %1856 = vmatprep.subr.mxu0 0.0
      %1857 = vmatpush1.msra.mxu0 0.0
      %1858 = vmatprep.subr.mxu0 0.0
      %1859 = vmatpush1.msra.mxu0 0.0
      %1860 = vmatprep.subr.mxu0 0.0
      %1861 = vmatpush1.msra.mxu0 0.0
      %1862 = vmatprep.subr.mxu0 0.0
      %1863 = vmatpush1.msra.mxu0 0.0
      %1864 = vmatprep.subr.mxu0 0.0
      %1865 = vmatpush1.msra.mxu0 0.0
      %1866 = vmatprep.subr.mxu0 0.0
      %1867 = vmatpush1.msra.mxu0 0.0
      %1868 = vmatprep.subr.mxu0 0.0
      %1869 = vmatpush1.msra.mxu0 0.0
      %1870 = vmatprep.subr.mxu0 0.0
      %1871 = vmatpush1.msra.mxu0 0.0
      %1872 = vmatprep.subr.mxu0 0.0
      %1873 = vmatpush1.msra.mxu0 0.0
      %1874 = vmatprep.subr.mxu0 0.0
      %1875 = vmatpush1.msra.mxu0 0.0
      %1876 = vmatprep.subr.mxu0 0.0
      %1877 = vmatpush1.msra.mxu0 0.0
      %1878 = vmatprep.subr.mxu0 0.0
      %1879 = vmatpush1.msra.mxu0 0.0
      %1880 = vmatprep.subr.mxu0 0.0
      %1881 = vmatpush1.msra.mxu0 0.0
      %1882 = vmatprep.subr.mxu0 0.0
      %1883 = vmatpush1.msra.mxu0 0.0
      %1884 = vmatprep.subr.mxu0 0.0
      %1885 = vmatpush1.msra.mxu0 0.0
      %1886 = vmatprep.subr.mxu0 0.0
      %1887 = vmatpush1.msra.mxu0 0.0
      %1888 = vmatprep.mubr.f32.mxu0 0.0
      %1889 = vmatmul.mubr.f32.gmra.mrb[0].mxu0 %v1819
      %v1890 = vpop.f32.mrb[0].mxu0
      %v1891 = vadd.f32 %v1810, %v1890
      %v1892 = vpop.f32.mrb[0].mxu0
      %1893 = vmatprep.mubr.f32.mxu0 0.0
      %1894 = vmatmul.mubr.f32.gmra.mrb[0].mxu0 %v1822
      %v1895 = vpop.f32.mrb[0].mxu0
      %v1896 = vadd.f32 %v1815, %v1895
      %v1897 = vpop.f32.mrb[0].mxu0
      %1898 = vdwg.mxu0
      %v1899 = vadd.f32 %v684, %v1891
      %v1900 = vadd.f32 %v685, %v1896
      %v1902 = vlaneseq
      %v1903 = vshrl.u32 %v1902, 7
      %v1904 = vsub.s32 0, %v1903
      %v1905 = vrot.slane %v760, %v1904
      %v1907 = vadd.f32 %v1899, %v1905
      %v1908 = vadd.f32 %v1900, %v1905
      %v1909 = vsel %vm810, %v1907, 0.0
      %1910 = vadd.xlane.f32.xlu0 %v1909
      %v1911 = vpop.xlane.xlu0 %1910
      %v1912 = vsel %vm814, %v1908, 0.0
      %1913 = vadd.xlane.f32.xlu0 %v1912
      %v1914 = vpop.xlane.xlu0 %1913
      %v1915 = vmul.f32 %v1911, %v818
      %v1916 = vmul.f32 %v1914, %v818
      %v1917 = vsub.f32 %v1907, %v1915
      %v1918 = vsub.f32 %v1908, %v1916
      %v1919 = vmul.f32 %v1917, %v1917
      %v1920 = vmul.f32 %v1918, %v1918
      %v1921 = vsel %vm810, %v1919, 0.0
      %1922 = vadd.xlane.f32.xlu0 %v1921
      %v1923 = vpop.xlane.xlu0 %1922
      %v1924 = vsel %vm814, %v1920, 0.0
      %1925 = vadd.xlane.f32.xlu0 %v1924
      %v1926 = vpop.xlane.xlu0 %1925
      %v1927 = vmul.f32 %v1923, %v818
      %v1928 = vmul.f32 %v1926, %v818
      %v1929 = vadd.f32 %v1927, 1e-05
      %v1930 = vadd.f32 %v1928, 1e-05
      %v1931 = vrsqrt.pop %v1929
      %v1932 = vrsqrt.pop %v1930
      %v1933 = vmul.f32 %v1917, %v1931
      %v1934 = vmul.f32 %v1918, %v1932
      %v1936 = vlaneseq
      %v1937 = vshrl.u32 %v1936, 7
      %v1938 = vsub.s32 0, %v1937
      %v1939 = vrot.slane %v762, %v1938
      %v1941 = vmul.f32 %v1933, %v1939
      %v1942 = vmul.f32 %v1934, %v1939
      %v1944 = vlaneseq
      %v1945 = vshrl.u32 %v1944, 7
      %v1946 = vsub.s32 0, %v1945
      %v1947 = vrot.slane %v764, %v1946
      %v1949 = vadd.f32 %v1941, %v1947
      %v1950 = vadd.f32 %v1942, %v1947
      %v1952 = vlaneseq
      %v1953 = vshrl.u32 %v1952, 7
      %v1954 = vsub.s32 0, %v1953
      %v1955 = vrot.slane %v774, %v1954
      %v1958 = vsel %vm810, %v1949, 0
      %v1961 = vsel %vm810, %v1950, 0
      %1963 = vmatprep.subr.mxu0 0.0
      %1964 = vmatpush1.msra.mxu0 %v766
      %1965 = vmatprep.subr.mxu0 0.0
      %1966 = vmatpush1.msra.mxu0 %v767
      %1967 = vmatprep.subr.mxu0 0.0
      %1968 = vmatpush1.msra.mxu0 %v768
      %1969 = vmatprep.subr.mxu0 0.0
      %1970 = vmatpush1.msra.mxu0 %v769
      %1971 = vmatprep.subr.mxu0 0.0
      %1972 = vmatpush1.msra.mxu0 0.0
      %1973 = vmatprep.subr.mxu0 0.0
      %1974 = vmatpush1.msra.mxu0 0.0
      %1975 = vmatprep.subr.mxu0 0.0
      %1976 = vmatpush1.msra.mxu0 0.0
      %1977 = vmatprep.subr.mxu0 0.0
      %1978 = vmatpush1.msra.mxu0 0.0
      %1979 = vmatprep.subr.mxu0 0.0
      %1980 = vmatpush1.msra.mxu0 0.0
      %1981 = vmatprep.subr.mxu0 0.0
      %1982 = vmatpush1.msra.mxu0 0.0
      %1983 = vmatprep.subr.mxu0 0.0
      %1984 = vmatpush1.msra.mxu0 0.0
      %1985 = vmatprep.subr.mxu0 0.0
      %1986 = vmatpush1.msra.mxu0 0.0
      %1987 = vmatprep.subr.mxu0 0.0
      %1988 = vmatpush1.msra.mxu0 0.0
      %1989 = vmatprep.subr.mxu0 0.0
      %1990 = vmatpush1.msra.mxu0 0.0
      %1991 = vmatprep.subr.mxu0 0.0
      %1992 = vmatpush1.msra.mxu0 0.0
      %1993 = vmatprep.subr.mxu0 0.0
      %1994 = vmatpush1.msra.mxu0 0.0
      %1995 = vmatprep.subr.mxu0 0.0
      %1996 = vmatpush1.msra.mxu0 0.0
      %1997 = vmatprep.subr.mxu0 0.0
      %1998 = vmatpush1.msra.mxu0 0.0
      %1999 = vmatprep.subr.mxu0 0.0
      %2000 = vmatpush1.msra.mxu0 0.0
      %2001 = vmatprep.subr.mxu0 0.0
      %2002 = vmatpush1.msra.mxu0 0.0
      %2003 = vmatprep.subr.mxu0 0.0
      %2004 = vmatpush1.msra.mxu0 0.0
      %2005 = vmatprep.subr.mxu0 0.0
      %2006 = vmatpush1.msra.mxu0 0.0
      %2007 = vmatprep.subr.mxu0 0.0
      %2008 = vmatpush1.msra.mxu0 0.0
      %2009 = vmatprep.subr.mxu0 0.0
      %2010 = vmatpush1.msra.mxu0 0.0
      %2011 = vmatprep.subr.mxu0 0.0
      %2012 = vmatpush1.msra.mxu0 0.0
      %2013 = vmatprep.subr.mxu0 0.0
      %2014 = vmatpush1.msra.mxu0 0.0
      %2015 = vmatprep.subr.mxu0 0.0
      %2016 = vmatpush1.msra.mxu0 0.0
      %2017 = vmatprep.subr.mxu0 0.0
      %2018 = vmatpush1.msra.mxu0 0.0
      %2019 = vmatprep.subr.mxu0 0.0
      %2020 = vmatpush1.msra.mxu0 0.0
      %2021 = vmatprep.subr.mxu0 0.0
      %2022 = vmatpush1.msra.mxu0 0.0
      %2023 = vmatprep.subr.mxu0 0.0
      %2024 = vmatpush1.msra.mxu0 0.0
      %2025 = vmatprep.subr.mxu0 0.0
      %2026 = vmatpush1.msra.mxu0 0.0
      %2027 = vmatprep.mubr.f32.mxu0 0.0
      %2028 = vmatmul.mubr.f32.gmra.mrb[0].mxu0 %v1958
      %v2029 = vpop.f32.mrb[0].mxu0
      %v2030 = vadd.f32 %v1955, %v2029
      %v2031 = vpop.f32.mrb[0].mxu0
      %2032 = vmatprep.mubr.f32.mxu0 0.0
      %2033 = vmatmul.mubr.f32.gmra.mrb[0].mxu0 %v1961
      %v2034 = vpop.f32.mrb[0].mxu0
      %v2035 = vadd.f32 %v1955, %v2034
      %v2036 = vpop.f32.mrb[0].mxu0
      %2037 = vdwg.mxu0
      %v2038 = vmul.f32 %v2030, 0.5
      %v2039 = vmul.f32 %v2035, 0.5
      %v2040 = vmul.f32 %v2030, 0.70710677
      %v2041 = vmul.f32 %v2035, 0.70710677
      %v2042 = verf.f32.pop %v2040
      %v2043 = verf.f32.pop %v2041
      %v2044 = vadd.f32 %v2042, 1.0
      %v2045 = vadd.f32 %v2043, 1.0
      %v2046 = vmul.f32 %v2038, %v2044
      %v2047 = vmul.f32 %v2039, %v2045
      %2048 = vmatprep.subr.mxu0 0.0
      %2049 = vmatpush1.msra.mxu0 %v776
      %2050 = vmatprep.subr.mxu0 0.0
      %2051 = vmatpush1.msra.mxu0 %v777
      %2052 = vmatprep.subr.mxu0 0.0
      %2053 = vmatpush1.msra.mxu0 %v778
      %2054 = vmatprep.subr.mxu0 0.0
      %2055 = vmatpush1.msra.mxu0 %v779
      %2056 = vmatprep.subr.mxu0 0.0
      %2057 = vmatpush1.msra.mxu0 %v780
      %2058 = vmatprep.subr.mxu0 0.0
      %2059 = vmatpush1.msra.mxu0 %v781
      %2060 = vmatprep.subr.mxu0 0.0
      %2061 = vmatpush1.msra.mxu0 %v782
      %2062 = vmatprep.subr.mxu0 0.0
      %2063 = vmatpush1.msra.mxu0 %v783
      %2064 = vmatprep.subr.mxu0 0.0
      %2065 = vmatpush1.msra.mxu0 %v784
      %2066 = vmatprep.subr.mxu0 0.0
      %2067 = vmatpush1.msra.mxu0 %v785
      %2068 = vmatprep.subr.mxu0 0.0
      %2069 = vmatpush1.msra.mxu0 %v786
      %2070 = vmatprep.subr.mxu0 0.0
      %2071 = vmatpush1.msra.mxu0 %v787
      %2072 = vmatprep.subr.mxu0 0.0
      %2073 = vmatpush1.msra.mxu0 %v788
      %2074 = vmatprep.subr.mxu0 0.0
      %2075 = vmatpush1.msra.mxu0 %v789
      %2076 = vmatprep.subr.mxu0 0.0
      %2077 = vmatpush1.msra.mxu0 %v790
      %2078 = vmatprep.subr.mxu0 0.0
      %2079 = vmatpush1.msra.mxu0 %v791
      %2080 = vmatprep.subr.mxu0 0.0
      %2081 = vmatpush1.msra.mxu0 0.0
      %2082 = vmatprep.subr.mxu0 0.0
      %2083 = vmatpush1.msra.mxu0 0.0
      %2084 = vmatprep.subr.mxu0 0.0
      %2085 = vmatpush1.msra.mxu0 0.0
      %2086 = vmatprep.subr.mxu0 0.0
      %2087 = vmatpush1.msra.mxu0 0.0
      %2088 = vmatprep.subr.mxu0 0.0
      %2089 = vmatpush1.msra.mxu0 0.0
      %2090 = vmatprep.subr.mxu0 0.0
      %2091 = vmatpush1.msra.mxu0 0.0
      %2092 = vmatprep.subr.mxu0 0.0
      %2093 = vmatpush1.msra.mxu0 0.0
      %2094 = vmatprep.subr.mxu0 0.0
      %2095 = vmatpush1.msra.mxu0 0.0
      %2096 = vmatprep.subr.mxu0 0.0
      %2097 = vmatpush1.msra.mxu0 0.0
      %2098 = vmatprep.subr.mxu0 0.0
      %2099 = vmatpush1.msra.mxu0 0.0
      %2100 = vmatprep.subr.mxu0 0.0
      %2101 = vmatpush1.msra.mxu0 0.0
      %2102 = vmatprep.subr.mxu0 0.0
      %2103 = vmatpush1.msra.mxu0 0.0
      %2104 = vmatprep.subr.mxu0 0.0
      %2105 = vmatpush1.msra.mxu0 0.0
      %2106 = vmatprep.subr.mxu0 0.0
      %2107 = vmatpush1.msra.mxu0 0.0
      %2108 = vmatprep.subr.mxu0 0.0
      %2109 = vmatpush1.msra.mxu0 0.0
      %2110 = vmatprep.subr.mxu0 0.0
      %2111 = vmatpush1.msra.mxu0 0.0
      %2112 = vmatprep.mubr.f32.mxu0 0.0
      %2113 = vmatmul.mubr.f32.gmra.mrb[0].mxu0 %v2046
      %v2114 = vpop.f32.mrb[0].mxu0
      %v2115 = vadd.f32 0.0, %v2114
      %v2116 = vpop.f32.mrb[0].mxu0
      %2117 = vmatprep.mubr.f32.mxu0 0.0
      %2118 = vmatmul.mubr.f32.gmra.mrb[0].mxu0 %v2047
      %v2119 = vpop.f32.mrb[0].mxu0
      %v2120 = vadd.f32 0.0, %v2119
      %v2121 = vpop.f32.mrb[0].mxu0
      %2122 = vdwg.mxu0
      %v2123 = vadd.f32 %v1907, %v2115
      %v2124 = vadd.f32 %v1908, %v2120
      %v2126 = vlaneseq
      %v2127 = vshrl.u32 %v2126, 7
      %v2128 = vsub.s32 0, %v2127
      %v2129 = vrot.slane %v808, %v2128
      %v2131 = vadd.f32 %v2123, %v2129
      %v2132 = vadd.f32 %v2124, %v2129
      %v2133 = vsel %vm810, %v2131, 0.0
      %2134 = vadd.xlane.f32.xlu0 %v2133
      %v2135 = vpop.xlane.xlu0 %2134
      %v2136 = vsel %vm814, %v2132, 0.0
      %2137 = vadd.xlane.f32.xlu0 %v2136
      %v2138 = vpop.xlane.xlu0 %2137
      %v2139 = vmul.f32 %v2135, %v818
      %v2140 = vmul.f32 %v2138, %v818
      %v2141 = vsub.f32 %v2131, %v2139
      %v2142 = vsub.f32 %v2132, %v2140
      %v2143 = vmul.f32 %v2141, %v2141
      %v2144 = vmul.f32 %v2142, %v2142
      %v2145 = vsel %vm810, %v2143, 0.0
      %2146 = vadd.xlane.f32.xlu0 %v2145
      %v2147 = vpop.xlane.xlu0 %2146
      %v2148 = vsel %vm814, %v2144, 0.0
      %2149 = vadd.xlane.f32.xlu0 %v2148
      %v2150 = vpop.xlane.xlu0 %2149
      %v2151 = vmul.f32 %v2147, %v818
      %v2152 = vmul.f32 %v2150, %v818
      %v2153 = vadd.f32 %v2151, 1e-05
      %v2154 = vadd.f32 %v2152, 1e-05
      %v2155 = vrsqrt.pop %v2153
      %v2156 = vrsqrt.pop %v2154
      %v2157 = vmul.f32 %v2141, %v2155
      %v2158 = vmul.f32 %v2142, %v2156
      %v2160 = vlaneseq
      %v2161 = vshrl.u32 %v2160, 7
      %v2162 = vsub.s32 0, %v2161
      %v2163 = vrot.slane %v689, %v2162
      %v2165 = vmul.f32 %v2157, %v2163
      %v2166 = vmul.f32 %v2158, %v2163
      %v2168 = vlaneseq
      %v2169 = vshrl.u32 %v2168, 7
      %v2170 = vsub.s32 0, %v2169
      %v2171 = vrot.slane %v691, %v2170
      %v2173 = vadd.f32 %v2165, %v2171
      %v2174 = vadd.f32 %v2166, %v2171
      %v2176 = vlaneseq
      %v2177 = vshrl.u32 %v2176, 7
      %v2178 = vsub.s32 0, %v2177
      %v2179 = vrot.slane %v710, %v2178
      %v2182 = vsel %vm810, %v2173, 0
      %v2185 = vsel %vm810, %v2174, 0
      %2187 = vmatprep.subr.mxu0 0.0
      %2188 = vmatpush1.msra.mxu0 %v700
      %2189 = vmatprep.subr.mxu0 0.0
      %2190 = vmatpush1.msra.mxu0 %v701
      %2191 = vmatprep.subr.mxu0 0.0
      %2192 = vmatpush1.msra.mxu0 %v702
      %2193 = vmatprep.subr.mxu0 0.0
      %2194 = vmatpush1.msra.mxu0 %v703
      %2195 = vmatprep.subr.mxu0 0.0
      %2196 = vmatpush1.msra.mxu0 0.0
      %2197 = vmatprep.subr.mxu0 0.0
      %2198 = vmatpush1.msra.mxu0 0.0
      %2199 = vmatprep.subr.mxu0 0.0
      %2200 = vmatpush1.msra.mxu0 0.0
      %2201 = vmatprep.subr.mxu0 0.0
      %2202 = vmatpush1.msra.mxu0 0.0
      %2203 = vmatprep.subr.mxu0 0.0
      %2204 = vmatpush1.msra.mxu0 0.0
      %2205 = vmatprep.subr.mxu0 0.0
      %2206 = vmatpush1.msra.mxu0 0.0
      %2207 = vmatprep.subr.mxu0 0.0
      %2208 = vmatpush1.msra.mxu0 0.0
      %2209 = vmatprep.subr.mxu0 0.0
      %2210 = vmatpush1.msra.mxu0 0.0
      %2211 = vmatprep.subr.mxu0 0.0
      %2212 = vmatpush1.msra.mxu0 0.0
      %2213 = vmatprep.subr.mxu0 0.0
      %2214 = vmatpush1.msra.mxu0 0.0
      %2215 = vmatprep.subr.mxu0 0.0
      %2216 = vmatpush1.msra.mxu0 0.0
      %2217 = vmatprep.subr.mxu0 0.0
      %2218 = vmatpush1.msra.mxu0 0.0
      %2219 = vmatprep.subr.mxu0 0.0
      %2220 = vmatpush1.msra.mxu0 0.0
      %2221 = vmatprep.subr.mxu0 0.0
      %2222 = vmatpush1.msra.mxu0 0.0
      %2223 = vmatprep.subr.mxu0 0.0
      %2224 = vmatpush1.msra.mxu0 0.0
      %2225 = vmatprep.subr.mxu0 0.0
      %2226 = vmatpush1.msra.mxu0 0.0
      %2227 = vmatprep.subr.mxu0 0.0
      %2228 = vmatpush1.msra.mxu0 0.0
      %2229 = vmatprep.subr.mxu0 0.0
      %2230 = vmatpush1.msra.mxu0 0.0
      %2231 = vmatprep.subr.mxu0 0.0
      %2232 = vmatpush1.msra.mxu0 0.0
      %2233 = vmatprep.subr.mxu0 0.0
      %2234 = vmatpush1.msra.mxu0 0.0
      %2235 = vmatprep.subr.mxu0 0.0
      %2236 = vmatpush1.msra.mxu0 0.0
      %2237 = vmatprep.subr.mxu0 0.0
      %2238 = vmatpush1.msra.mxu0 0.0
      %2239 = vmatprep.subr.mxu0 0.0
      %2240 = vmatpush1.msra.mxu0 0.0
      %2241 = vmatprep.subr.mxu0 0.0
      %2242 = vmatpush1.msra.mxu0 0.0
      %2243 = vmatprep.subr.mxu0 0.0
      %2244 = vmatpush1.msra.mxu0 0.0
      %2245 = vmatprep.subr.mxu0 0.0
      %2246 = vmatpush1.msra.mxu0 0.0
      %2247 = vmatprep.subr.mxu0 0.0
      %2248 = vmatpush1.msra.mxu0 0.0
      %2249 = vmatprep.subr.mxu0 0.0
      %2250 = vmatpush1.msra.mxu0 0.0
      %2251 = vmatprep.mubr.f32.mxu0 0.0
      %2252 = vmatmul.mubr.f32.gmra.mrb[0].mxu0 %v2182
      %v2253 = vpop.f32.mrb[0].mxu0
      %v2254 = vadd.f32 %v2179, %v2253
      %v2255 = vpop.f32.mrb[0].mxu0
      %2256 = vmatprep.mubr.f32.mxu0 0.0
      %2257 = vmatmul.mubr.f32.gmra.mrb[0].mxu0 %v2185
      %v2258 = vpop.f32.mrb[0].mxu0
      %v2259 = vadd.f32 %v2179, %v2258
      %v2260 = vpop.f32.mrb[0].mxu0
      %2261 = vdwg.mxu0
      %v2263 = vlaneseq
      %v2264 = vshrl.u32 %v2263, 7
      %v2265 = vsub.s32 0, %v2264
      %v2266 = vrot.slane %v730, %v2265
      %2268 = vmatprep.subr.mxu0 0.0
      %2269 = vmatpush1.msra.mxu0 %v720
      %2270 = vmatprep.subr.mxu0 0.0
      %2271 = vmatpush1.msra.mxu0 %v721
      %2272 = vmatprep.subr.mxu0 0.0
      %2273 = vmatpush1.msra.mxu0 %v722
      %2274 = vmatprep.subr.mxu0 0.0
      %2275 = vmatpush1.msra.mxu0 %v723
      %2276 = vmatprep.subr.mxu0 0.0
      %2277 = vmatpush1.msra.mxu0 0.0
      %2278 = vmatprep.subr.mxu0 0.0
      %2279 = vmatpush1.msra.mxu0 0.0
      %2280 = vmatprep.subr.mxu0 0.0
      %2281 = vmatpush1.msra.mxu0 0.0
      %2282 = vmatprep.subr.mxu0 0.0
      %2283 = vmatpush1.msra.mxu0 0.0
      %2284 = vmatprep.subr.mxu0 0.0
      %2285 = vmatpush1.msra.mxu0 0.0
      %2286 = vmatprep.subr.mxu0 0.0
      %2287 = vmatpush1.msra.mxu0 0.0
      %2288 = vmatprep.subr.mxu0 0.0
      %2289 = vmatpush1.msra.mxu0 0.0
      %2290 = vmatprep.subr.mxu0 0.0
      %2291 = vmatpush1.msra.mxu0 0.0
      %2292 = vmatprep.subr.mxu0 0.0
      %2293 = vmatpush1.msra.mxu0 0.0
      %2294 = vmatprep.subr.mxu0 0.0
      %2295 = vmatpush1.msra.mxu0 0.0
      %2296 = vmatprep.subr.mxu0 0.0
      %2297 = vmatpush1.msra.mxu0 0.0
      %2298 = vmatprep.subr.mxu0 0.0
      %2299 = vmatpush1.msra.mxu0 0.0
      %2300 = vmatprep.subr.mxu0 0.0
      %2301 = vmatpush1.msra.mxu0 0.0
      %2302 = vmatprep.subr.mxu0 0.0
      %2303 = vmatpush1.msra.mxu0 0.0
      %2304 = vmatprep.subr.mxu0 0.0
      %2305 = vmatpush1.msra.mxu0 0.0
      %2306 = vmatprep.subr.mxu0 0.0
      %2307 = vmatpush1.msra.mxu0 0.0
      %2308 = vmatprep.subr.mxu0 0.0
      %2309 = vmatpush1.msra.mxu0 0.0
      %2310 = vmatprep.subr.mxu0 0.0
      %2311 = vmatpush1.msra.mxu0 0.0
      %2312 = vmatprep.subr.mxu0 0.0
      %2313 = vmatpush1.msra.mxu0 0.0
      %2314 = vmatprep.subr.mxu0 0.0
      %2315 = vmatpush1.msra.mxu0 0.0
      %2316 = vmatprep.subr.mxu0 0.0
      %2317 = vmatpush1.msra.mxu0 0.0
      %2318 = vmatprep.subr.mxu0 0.0
      %2319 = vmatpush1.msra.mxu0 0.0
      %2320 = vmatprep.subr.mxu0 0.0
      %2321 = vmatpush1.msra.mxu0 0.0
      %2322 = vmatprep.subr.mxu0 0.0
      %2323 = vmatpush1.msra.mxu0 0.0
      %2324 = vmatprep.subr.mxu0 0.0
      %2325 = vmatpush1.msra.mxu0 0.0
      %2326 = vmatprep.subr.mxu0 0.0
      %2327 = vmatpush1.msra.mxu0 0.0
      %2328 = vmatprep.subr.mxu0 0.0
      %2329 = vmatpush1.msra.mxu0 0.0
      %2330 = vmatprep.subr.mxu0 0.0
      %2331 = vmatpush1.msra.mxu0 0.0
      %2332 = vmatprep.mubr.f32.mxu0 0.0
      %2333 = vmatmul.mubr.f32.gmra.mrb[0].mxu0 %v2182
      %v2334 = vpop.f32.mrb[0].mxu0
      %v2335 = vadd.f32 %v2266, %v2334
      %v2336 = vpop.f32.mrb[0].mxu0
      %2337 = vmatprep.mubr.f32.mxu0 0.0
      %2338 = vmatmul.mubr.f32.gmra.mrb[0].mxu0 %v2185
      %v2339 = vpop.f32.mrb[0].mxu0
      %v2340 = vadd.f32 %v2266, %v2339
      %v2341 = vpop.f32.mrb[0].mxu0
      %2342 = vdwg.mxu0
      %v2344 = vlaneseq
      %v2345 = vshrl.u32 %v2344, 7
      %v2346 = vsub.s32 0, %v2345
      %v2347 = vrot.slane %v750, %v2346
      %2349 = vmatprep.subr.mxu0 0.0
      %2350 = vmatpush1.msra.mxu0 %v740
      %2351 = vmatprep.subr.mxu0 0.0
      %2352 = vmatpush1.msra.mxu0 %v741
      %2353 = vmatprep.subr.mxu0 0.0
      %2354 = vmatpush1.msra.mxu0 %v742
      %2355 = vmatprep.subr.mxu0 0.0
      %2356 = vmatpush1.msra.mxu0 %v743
      %2357 = vmatprep.subr.mxu0 0.0
      %2358 = vmatpush1.msra.mxu0 0.0
      %2359 = vmatprep.subr.mxu0 0.0
      %2360 = vmatpush1.msra.mxu0 0.0
      %2361 = vmatprep.subr.mxu0 0.0
      %2362 = vmatpush1.msra.mxu0 0.0
      %2363 = vmatprep.subr.mxu0 0.0
      %2364 = vmatpush1.msra.mxu0 0.0
      %2365 = vmatprep.subr.mxu0 0.0
      %2366 = vmatpush1.msra.mxu0 0.0
      %2367 = vmatprep.subr.mxu0 0.0
      %2368 = vmatpush1.msra.mxu0 0.0
      %2369 = vmatprep.subr.mxu0 0.0
      %2370 = vmatpush1.msra.mxu0 0.0
      %2371 = vmatprep.subr.mxu0 0.0
      %2372 = vmatpush1.msra.mxu0 0.0
      %2373 = vmatprep.subr.mxu0 0.0
      %2374 = vmatpush1.msra.mxu0 0.0
      %2375 = vmatprep.subr.mxu0 0.0
      %2376 = vmatpush1.msra.mxu0 0.0
      %2377 = vmatprep.subr.mxu0 0.0
      %2378 = vmatpush1.msra.mxu0 0.0
      %2379 = vmatprep.subr.mxu0 0.0
      %2380 = vmatpush1.msra.mxu0 0.0
      %2381 = vmatprep.subr.mxu0 0.0
      %2382 = vmatpush1.msra.mxu0 0.0
      %2383 = vmatprep.subr.mxu0 0.0
      %2384 = vmatpush1.msra.mxu0 0.0
      %2385 = vmatprep.subr.mxu0 0.0
      %2386 = vmatpush1.msra.mxu0 0.0
      %2387 = vmatprep.subr.mxu0 0.0
      %2388 = vmatpush1.msra.mxu0 0.0
      %2389 = vmatprep.subr.mxu0 0.0
      %2390 = vmatpush1.msra.mxu0 0.0
      %2391 = vmatprep.subr.mxu0 0.0
      %2392 = vmatpush1.msra.mxu0 0.0
      %2393 = vmatprep.subr.mxu0 0.0
      %2394 = vmatpush1.msra.mxu0 0.0
      %2395 = vmatprep.subr.mxu0 0.0
      %2396 = vmatpush1.msra.mxu0 0.0
      %2397 = vmatprep.subr.mxu0 0.0
      %2398 = vmatpush1.msra.mxu0 0.0
      %2399 = vmatprep.subr.mxu0 0.0
      %2400 = vmatpush1.msra.mxu0 0.0
      %2401 = vmatprep.subr.mxu0 0.0
      %2402 = vmatpush1.msra.mxu0 0.0
      %2403 = vmatprep.subr.mxu0 0.0
      %2404 = vmatpush1.msra.mxu0 0.0
      %2405 = vmatprep.subr.mxu0 0.0
      %2406 = vmatpush1.msra.mxu0 0.0
      %2407 = vmatprep.subr.mxu0 0.0
      %2408 = vmatpush1.msra.mxu0 0.0
      %2409 = vmatprep.subr.mxu0 0.0
      %2410 = vmatpush1.msra.mxu0 0.0
      %2411 = vmatprep.subr.mxu0 0.0
      %2412 = vmatpush1.msra.mxu0 0.0
      %2413 = vmatprep.mubr.f32.mxu0 0.0
      %2414 = vmatmul.mubr.f32.gmra.mrb[0].mxu0 %v2182
      %v2415 = vpop.f32.mrb[0].mxu0
      %v2416 = vadd.f32 %v2347, %v2415
      %v2417 = vpop.f32.mrb[0].mxu0
      %2418 = vmatprep.mubr.f32.mxu0 0.0
      %2419 = vmatmul.mubr.f32.gmra.mrb[0].mxu0 %v2185
      %v2420 = vpop.f32.mrb[0].mxu0
      %v2421 = vadd.f32 %v2347, %v2420
      %v2422 = vpop.f32.mrb[0].mxu0
      %2423 = vdwg.mxu0
      %v2425 = vsel %vm1104, %v2254, 0
      %v2428 = vsel %vm1104, %v2259, 0
      %v2431 = vsel %vm1104, %v2335, 0
      %v2434 = vsel %vm1104, %v2340, 0
      %2436 = vmatprep.subr.mxu0 0.0
      %2437 = vmatpush1.xpose.msra.mxu0 %v2431
      %2438 = vmatprep.subr.mxu0 0.0
      %2439 = vmatpush1.xpose.msra.mxu0 %v2434
      %2440 = vmatprep.subr.mxu0 0.0
      %2441 = vmatpush1.xpose.msra.mxu0 0.0
      %2442 = vmatprep.subr.mxu0 0.0
      %2443 = vmatpush1.xpose.msra.mxu0 0.0
      %2444 = vmatprep.subr.mxu0 0.0
      %2445 = vmatpush1.xpose.msra.mxu0 0.0
      %2446 = vmatprep.subr.mxu0 0.0
      %2447 = vmatpush1.xpose.msra.mxu0 0.0
      %2448 = vmatprep.subr.mxu0 0.0
      %2449 = vmatpush1.xpose.msra.mxu0 0.0
      %2450 = vmatprep.subr.mxu0 0.0
      %2451 = vmatpush1.xpose.msra.mxu0 0.0
      %2452 = vmatprep.subr.mxu0 0.0
      %2453 = vmatpush1.xpose.msra.mxu0 0.0
      %2454 = vmatprep.subr.mxu0 0.0
      %2455 = vmatpush1.xpose.msra.mxu0 0.0
      %2456 = vmatprep.subr.mxu0 0.0
      %2457 = vmatpush1.xpose.msra.mxu0 0.0
      %2458 = vmatprep.subr.mxu0 0.0
      %2459 = vmatpush1.xpose.msra.mxu0 0.0
      %2460 = vmatprep.subr.mxu0 0.0
      %2461 = vmatpush1.xpose.msra.mxu0 0.0
      %2462 = vmatprep.subr.mxu0 0.0
      %2463 = vmatpush1.xpose.msra.mxu0 0.0
      %2464 = vmatprep.subr.mxu0 0.0
      %2465 = vmatpush1.xpose.msra.mxu0 0.0
      %2466 = vmatprep.subr.mxu0 0.0
      %2467 = vmatpush1.xpose.msra.mxu0 0.0
      %2468 = vmatprep.subr.mxu0 0.0
      %2469 = vmatpush1.xpose.msra.mxu0 0.0
      %2470 = vmatprep.subr.mxu0 0.0
      %2471 = vmatpush1.xpose.msra.mxu0 0.0
      %2472 = vmatprep.subr.mxu0 0.0
      %2473 = vmatpush1.xpose.msra.mxu0 0.0
      %2474 = vmatprep.subr.mxu0 0.0
      %2475 = vmatpush1.xpose.msra.mxu0 0.0
      %2476 = vmatprep.subr.mxu0 0.0
      %2477 = vmatpush1.xpose.msra.mxu0 0.0
      %2478 = vmatprep.subr.mxu0 0.0
      %2479 = vmatpush1.xpose.msra.mxu0 0.0
      %2480 = vmatprep.subr.mxu0 0.0
      %2481 = vmatpush1.xpose.msra.mxu0 0.0
      %2482 = vmatprep.subr.mxu0 0.0
      %2483 = vmatpush1.xpose.msra.mxu0 0.0
      %2484 = vmatprep.subr.mxu0 0.0
      %2485 = vmatpush1.xpose.msra.mxu0 0.0
      %2486 = vmatprep.subr.mxu0 0.0
      %2487 = vmatpush1.xpose.msra.mxu0 0.0
      %2488 = vmatprep.subr.mxu0 0.0
      %2489 = vmatpush1.xpose.msra.mxu0 0.0
      %2490 = vmatprep.subr.mxu0 0.0
      %2491 = vmatpush1.xpose.msra.mxu0 0.0
      %2492 = vmatprep.subr.mxu0 0.0
      %2493 = vmatpush1.xpose.msra.mxu0 0.0
      %2494 = vmatprep.subr.mxu0 0.0
      %2495 = vmatpush1.xpose.msra.mxu0 0.0
      %2496 = vmatprep.subr.mxu0 0.0
      %2497 = vmatpush1.xpose.msra.mxu0 0.0
      %2498 = vmatprep.subr.mxu0 0.0
      %2499 = vmatpush1.xpose.msra.mxu0 0.0
      %2500 = vmatprep.mubr.f32.mxu0 0.0
      %2501 = vmatmul.mubr.f32.gmra.mrb[0].mxu0 %v2425
      %v2502 = vpop.f32.mrb[0].mxu0
      %v2503 = vadd.f32 %v686, %v2502
      %v2504 = vpop.f32.mrb[0].mxu0
      %2505 = vmatprep.mubr.f32.mxu0 0.0
      %2506 = vmatmul.mubr.f32.gmra.mrb[0].mxu0 %v2428
      %v2507 = vpop.f32.mrb[0].mxu0
      %v2508 = vadd.f32 %v687, %v2507
      %v2509 = vpop.f32.mrb[0].mxu0
      %2510 = vdwg.mxu0
      %v2511 = vsel %vm1192, %v2503, -inf
      %2512 = vmax.xlane.f32.xlu0 %v2511
      %v2513 = vpop.xlane.xlu0 %2512
      %v2514 = vsel %vm1196, %v2508, -inf
      %2515 = vmax.xlane.f32.xlu0 %v2514
      %v2516 = vpop.xlane.xlu0 %2515
      %v2517 = vsub.f32 %v2503, %v2513
      %v2518 = vsub.f32 %v2508, %v2516
      %v2519 = vmul.f32 %v2517, 1.442695
      %v2520 = vpow.pop %v2519
      %v2521 = vmul.f32 %v2518, 1.442695
      %v2522 = vpow.pop %v2521
      %v2523 = vsel %vm1192, %v2520, 0.0
      %2524 = vadd.xlane.f32.xlu0 %v2523
      %v2525 = vpop.xlane.xlu0 %2524
      %v2526 = vsel %vm1196, %v2522, 0.0
      %2527 = vadd.xlane.f32.xlu0 %v2526
      %v2528 = vpop.xlane.xlu0 %2527
      %v2529 = vrcp.pop %v2525
      %v2530 = vrcp.pop %v2528
      %v2531 = vmul.f32 %v2520, %v2529
      %v2532 = vmul.f32 %v2522, %v2530
      %v2534 = vsel %vm1192, %v2531, 0
      %v2537 = vsel %vm1192, %v2532, 0
      %v2540 = vsel %vm1222, %v2421, 0
      %2542 = vmatprep.subr.mxu0 0.0
      %2543 = vmatpush1.msra.mxu0 %v2416
      %2544 = vmatprep.subr.mxu0 0.0
      %2545 = vmatpush1.msra.mxu0 %v2540
      %2546 = vmatprep.subr.mxu0 0.0
      %2547 = vmatpush1.msra.mxu0 0.0
      %2548 = vmatprep.subr.mxu0 0.0
      %2549 = vmatpush1.msra.mxu0 0.0
      %2550 = vmatprep.subr.mxu0 0.0
      %2551 = vmatpush1.msra.mxu0 0.0
      %2552 = vmatprep.subr.mxu0 0.0
      %2553 = vmatpush1.msra.mxu0 0.0
      %2554 = vmatprep.subr.mxu0 0.0
      %2555 = vmatpush1.msra.mxu0 0.0
      %2556 = vmatprep.subr.mxu0 0.0
      %2557 = vmatpush1.msra.mxu0 0.0
      %2558 = vmatprep.subr.mxu0 0.0
      %2559 = vmatpush1.msra.mxu0 0.0
      %2560 = vmatprep.subr.mxu0 0.0
      %2561 = vmatpush1.msra.mxu0 0.0
      %2562 = vmatprep.subr.mxu0 0.0
      %2563 = vmatpush1.msra.mxu0 0.0
      %2564 = vmatprep.subr.mxu0 0.0
      %2565 = vmatpush1.msra.mxu0 0.0
      %2566 = vmatprep.subr.mxu0 0.0
      %2567 = vmatpush1.msra.mxu0 0.0
      %2568 = vmatprep.subr.mxu0 0.0
      %2569 = vmatpush1.msra.mxu0 0.0
      %2570 = vmatprep.subr.mxu0 0.0
      %2571 = vmatpush1.msra.mxu0 0.0
      %2572 = vmatprep.subr.mxu0 0.0
      %2573 = vmatpush1.msra.mxu0 0.0
      %2574 = vmatprep.subr.mxu0 0.0
      %2575 = vmatpush1.msra.mxu0 0.0
      %2576 = vmatprep.subr.mxu0 0.0
      %2577 = vmatpush1.msra.mxu0 0.0
      %2578 = vmatprep.subr.mxu0 0.0
      %2579 = vmatpush1.msra.mxu0 0.0
      %2580 = vmatprep.subr.mxu0 0.0
      %2581 = vmatpush1.msra.mxu0 0.0
      %2582 = vmatprep.subr.mxu0 0.0
      %2583 = vmatpush1.msra.mxu0 0.0
      %2584 = vmatprep.subr.mxu0 0.0
      %2585 = vmatpush1.msra.mxu0 0.0
      %2586 = vmatprep.subr.mxu0 0.0
      %2587 = vmatpush1.msra.mxu0 0.0
      %2588 = vmatprep.subr.mxu0 0.0
      %2589 = vmatpush1.msra.mxu0 0.0
      %2590 = vmatprep.subr.mxu0 0.0
      %2591 = vmatpush1.msra.mxu0 0.0
      %2592 = vmatprep.subr.mxu0 0.0
      %2593 = vmatpush1.msra.mxu0 0.0
      %2594 = vmatprep.subr.mxu0 0.0
      %2595 = vmatpush1.msra.mxu0 0.0
      %2596 = vmatprep.subr.mxu0 0.0
      %2597 = vmatpush1.msra.mxu0 0.0
      %2598 = vmatprep.subr.mxu0 0.0
      %2599 = vmatpush1.msra.mxu0 0.0
      %2600 = vmatprep.subr.mxu0 0.0
      %2601 = vmatpush1.msra.mxu0 0.0
      %2602 = vmatprep.subr.mxu0 0.0
      %2603 = vmatpush1.msra.mxu0 0.0
      %2604 = vmatprep.subr.mxu0 0.0
      %2605 = vmatpush1.msra.mxu0 0.0
      %2606 = vmatprep.mubr.f32.mxu0 0.0
      %2607 = vmatmul.mubr.f32.gmra.mrb[0].mxu0 %v2534
      %v2608 = vpop.f32.mrb[0].mxu0
      %v2609 = vadd.f32 0.0, %v2608
      %v2610 = vpop.f32.mrb[0].mxu0
      %2611 = vmatprep.mubr.f32.mxu0 0.0
      %2612 = vmatmul.mubr.f32.gmra.mrb[0].mxu0 %v2537
      %v2613 = vpop.f32.mrb[0].mxu0
      %v2614 = vadd.f32 0.0, %v2613
      %v2615 = vpop.f32.mrb[0].mxu0
      %2616 = vdwg.mxu0
      %v2618 = vlaneseq
      %v2619 = vshrl.u32 %v2618, 7
      %v2620 = vsub.s32 0, %v2619
      %v2621 = vrot.slane %v711, %v2620
      %2623 = vmatprep.subr.mxu0 0.0
      %2624 = vmatpush1.msra.mxu0 %v704
      %2625 = vmatprep.subr.mxu0 0.0
      %2626 = vmatpush1.msra.mxu0 %v705
      %2627 = vmatprep.subr.mxu0 0.0
      %2628 = vmatpush1.msra.mxu0 %v706
      %2629 = vmatprep.subr.mxu0 0.0
      %2630 = vmatpush1.msra.mxu0 %v707
      %2631 = vmatprep.subr.mxu0 0.0
      %2632 = vmatpush1.msra.mxu0 0.0
      %2633 = vmatprep.subr.mxu0 0.0
      %2634 = vmatpush1.msra.mxu0 0.0
      %2635 = vmatprep.subr.mxu0 0.0
      %2636 = vmatpush1.msra.mxu0 0.0
      %2637 = vmatprep.subr.mxu0 0.0
      %2638 = vmatpush1.msra.mxu0 0.0
      %2639 = vmatprep.subr.mxu0 0.0
      %2640 = vmatpush1.msra.mxu0 0.0
      %2641 = vmatprep.subr.mxu0 0.0
      %2642 = vmatpush1.msra.mxu0 0.0
      %2643 = vmatprep.subr.mxu0 0.0
      %2644 = vmatpush1.msra.mxu0 0.0
      %2645 = vmatprep.subr.mxu0 0.0
      %2646 = vmatpush1.msra.mxu0 0.0
      %2647 = vmatprep.subr.mxu0 0.0
      %2648 = vmatpush1.msra.mxu0 0.0
      %2649 = vmatprep.subr.mxu0 0.0
      %2650 = vmatpush1.msra.mxu0 0.0
      %2651 = vmatprep.subr.mxu0 0.0
      %2652 = vmatpush1.msra.mxu0 0.0
      %2653 = vmatprep.subr.mxu0 0.0
      %2654 = vmatpush1.msra.mxu0 0.0
      %2655 = vmatprep.subr.mxu0 0.0
      %2656 = vmatpush1.msra.mxu0 0.0
      %2657 = vmatprep.subr.mxu0 0.0
      %2658 = vmatpush1.msra.mxu0 0.0
      %2659 = vmatprep.subr.mxu0 0.0
      %2660 = vmatpush1.msra.mxu0 0.0
      %2661 = vmatprep.subr.mxu0 0.0
      %2662 = vmatpush1.msra.mxu0 0.0
      %2663 = vmatprep.subr.mxu0 0.0
      %2664 = vmatpush1.msra.mxu0 0.0
      %2665 = vmatprep.subr.mxu0 0.0
      %2666 = vmatpush1.msra.mxu0 0.0
      %2667 = vmatprep.subr.mxu0 0.0
      %2668 = vmatpush1.msra.mxu0 0.0
      %2669 = vmatprep.subr.mxu0 0.0
      %2670 = vmatpush1.msra.mxu0 0.0
      %2671 = vmatprep.subr.mxu0 0.0
      %2672 = vmatpush1.msra.mxu0 0.0
      %2673 = vmatprep.subr.mxu0 0.0
      %2674 = vmatpush1.msra.mxu0 0.0
      %2675 = vmatprep.subr.mxu0 0.0
      %2676 = vmatpush1.msra.mxu0 0.0
      %2677 = vmatprep.subr.mxu0 0.0
      %2678 = vmatpush1.msra.mxu0 0.0
      %2679 = vmatprep.subr.mxu0 0.0
      %2680 = vmatpush1.msra.mxu0 0.0
      %2681 = vmatprep.subr.mxu0 0.0
      %2682 = vmatpush1.msra.mxu0 0.0
      %2683 = vmatprep.subr.mxu0 0.0
      %2684 = vmatpush1.msra.mxu0 0.0
      %2685 = vmatprep.subr.mxu0 0.0
      %2686 = vmatpush1.msra.mxu0 0.0
      %2687 = vmatprep.mubr.f32.mxu0 0.0
      %2688 = vmatmul.mubr.f32.gmra.mrb[0].mxu0 %v2182
      %v2689 = vpop.f32.mrb[0].mxu0
      %v2690 = vadd.f32 %v2621, %v2689
      %v2691 = vpop.f32.mrb[0].mxu0
      %2692 = vmatprep.mubr.f32.mxu0 0.0
      %2693 = vmatmul.mubr.f32.gmra.mrb[0].mxu0 %v2185
      %v2694 = vpop.f32.mrb[0].mxu0
      %v2695 = vadd.f32 %v2621, %v2694
      %v2696 = vpop.f32.mrb[0].mxu0
      %2697 = vdwg.mxu0
      %v2699 = vlaneseq
      %v2700 = vshrl.u32 %v2699, 7
      %v2701 = vsub.s32 0, %v2700
      %v2702 = vrot.slane %v731, %v2701
      %2704 = vmatprep.subr.mxu0 0.0
      %2705 = vmatpush1.msra.mxu0 %v724
      %2706 = vmatprep.subr.mxu0 0.0
      %2707 = vmatpush1.msra.mxu0 %v725
      %2708 = vmatprep.subr.mxu0 0.0
      %2709 = vmatpush1.msra.mxu0 %v726
      %2710 = vmatprep.subr.mxu0 0.0
      %2711 = vmatpush1.msra.mxu0 %v727
      %2712 = vmatprep.subr.mxu0 0.0
      %2713 = vmatpush1.msra.mxu0 0.0
      %2714 = vmatprep.subr.mxu0 0.0
      %2715 = vmatpush1.msra.mxu0 0.0
      %2716 = vmatprep.subr.mxu0 0.0
      %2717 = vmatpush1.msra.mxu0 0.0
      %2718 = vmatprep.subr.mxu0 0.0
      %2719 = vmatpush1.msra.mxu0 0.0
      %2720 = vmatprep.subr.mxu0 0.0
      %2721 = vmatpush1.msra.mxu0 0.0
      %2722 = vmatprep.subr.mxu0 0.0
      %2723 = vmatpush1.msra.mxu0 0.0
      %2724 = vmatprep.subr.mxu0 0.0
      %2725 = vmatpush1.msra.mxu0 0.0
      %2726 = vmatprep.subr.mxu0 0.0
      %2727 = vmatpush1.msra.mxu0 0.0
      %2728 = vmatprep.subr.mxu0 0.0
      %2729 = vmatpush1.msra.mxu0 0.0
      %2730 = vmatprep.subr.mxu0 0.0
      %2731 = vmatpush1.msra.mxu0 0.0
      %2732 = vmatprep.subr.mxu0 0.0
      %2733 = vmatpush1.msra.mxu0 0.0
      %2734 = vmatprep.subr.mxu0 0.0
      %2735 = vmatpush1.msra.mxu0 0.0
      %2736 = vmatprep.subr.mxu0 0.0
      %2737 = vmatpush1.msra.mxu0 0.0
      %2738 = vmatprep.subr.mxu0 0.0
      %2739 = vmatpush1.msra.mxu0 0.0
      %2740 = vmatprep.subr.mxu0 0.0
      %2741 = vmatpush1.msra.mxu0 0.0
      %2742 = vmatprep.subr.mxu0 0.0
      %2743 = vmatpush1.msra.mxu0 0.0
      %2744 = vmatprep.subr.mxu0 0.0
      %2745 = vmatpush1.msra.mxu0 0.0
      %2746 = vmatprep.subr.mxu0 0.0
      %2747 = vmatpush1.msra.mxu0 0.0
      %2748 = vmatprep.subr.mxu0 0.0
      %2749 = vmatpush1.msra.mxu0 0.0
      %2750 = vmatprep.subr.mxu0 0.0
      %2751 = vmatpush1.msra.mxu0 0.0
      %2752 = vmatprep.subr.mxu0 0.0
      %2753 = vmatpush1.msra.mxu0 0.0
      %2754 = vmatprep.subr.mxu0 0.0
      %2755 = vmatpush1.msra.mxu0 0.0
      %2756 = vmatprep.subr.mxu0 0.0
      %2757 = vmatpush1.msra.mxu0 0.0
      %2758 = vmatprep.subr.mxu0 0.0
      %2759 = vmatpush1.msra.mxu0 0.0
      %2760 = vmatprep.subr.mxu0 0.0
      %2761 = vmatpush1.msra.mxu0 0.0
      %2762 = vmatprep.subr.mxu0 0.0
      %2763 = vmatpush1.msra.mxu0 0.0
      %2764 = vmatprep.subr.mxu0 0.0
      %2765 = vmatpush1.msra.mxu0 0.0
      %2766 = vmatprep.subr.mxu0 0.0
      %2767 = vmatpush1.msra.mxu0 0.0
      %2768 = vmatprep.mubr.f32.mxu0 0.0
      %2769 = vmatmul.mubr.f32.gmra.mrb[0].mxu0 %v2182
      %v2770 = vpop.f32.mrb[0].mxu0
      %v2771 = vadd.f32 %v2702, %v2770
      %v2772 = vpop.f32.mrb[0].mxu0
      %2773 = vmatprep.mubr.f32.mxu0 0.0
      %2774 = vmatmul.mubr.f32.gmra.mrb[0].mxu0 %v2185
      %v2775 = vpop.f32.mrb[0].mxu0
      %v2776 = vadd.f32 %v2702, %v2775
      %v2777 = vpop.f32.mrb[0].mxu0
      %2778 = vdwg.mxu0
      %v2780 = vlaneseq
      %v2781 = vshrl.u32 %v2780, 7
      %v2782 = vsub.s32 0, %v2781
      %v2783 = vrot.slane %v751, %v2782
      %2785 = vmatprep.subr.mxu0 0.0
      %2786 = vmatpush1.msra.mxu0 %v744
      %2787 = vmatprep.subr.mxu0 0.0
      %2788 = vmatpush1.msra.mxu0 %v745
      %2789 = vmatprep.subr.mxu0 0.0
      %2790 = vmatpush1.msra.mxu0 %v746
      %2791 = vmatprep.subr.mxu0 0.0
      %2792 = vmatpush1.msra.mxu0 %v747
      %2793 = vmatprep.subr.mxu0 0.0
      %2794 = vmatpush1.msra.mxu0 0.0
      %2795 = vmatprep.subr.mxu0 0.0
      %2796 = vmatpush1.msra.mxu0 0.0
      %2797 = vmatprep.subr.mxu0 0.0
      %2798 = vmatpush1.msra.mxu0 0.0
      %2799 = vmatprep.subr.mxu0 0.0
      %2800 = vmatpush1.msra.mxu0 0.0
      %2801 = vmatprep.subr.mxu0 0.0
      %2802 = vmatpush1.msra.mxu0 0.0
      %2803 = vmatprep.subr.mxu0 0.0
      %2804 = vmatpush1.msra.mxu0 0.0
      %2805 = vmatprep.subr.mxu0 0.0
      %2806 = vmatpush1.msra.mxu0 0.0
      %2807 = vmatprep.subr.mxu0 0.0
      %2808 = vmatpush1.msra.mxu0 0.0
      %2809 = vmatprep.subr.mxu0 0.0
      %2810 = vmatpush1.msra.mxu0 0.0
      %2811 = vmatprep.subr.mxu0 0.0
      %2812 = vmatpush1.msra.mxu0 0.0
      %2813 = vmatprep.subr.mxu0 0.0
      %2814 = vmatpush1.msra.mxu0 0.0
      %2815 = vmatprep.subr.mxu0 0.0
      %2816 = vmatpush1.msra.mxu0 0.0
      %2817 = vmatprep.subr.mxu0 0.0
      %2818 = vmatpush1.msra.mxu0 0.0
      %2819 = vmatprep.subr.mxu0 0.0
      %2820 = vmatpush1.msra.mxu0 0.0
      %2821 = vmatprep.subr.mxu0 0.0
      %2822 = vmatpush1.msra.mxu0 0.0
      %2823 = vmatprep.subr.mxu0 0.0
      %2824 = vmatpush1.msra.mxu0 0.0
      %2825 = vmatprep.subr.mxu0 0.0
      %2826 = vmatpush1.msra.mxu0 0.0
      %2827 = vmatprep.subr.mxu0 0.0
      %2828 = vmatpush1.msra.mxu0 0.0
      %2829 = vmatprep.subr.mxu0 0.0
      %2830 = vmatpush1.msra.mxu0 0.0
      %2831 = vmatprep.subr.mxu0 0.0
      %2832 = vmatpush1.msra.mxu0 0.0
      %2833 = vmatprep.subr.mxu0 0.0
      %2834 = vmatpush1.msra.mxu0 0.0
      %2835 = vmatprep.subr.mxu0 0.0
      %2836 = vmatpush1.msra.mxu0 0.0
      %2837 = vmatprep.subr.mxu0 0.0
      %2838 = vmatpush1.msra.mxu0 0.0
      %2839 = vmatprep.subr.mxu0 0.0
      %2840 = vmatpush1.msra.mxu0 0.0
      %2841 = vmatprep.subr.mxu0 0.0
      %2842 = vmatpush1.msra.mxu0 0.0
      %2843 = vmatprep.subr.mxu0 0.0
      %2844 = vmatpush1.msra.mxu0 0.0
      %2845 = vmatprep.subr.mxu0 0.0
      %2846 = vmatpush1.msra.mxu0 0.0
      %2847 = vmatprep.subr.mxu0 0.0
      %2848 = vmatpush1.msra.mxu0 0.0
      %2849 = vmatprep.mubr.f32.mxu0 0.0
      %2850 = vmatmul.mubr.f32.gmra.mrb[0].mxu0 %v2182
      %v2851 = vpop.f32.mrb[0].mxu0
      %v2852 = vadd.f32 %v2783, %v2851
      %v2853 = vpop.f32.mrb[0].mxu0
      %2854 = vmatprep.mubr.f32.mxu0 0.0
      %2855 = vmatmul.mubr.f32.gmra.mrb[0].mxu0 %v2185
      %v2856 = vpop.f32.mrb[0].mxu0
      %v2857 = vadd.f32 %v2783, %v2856
      %v2858 = vpop.f32.mrb[0].mxu0
      %2859 = vdwg.mxu0
      %v2861 = vsel %vm1104, %v2690, 0
      %v2864 = vsel %vm1104, %v2695, 0
      %v2867 = vsel %vm1104, %v2771, 0
      %v2870 = vsel %vm1104, %v2776, 0
      %2872 = vmatprep.subr.mxu0 0.0
      %2873 = vmatpush1.xpose.msra.mxu0 %v2867
      %2874 = vmatprep.subr.mxu0 0.0
      %2875 = vmatpush1.xpose.msra.mxu0 %v2870
      %2876 = vmatprep.subr.mxu0 0.0
      %2877 = vmatpush1.xpose.msra.mxu0 0.0
      %2878 = vmatprep.subr.mxu0 0.0
      %2879 = vmatpush1.xpose.msra.mxu0 0.0
      %2880 = vmatprep.subr.mxu0 0.0
      %2881 = vmatpush1.xpose.msra.mxu0 0.0
      %2882 = vmatprep.subr.mxu0 0.0
      %2883 = vmatpush1.xpose.msra.mxu0 0.0
      %2884 = vmatprep.subr.mxu0 0.0
      %2885 = vmatpush1.xpose.msra.mxu0 0.0
      %2886 = vmatprep.subr.mxu0 0.0
      %2887 = vmatpush1.xpose.msra.mxu0 0.0
      %2888 = vmatprep.subr.mxu0 0.0
      %2889 = vmatpush1.xpose.msra.mxu0 0.0
      %2890 = vmatprep.subr.mxu0 0.0
      %2891 = vmatpush1.xpose.msra.mxu0 0.0
      %2892 = vmatprep.subr.mxu0 0.0
      %2893 = vmatpush1.xpose.msra.mxu0 0.0
      %2894 = vmatprep.subr.mxu0 0.0
      %2895 = vmatpush1.xpose.msra.mxu0 0.0
      %2896 = vmatprep.subr.mxu0 0.0
      %2897 = vmatpush1.xpose.msra.mxu0 0.0
      %2898 = vmatprep.subr.mxu0 0.0
      %2899 = vmatpush1.xpose.msra.mxu0 0.0
      %2900 = vmatprep.subr.mxu0 0.0
      %2901 = vmatpush1.xpose.msra.mxu0 0.0
      %2902 = vmatprep.subr.mxu0 0.0
      %2903 = vmatpush1.xpose.msra.mxu0 0.0
      %2904 = vmatprep.subr.mxu0 0.0
      %2905 = vmatpush1.xpose.msra.mxu0 0.0
      %2906 = vmatprep.subr.mxu0 0.0
      %2907 = vmatpush1.xpose.msra.mxu0 0.0
      %2908 = vmatprep.subr.mxu0 0.0
      %2909 = vmatpush1.xpose.msra.mxu0 0.0
      %2910 = vmatprep.subr.mxu0 0.0
      %2911 = vmatpush1.xpose.msra.mxu0 0.0
      %2912 = vmatprep.subr.mxu0 0.0
      %2913 = vmatpush1.xpose.msra.mxu0 0.0
      %2914 = vmatprep.subr.mxu0 0.0
      %2915 = vmatpush1.xpose.msra.mxu0 0.0
      %2916 = vmatprep.subr.mxu0 0.0
      %2917 = vmatpush1.xpose.msra.mxu0 0.0
      %2918 = vmatprep.subr.mxu0 0.0
      %2919 = vmatpush1.xpose.msra.mxu0 0.0
      %2920 = vmatprep.subr.mxu0 0.0
      %2921 = vmatpush1.xpose.msra.mxu0 0.0
      %2922 = vmatprep.subr.mxu0 0.0
      %2923 = vmatpush1.xpose.msra.mxu0 0.0
      %2924 = vmatprep.subr.mxu0 0.0
      %2925 = vmatpush1.xpose.msra.mxu0 0.0
      %2926 = vmatprep.subr.mxu0 0.0
      %2927 = vmatpush1.xpose.msra.mxu0 0.0
      %2928 = vmatprep.subr.mxu0 0.0
      %2929 = vmatpush1.xpose.msra.mxu0 0.0
      %2930 = vmatprep.subr.mxu0 0.0
      %2931 = vmatpush1.xpose.msra.mxu0 0.0
      %2932 = vmatprep.subr.mxu0 0.0
      %2933 = vmatpush1.xpose.msra.mxu0 0.0
      %2934 = vmatprep.subr.mxu0 0.0
      %2935 = vmatpush1.xpose.msra.mxu0 0.0
      %2936 = vmatprep.mubr.f32.mxu0 0.0
      %2937 = vmatmul.mubr.f32.gmra.mrb[0].mxu0 %v2861
      %v2938 = vpop.f32.mrb[0].mxu0
      %v2939 = vadd.f32 %v686, %v2938
      %v2940 = vpop.f32.mrb[0].mxu0
      %2941 = vmatprep.mubr.f32.mxu0 0.0
      %2942 = vmatmul.mubr.f32.gmra.mrb[0].mxu0 %v2864
      %v2943 = vpop.f32.mrb[0].mxu0
      %v2944 = vadd.f32 %v687, %v2943
      %v2945 = vpop.f32.mrb[0].mxu0
      %2946 = vdwg.mxu0
      %v2947 = vsel %vm1192, %v2939, -inf
      %2948 = vmax.xlane.f32.xlu0 %v2947
      %v2949 = vpop.xlane.xlu0 %2948
      %v2950 = vsel %vm1196, %v2944, -inf
      %2951 = vmax.xlane.f32.xlu0 %v2950
      %v2952 = vpop.xlane.xlu0 %2951
      %v2953 = vsub.f32 %v2939, %v2949
      %v2954 = vsub.f32 %v2944, %v2952
      %v2955 = vmul.f32 %v2953, 1.442695
      %v2956 = vpow.pop %v2955
      %v2957 = vmul.f32 %v2954, 1.442695
      %v2958 = vpow.pop %v2957
      %v2959 = vsel %vm1192, %v2956, 0.0
      %2960 = vadd.xlane.f32.xlu0 %v2959
      %v2961 = vpop.xlane.xlu0 %2960
      %v2962 = vsel %vm1196, %v2958, 0.0
      %2963 = vadd.xlane.f32.xlu0 %v2962
      %v2964 = vpop.xlane.xlu0 %2963
      %v2965 = vrcp.pop %v2961
      %v2966 = vrcp.pop %v2964
      %v2967 = vmul.f32 %v2956, %v2965
      %v2968 = vmul.f32 %v2958, %v2966
      %v2970 = vsel %vm1192, %v2967, 0
      %v2973 = vsel %vm1192, %v2968, 0
      %v2976 = vsel %vm1222, %v2857, 0
      %2978 = vmatprep.subr.mxu0 0.0
      %2979 = vmatpush1.msra.mxu0 %v2852
      %2980 = vmatprep.subr.mxu0 0.0
      %2981 = vmatpush1.msra.mxu0 %v2976
      %2982 = vmatprep.subr.mxu0 0.0
      %2983 = vmatpush1.msra.mxu0 0.0
      %2984 = vmatprep.subr.mxu0 0.0
      %2985 = vmatpush1.msra.mxu0 0.0
      %2986 = vmatprep.subr.mxu0 0.0
      %2987 = vmatpush1.msra.mxu0 0.0
      %2988 = vmatprep.subr.mxu0 0.0
      %2989 = vmatpush1.msra.mxu0 0.0
      %2990 = vmatprep.subr.mxu0 0.0
      %2991 = vmatpush1.msra.mxu0 0.0
      %2992 = vmatprep.subr.mxu0 0.0
      %2993 = vmatpush1.msra.mxu0 0.0
      %2994 = vmatprep.subr.mxu0 0.0
      %2995 = vmatpush1.msra.mxu0 0.0
      %2996 = vmatprep.subr.mxu0 0.0
      %2997 = vmatpush1.msra.mxu0 0.0
      %2998 = vmatprep.subr.mxu0 0.0
      %2999 = vmatpush1.msra.mxu0 0.0
      %3000 = vmatprep.subr.mxu0 0.0
      %3001 = vmatpush1.msra.mxu0 0.0
      %3002 = vmatprep.subr.mxu0 0.0
      %3003 = vmatpush1.msra.mxu0 0.0
      %3004 = vmatprep.subr.mxu0 0.0
      %3005 = vmatpush1.msra.mxu0 0.0
      %3006 = vmatprep.subr.mxu0 0.0
      %3007 = vmatpush1.msra.mxu0 0.0
      %3008 = vmatprep.subr.mxu0 0.0
      %3009 = vmatpush1.msra.mxu0 0.0
      %3010 = vmatprep.subr.mxu0 0.0
      %3011 = vmatpush1.msra.mxu0 0.0
      %3012 = vmatprep.subr.mxu0 0.0
      %3013 = vmatpush1.msra.mxu0 0.0
      %3014 = vmatprep.subr.mxu0 0.0
      %3015 = vmatpush1.msra.mxu0 0.0
      %3016 = vmatprep.subr.mxu0 0.0
      %3017 = vmatpush1.msra.mxu0 0.0
      %3018 = vmatprep.subr.mxu0 0.0
      %3019 = vmatpush1.msra.mxu0 0.0
      %3020 = vmatprep.subr.mxu0 0.0
      %3021 = vmatpush1.msra.mxu0 0.0
      %3022 = vmatprep.subr.mxu0 0.0
      %3023 = vmatpush1.msra.mxu0 0.0
      %3024 = vmatprep.subr.mxu0 0.0
      %3025 = vmatpush1.msra.mxu0 0.0
      %3026 = vmatprep.subr.mxu0 0.0
      %3027 = vmatpush1.msra.mxu0 0.0
      %3028 = vmatprep.subr.mxu0 0.0
      %3029 = vmatpush1.msra.mxu0 0.0
      %3030 = vmatprep.subr.mxu0 0.0
      %3031 = vmatpush1.msra.mxu0 0.0
      %3032 = vmatprep.subr.mxu0 0.0
      %3033 = vmatpush1.msra.mxu0 0.0
      %3034 = vmatprep.subr.mxu0 0.0
      %3035 = vmatpush1.msra.mxu0 0.0
      %3036 = vmatprep.subr.mxu0 0.0
      %3037 = vmatpush1.msra.mxu0 0.0
      %3038 = vmatprep.subr.mxu0 0.0
      %3039 = vmatpush1.msra.mxu0 0.0
      %3040 = vmatprep.subr.mxu0 0.0
      %3041 = vmatpush1.msra.mxu0 0.0
      %3042 = vmatprep.mubr.f32.mxu0 0.0
      %3043 = vmatmul.mubr.f32.gmra.mrb[0].mxu0 %v2970
      %v3044 = vpop.f32.mrb[0].mxu0
      %v3045 = vadd.f32 0.0, %v3044
      %v3046 = vpop.f32.mrb[0].mxu0
      %3047 = vmatprep.mubr.f32.mxu0 0.0
      %3048 = vmatmul.mubr.f32.gmra.mrb[0].mxu0 %v2973
      %v3049 = vpop.f32.mrb[0].mxu0
      %v3050 = vadd.f32 0.0, %v3049
      %v3051 = vpop.f32.mrb[0].mxu0
      %3052 = vdwg.mxu0
      %v3054 = vsel %vm1104, %v3045, 0
      %v3057 = vsel %vm1104, %v3050, 0
      %3059 = vmatprep.subr.mxu0 0.0
      %3060 = vmatpush1.msra.mxu0 %v758
      %3061 = vmatprep.subr.mxu0 0.0
      %3062 = vmatpush1.msra.mxu0 %v759
      %3063 = vmatprep.subr.mxu0 0.0
      %3064 = vmatpush1.msra.mxu0 0.0
      %3065 = vmatprep.subr.mxu0 0.0
      %3066 = vmatpush1.msra.mxu0 0.0
      %3067 = vmatprep.subr.mxu0 0.0
      %3068 = vmatpush1.msra.mxu0 0.0
      %3069 = vmatprep.subr.mxu0 0.0
      %3070 = vmatpush1.msra.mxu0 0.0
      %3071 = vmatprep.subr.mxu0 0.0
      %3072 = vmatpush1.msra.mxu0 0.0
      %3073 = vmatprep.subr.mxu0 0.0
      %3074 = vmatpush1.msra.mxu0 0.0
      %3075 = vmatprep.subr.mxu0 0.0
      %3076 = vmatpush1.msra.mxu0 0.0
      %3077 = vmatprep.subr.mxu0 0.0
      %3078 = vmatpush1.msra.mxu0 0.0
      %3079 = vmatprep.subr.mxu0 0.0
      %3080 = vmatpush1.msra.mxu0 0.0
      %3081 = vmatprep.subr.mxu0 0.0
      %3082 = vmatpush1.msra.mxu0 0.0
      %3083 = vmatprep.subr.mxu0 0.0
      %3084 = vmatpush1.msra.mxu0 0.0
      %3085 = vmatprep.subr.mxu0 0.0
      %3086 = vmatpush1.msra.mxu0 0.0
      %3087 = vmatprep.subr.mxu0 0.0
      %3088 = vmatpush1.msra.mxu0 0.0
      %3089 = vmatprep.subr.mxu0 0.0
      %3090 = vmatpush1.msra.mxu0 0.0
      %3091 = vmatprep.subr.mxu0 0.0
      %3092 = vmatpush1.msra.mxu0 0.0
      %3093 = vmatprep.subr.mxu0 0.0
      %3094 = vmatpush1.msra.mxu0 0.0
      %3095 = vmatprep.subr.mxu0 0.0
      %3096 = vmatpush1.msra.mxu0 0.0
      %3097 = vmatprep.subr.mxu0 0.0
      %3098 = vmatpush1.msra.mxu0 0.0
      %3099 = vmatprep.subr.mxu0 0.0
      %3100 = vmatpush1.msra.mxu0 0.0
      %3101 = vmatprep.subr.mxu0 0.0
      %3102 = vmatpush1.msra.mxu0 0.0
      %3103 = vmatprep.subr.mxu0 0.0
      %3104 = vmatpush1.msra.mxu0 0.0
      %3105 = vmatprep.subr.mxu0 0.0
      %3106 = vmatpush1.msra.mxu0 0.0
      %3107 = vmatprep.subr.mxu0 0.0
      %3108 = vmatpush1.msra.mxu0 0.0
      %3109 = vmatprep.subr.mxu0 0.0
      %3110 = vmatpush1.msra.mxu0 0.0
      %3111 = vmatprep.subr.mxu0 0.0
      %3112 = vmatpush1.msra.mxu0 0.0
      %3113 = vmatprep.subr.mxu0 0.0
      %3114 = vmatpush1.msra.mxu0 0.0
      %3115 = vmatprep.subr.mxu0 0.0
      %3116 = vmatpush1.msra.mxu0 0.0
      %3117 = vmatprep.subr.mxu0 0.0
      %3118 = vmatpush1.msra.mxu0 0.0
      %3119 = vmatprep.subr.mxu0 0.0
      %3120 = vmatpush1.msra.mxu0 0.0
      %3121 = vmatprep.subr.mxu0 0.0
      %3122 = vmatpush1.msra.mxu0 0.0
      %3123 = vmatprep.mubr.f32.mxu0 0.0
      %3124 = vmatmul.mubr.f32.gmra.mrb[0].mxu0 %v3054
      %v3125 = vpop.f32.mrb[0].mxu0
      %v3126 = vadd.f32 0.0, %v3125
      %v3127 = vpop.f32.mrb[0].mxu0
      %3128 = vmatprep.mubr.f32.mxu0 0.0
      %3129 = vmatmul.mubr.f32.gmra.mrb[0].mxu0 %v3057
      %v3130 = vpop.f32.mrb[0].mxu0
      %v3131 = vadd.f32 0.0, %v3130
      %v3132 = vpop.f32.mrb[0].mxu0
      %3133 = vdwg.mxu0
      %v3135 = vsel %vm1104, %v2609, 0
      %v3138 = vsel %vm1104, %v2614, 0
      %3140 = vmatprep.subr.mxu0 0.0
      %3141 = vmatpush1.msra.mxu0 %v756
      %3142 = vmatprep.subr.mxu0 0.0
      %3143 = vmatpush1.msra.mxu0 %v757
      %3144 = vmatprep.subr.mxu0 0.0
      %3145 = vmatpush1.msra.mxu0 0.0
      %3146 = vmatprep.subr.mxu0 0.0
      %3147 = vmatpush1.msra.mxu0 0.0
      %3148 = vmatprep.subr.mxu0 0.0
      %3149 = vmatpush1.msra.mxu0 0.0
      %3150 = vmatprep.subr.mxu0 0.0
      %3151 = vmatpush1.msra.mxu0 0.0
      %3152 = vmatprep.subr.mxu0 0.0
      %3153 = vmatpush1.msra.mxu0 0.0
      %3154 = vmatprep.subr.mxu0 0.0
      %3155 = vmatpush1.msra.mxu0 0.0
      %3156 = vmatprep.subr.mxu0 0.0
      %3157 = vmatpush1.msra.mxu0 0.0
      %3158 = vmatprep.subr.mxu0 0.0
      %3159 = vmatpush1.msra.mxu0 0.0
      %3160 = vmatprep.subr.mxu0 0.0
      %3161 = vmatpush1.msra.mxu0 0.0
      %3162 = vmatprep.subr.mxu0 0.0
      %3163 = vmatpush1.msra.mxu0 0.0
      %3164 = vmatprep.subr.mxu0 0.0
      %3165 = vmatpush1.msra.mxu0 0.0
      %3166 = vmatprep.subr.mxu0 0.0
      %3167 = vmatpush1.msra.mxu0 0.0
      %3168 = vmatprep.subr.mxu0 0.0
      %3169 = vmatpush1.msra.mxu0 0.0
      %3170 = vmatprep.subr.mxu0 0.0
      %3171 = vmatpush1.msra.mxu0 0.0
      %3172 = vmatprep.subr.mxu0 0.0
      %3173 = vmatpush1.msra.mxu0 0.0
      %3174 = vmatprep.subr.mxu0 0.0
      %3175 = vmatpush1.msra.mxu0 0.0
      %3176 = vmatprep.subr.mxu0 0.0
      %3177 = vmatpush1.msra.mxu0 0.0
      %3178 = vmatprep.subr.mxu0 0.0
      %3179 = vmatpush1.msra.mxu0 0.0
      %3180 = vmatprep.subr.mxu0 0.0
      %3181 = vmatpush1.msra.mxu0 0.0
      %3182 = vmatprep.subr.mxu0 0.0
      %3183 = vmatpush1.msra.mxu0 0.0
      %3184 = vmatprep.subr.mxu0 0.0
      %3185 = vmatpush1.msra.mxu0 0.0
      %3186 = vmatprep.subr.mxu0 0.0
      %3187 = vmatpush1.msra.mxu0 0.0
      %3188 = vmatprep.subr.mxu0 0.0
      %3189 = vmatpush1.msra.mxu0 0.0
      %3190 = vmatprep.subr.mxu0 0.0
      %3191 = vmatpush1.msra.mxu0 0.0
      %3192 = vmatprep.subr.mxu0 0.0
      %3193 = vmatpush1.msra.mxu0 0.0
      %3194 = vmatprep.subr.mxu0 0.0
      %3195 = vmatpush1.msra.mxu0 0.0
      %3196 = vmatprep.subr.mxu0 0.0
      %3197 = vmatpush1.msra.mxu0 0.0
      %3198 = vmatprep.subr.mxu0 0.0
      %3199 = vmatpush1.msra.mxu0 0.0
      %3200 = vmatprep.subr.mxu0 0.0
      %3201 = vmatpush1.msra.mxu0 0.0
      %3202 = vmatprep.subr.mxu0 0.0
      %3203 = vmatpush1.msra.mxu0 0.0
      %3204 = vmatprep.mubr.f32.mxu0 0.0
      %3205 = vmatmul.mubr.f32.gmra.mrb[0].mxu0 %v3135
      %v3206 = vpop.f32.mrb[0].mxu0
      %v3207 = vadd.f32 %v3126, %v3206
      %v3208 = vpop.f32.mrb[0].mxu0
      %3209 = vmatprep.mubr.f32.mxu0 0.0
      %3210 = vmatmul.mubr.f32.gmra.mrb[0].mxu0 %v3138
      %v3211 = vpop.f32.mrb[0].mxu0
      %v3212 = vadd.f32 %v3131, %v3211
      %v3213 = vpop.f32.mrb[0].mxu0
      %3214 = vdwg.mxu0
      %v3215 = vadd.f32 %v2131, %v3207
      %v3216 = vadd.f32 %v2132, %v3212
      %v3218 = vlaneseq
      %v3219 = vshrl.u32 %v3218, 7
      %v3220 = vsub.s32 0, %v3219
      %v3221 = vrot.slane %v761, %v3220
      %v3223 = vadd.f32 %v3215, %v3221
      %v3224 = vadd.f32 %v3216, %v3221
      %v3225 = vsel %vm810, %v3223, 0.0
      %3226 = vadd.xlane.f32.xlu0 %v3225
      %v3227 = vpop.xlane.xlu0 %3226
      %v3228 = vsel %vm814, %v3224, 0.0
      %3229 = vadd.xlane.f32.xlu0 %v3228
      %v3230 = vpop.xlane.xlu0 %3229
      %v3231 = vmul.f32 %v3227, %v818
      %v3232 = vmul.f32 %v3230, %v818
      %v3233 = vsub.f32 %v3223, %v3231
      %v3234 = vsub.f32 %v3224, %v3232
      %v3235 = vmul.f32 %v3233, %v3233
      %v3236 = vmul.f32 %v3234, %v3234
      %v3237 = vsel %vm810, %v3235, 0.0
      %3238 = vadd.xlane.f32.xlu0 %v3237
      %v3239 = vpop.xlane.xlu0 %3238
      %v3240 = vsel %vm814, %v3236, 0.0
      %3241 = vadd.xlane.f32.xlu0 %v3240
      %v3242 = vpop.xlane.xlu0 %3241
      %v3243 = vmul.f32 %v3239, %v818
      %v3244 = vmul.f32 %v3242, %v818
      %v3245 = vadd.f32 %v3243, 1e-05
      %v3246 = vadd.f32 %v3244, 1e-05
      %v3247 = vrsqrt.pop %v3245
      %v3248 = vrsqrt.pop %v3246
      %v3249 = vmul.f32 %v3233, %v3247
      %v3250 = vmul.f32 %v3234, %v3248
      %v3252 = vlaneseq
      %v3253 = vshrl.u32 %v3252, 7
      %v3254 = vsub.s32 0, %v3253
      %v3255 = vrot.slane %v763, %v3254
      %v3257 = vmul.f32 %v3249, %v3255
      %v3258 = vmul.f32 %v3250, %v3255
      %v3260 = vlaneseq
      %v3261 = vshrl.u32 %v3260, 7
      %v3262 = vsub.s32 0, %v3261
      %v3263 = vrot.slane %v765, %v3262
      %v3265 = vadd.f32 %v3257, %v3263
      %v3266 = vadd.f32 %v3258, %v3263
      %v3268 = vlaneseq
      %v3269 = vshrl.u32 %v3268, 7
      %v3270 = vsub.s32 0, %v3269
      %v3271 = vrot.slane %v775, %v3270
      %v3274 = vsel %vm810, %v3265, 0
      %v3277 = vsel %vm810, %v3266, 0
      %3279 = vmatprep.subr.mxu0 0.0
      %3280 = vmatpush1.msra.mxu0 %v770
      %3281 = vmatprep.subr.mxu0 0.0
      %3282 = vmatpush1.msra.mxu0 %v771
      %3283 = vmatprep.subr.mxu0 0.0
      %3284 = vmatpush1.msra.mxu0 %v772
      %3285 = vmatprep.subr.mxu0 0.0
      %3286 = vmatpush1.msra.mxu0 %v773
      %3287 = vmatprep.subr.mxu0 0.0
      %3288 = vmatpush1.msra.mxu0 0.0
      %3289 = vmatprep.subr.mxu0 0.0
      %3290 = vmatpush1.msra.mxu0 0.0
      %3291 = vmatprep.subr.mxu0 0.0
      %3292 = vmatpush1.msra.mxu0 0.0
      %3293 = vmatprep.subr.mxu0 0.0
      %3294 = vmatpush1.msra.mxu0 0.0
      %3295 = vmatprep.subr.mxu0 0.0
      %3296 = vmatpush1.msra.mxu0 0.0
      %3297 = vmatprep.subr.mxu0 0.0
      %3298 = vmatpush1.msra.mxu0 0.0
      %3299 = vmatprep.subr.mxu0 0.0
      %3300 = vmatpush1.msra.mxu0 0.0
      %3301 = vmatprep.subr.mxu0 0.0
      %3302 = vmatpush1.msra.mxu0 0.0
      %3303 = vmatprep.subr.mxu0 0.0
      %3304 = vmatpush1.msra.mxu0 0.0
      %3305 = vmatprep.subr.mxu0 0.0
      %3306 = vmatpush1.msra.mxu0 0.0
      %3307 = vmatprep.subr.mxu0 0.0
      %3308 = vmatpush1.msra.mxu0 0.0
      %3309 = vmatprep.subr.mxu0 0.0
      %3310 = vmatpush1.msra.mxu0 0.0
      %3311 = vmatprep.subr.mxu0 0.0
      %3312 = vmatpush1.msra.mxu0 0.0
      %3313 = vmatprep.subr.mxu0 0.0
      %3314 = vmatpush1.msra.mxu0 0.0
      %3315 = vmatprep.subr.mxu0 0.0
      %3316 = vmatpush1.msra.mxu0 0.0
      %3317 = vmatprep.subr.mxu0 0.0
      %3318 = vmatpush1.msra.mxu0 0.0
      %3319 = vmatprep.subr.mxu0 0.0
      %3320 = vmatpush1.msra.mxu0 0.0
      %3321 = vmatprep.subr.mxu0 0.0
      %3322 = vmatpush1.msra.mxu0 0.0
      %3323 = vmatprep.subr.mxu0 0.0
      %3324 = vmatpush1.msra.mxu0 0.0
      %3325 = vmatprep.subr.mxu0 0.0
      %3326 = vmatpush1.msra.mxu0 0.0
      %3327 = vmatprep.subr.mxu0 0.0
      %3328 = vmatpush1.msra.mxu0 0.0
      %3329 = vmatprep.subr.mxu0 0.0
      %3330 = vmatpush1.msra.mxu0 0.0
      %3331 = vmatprep.subr.mxu0 0.0
      %3332 = vmatpush1.msra.mxu0 0.0
      %3333 = vmatprep.subr.mxu0 0.0
      %3334 = vmatpush1.msra.mxu0 0.0
      %3335 = vmatprep.subr.mxu0 0.0
      %3336 = vmatpush1.msra.mxu0 0.0
      %3337 = vmatprep.subr.mxu0 0.0
      %3338 = vmatpush1.msra.mxu0 0.0
      %3339 = vmatprep.subr.mxu0 0.0
      %3340 = vmatpush1.msra.mxu0 0.0
      %3341 = vmatprep.subr.mxu0 0.0
      %3342 = vmatpush1.msra.mxu0 0.0
      %3343 = vmatprep.mubr.f32.mxu0 0.0
      %3344 = vmatmul.mubr.f32.gmra.mrb[0].mxu0 %v3274
      %v3345 = vpop.f32.mrb[0].mxu0
      %v3346 = vadd.f32 %v3271, %v3345
      %v3347 = vpop.f32.mrb[0].mxu0
      %3348 = vmatprep.mubr.f32.mxu0 0.0
      %3349 = vmatmul.mubr.f32.gmra.mrb[0].mxu0 %v3277
      %v3350 = vpop.f32.mrb[0].mxu0
      %v3351 = vadd.f32 %v3271, %v3350
      %v3352 = vpop.f32.mrb[0].mxu0
      %3353 = vdwg.mxu0
      %v3354 = vmul.f32 %v3346, 0.5
      %v3355 = vmul.f32 %v3351, 0.5
      %v3356 = vmul.f32 %v3346, 0.70710677
      %v3357 = vmul.f32 %v3351, 0.70710677
      %v3358 = verf.f32.pop %v3356
      %v3359 = verf.f32.pop %v3357
      %v3360 = vadd.f32 %v3358, 1.0
      %v3361 = vadd.f32 %v3359, 1.0
      %v3362 = vmul.f32 %v3354, %v3360
      %v3363 = vmul.f32 %v3355, %v3361
      %3364 = vmatprep.subr.mxu0 0.0
      %3365 = vmatpush1.msra.mxu0 %v792
      %3366 = vmatprep.subr.mxu0 0.0
      %3367 = vmatpush1.msra.mxu0 %v793
      %3368 = vmatprep.subr.mxu0 0.0
      %3369 = vmatpush1.msra.mxu0 %v794
      %3370 = vmatprep.subr.mxu0 0.0
      %3371 = vmatpush1.msra.mxu0 %v795
      %3372 = vmatprep.subr.mxu0 0.0
      %3373 = vmatpush1.msra.mxu0 %v796
      %3374 = vmatprep.subr.mxu0 0.0
      %3375 = vmatpush1.msra.mxu0 %v797
      %3376 = vmatprep.subr.mxu0 0.0
      %3377 = vmatpush1.msra.mxu0 %v798
      %3378 = vmatprep.subr.mxu0 0.0
      %3379 = vmatpush1.msra.mxu0 %v799
      %3380 = vmatprep.subr.mxu0 0.0
      %3381 = vmatpush1.msra.mxu0 %v800
      %3382 = vmatprep.subr.mxu0 0.0
      %3383 = vmatpush1.msra.mxu0 %v801
      %3384 = vmatprep.subr.mxu0 0.0
      %3385 = vmatpush1.msra.mxu0 %v802
      %3386 = vmatprep.subr.mxu0 0.0
      %3387 = vmatpush1.msra.mxu0 %v803
      %3388 = vmatprep.subr.mxu0 0.0
      %3389 = vmatpush1.msra.mxu0 %v804
      %3390 = vmatprep.subr.mxu0 0.0
      %3391 = vmatpush1.msra.mxu0 %v805
      %3392 = vmatprep.subr.mxu0 0.0
      %3393 = vmatpush1.msra.mxu0 %v806
      %3394 = vmatprep.subr.mxu0 0.0
      %3395 = vmatpush1.msra.mxu0 %v807
      %3396 = vmatprep.subr.mxu0 0.0
      %3397 = vmatpush1.msra.mxu0 0.0
      %3398 = vmatprep.subr.mxu0 0.0
      %3399 = vmatpush1.msra.mxu0 0.0
      %3400 = vmatprep.subr.mxu0 0.0
      %3401 = vmatpush1.msra.mxu0 0.0
      %3402 = vmatprep.subr.mxu0 0.0
      %3403 = vmatpush1.msra.mxu0 0.0
      %3404 = vmatprep.subr.mxu0 0.0
      %3405 = vmatpush1.msra.mxu0 0.0
      %3406 = vmatprep.subr.mxu0 0.0
      %3407 = vmatpush1.msra.mxu0 0.0
      %3408 = vmatprep.subr.mxu0 0.0
      %3409 = vmatpush1.msra.mxu0 0.0
      %3410 = vmatprep.subr.mxu0 0.0
      %3411 = vmatpush1.msra.mxu0 0.0
      %3412 = vmatprep.subr.mxu0 0.0
      %3413 = vmatpush1.msra.mxu0 0.0
      %3414 = vmatprep.subr.mxu0 0.0
      %3415 = vmatpush1.msra.mxu0 0.0
      %3416 = vmatprep.subr.mxu0 0.0
      %3417 = vmatpush1.msra.mxu0 0.0
      %3418 = vmatprep.subr.mxu0 0.0
      %3419 = vmatpush1.msra.mxu0 0.0
      %3420 = vmatprep.subr.mxu0 0.0
      %3421 = vmatpush1.msra.mxu0 0.0
      %3422 = vmatprep.subr.mxu0 0.0
      %3423 = vmatpush1.msra.mxu0 0.0
      %3424 = vmatprep.subr.mxu0 0.0
      %3425 = vmatpush1.msra.mxu0 0.0
      %3426 = vmatprep.subr.mxu0 0.0
      %3427 = vmatpush1.msra.mxu0 0.0
      %3428 = vmatprep.mubr.f32.mxu0 0.0
      %3429 = vmatmul.mubr.f32.gmra.mrb[0].mxu0 %v3362
      %v3430 = vpop.f32.mrb[0].mxu0
      %v3431 = vadd.f32 0.0, %v3430
      %v3432 = vpop.f32.mrb[0].mxu0
      %3433 = vmatprep.mubr.f32.mxu0 0.0
      %3434 = vmatmul.mubr.f32.gmra.mrb[0].mxu0 %v3363
      %v3435 = vpop.f32.mrb[0].mxu0
      %v3436 = vadd.f32 0.0, %v3435
      %v3437 = vpop.f32.mrb[0].mxu0
      %3438 = vdwg.mxu0
      %v3439 = vadd.f32 %v3223, %v3431
      %v3440 = vadd.f32 %v3224, %v3436
      %v3442 = vlaneseq
      %v3443 = vshrl.u32 %v3442, 7
      %v3444 = vsub.s32 0, %v3443
      %v3445 = vrot.slane %v809, %v3444
      %v3447 = vadd.f32 %v3439, %v3445
      %v3448 = vadd.f32 %v3440, %v3445
      %v3449 = vld [vmem:[%s19] sm:$0x1]
      %v3450 = vld [vmem:[%s20] sm:$0x1]
      %v3451 = vsel %vm810, %v3447, 0.0
      %3452 = vadd.xlane.f32.xlu0 %v3451
      %v3453 = vpop.xlane.xlu0 %3452
      %v3454 = vsel %vm814, %v3448, 0.0
      %3455 = vadd.xlane.f32.xlu0 %v3454
      %v3456 = vpop.xlane.xlu0 %3455
      %v3457 = vmul.f32 %v3453, %v818
      %v3458 = vmul.f32 %v3456, %v818
      %v3459 = vsub.f32 %v3447, %v3457
      %v3460 = vsub.f32 %v3448, %v3458
      %v3461 = vmul.f32 %v3459, %v3459
      %v3462 = vmul.f32 %v3460, %v3460
      %v3463 = vsel %vm810, %v3461, 0.0
      %3464 = vadd.xlane.f32.xlu0 %v3463
      %v3465 = vpop.xlane.xlu0 %3464
      %v3466 = vsel %vm814, %v3462, 0.0
      %3467 = vadd.xlane.f32.xlu0 %v3466
      %v3468 = vpop.xlane.xlu0 %3467
      %v3469 = vmul.f32 %v3465, %v818
      %v3470 = vmul.f32 %v3468, %v818
      %v3471 = vadd.f32 %v3469, 1e-05
      %v3472 = vadd.f32 %v3470, 1e-05
      %v3473 = vrsqrt.pop %v3471
      %v3474 = vrsqrt.pop %v3472
      %v3475 = vmul.f32 %v3459, %v3473
      %v3476 = vmul.f32 %v3460, %v3474
      %v3478 = vlaneseq
      %v3479 = vshrl.u32 %v3478, 7
      %v3480 = vsub.s32 0, %v3479
      %v3481 = vrot.slane %v3449, %v3480
      %v3483 = vmul.f32 %v3475, %v3481
      %v3484 = vmul.f32 %v3476, %v3481
      %v3486 = vlaneseq
      %v3487 = vshrl.u32 %v3486, 7
      %v3488 = vsub.s32 0, %v3487
      %v3489 = vrot.slane %v3450, %v3488
      %v3491 = vadd.f32 %v3483, %v3489
      %v3492 = vadd.f32 %v3484, %v3489
      %v3493 = vld [vmem:[%s2] sm:$0xff]
      %v3494 = vld [vmem:[%s2 + $0x8] sm:$0x3]
      %v3495 = vld [vmem:[%s2 + $0x10] sm:$0xff]
      %v3496 = vld [vmem:[%s2 + $0x18] sm:$0x3]
      %v3497 = vld [vmem:[%s2 + $0x20] sm:$0xff]
      %v3498 = vld [vmem:[%s2 + $0x28] sm:$0x3]
      %v3499 = vld [vmem:[%s2 + $0x30] sm:$0xff]
      %v3500 = vld [vmem:[%s2 + $0x38] sm:$0x3]
      %v3501 = vld [vmem:[%s2 + $0x40] sm:$0xff]
      %v3502 = vld [vmem:[%s2 + $0x48] sm:$0x3]
      %v3503 = vld [vmem:[%s2 + $0x50] sm:$0xff]
      %v3504 = vld [vmem:[%s2 + $0x58] sm:$0x3]
      %v3505 = vld [vmem:[%s21] sm:$0xff]
      %v3506 = vld [vmem:[%s21 + $0x8] sm:$0xff]
      %v3507 = vld [vmem:[%s21 + $0x10] sm:$0xff]
      %v3508 = vld [vmem:[%s21 + $0x18] sm:$0xff]
      %v3509 = vld [vmem:[%s21 + $0x20] sm:$0xff]
      %v3510 = vld [vmem:[%s21 + $0x28] sm:$0xff]
      %v3511 = vld [vmem:[%s21 + $0x30] sm:$0xff]
      %v3512 = vld [vmem:[%s21 + $0x38] sm:$0xff]
      %v3513 = vld [vmem:[%s21 + $0x40] sm:$0xff]
      %v3514 = vld [vmem:[%s21 + $0x48] sm:$0xff]
      %v3515 = vld [vmem:[%s21 + $0x50] sm:$0xff]
      %v3516 = vld [vmem:[%s21 + $0x58] sm:$0xff]
      %v3517 = vld [vmem:[%s21 + $0x60] sm:$0xff]
      %v3518 = vld [vmem:[%s21 + $0x68] sm:$0xff]
      %v3519 = vld [vmem:[%s21 + $0x70] sm:$0xff]
      %v3520 = vld [vmem:[%s21 + $0x78] sm:$0xff]
      %v3521 = vld [vmem:[%s21 + $0x80] sm:$0xff]
      %v3522 = vld [vmem:[%s21 + $0x88] sm:$0xff]
      %v3523 = vld [vmem:[%s21 + $0x90] sm:$0xff]
      %v3524 = vld [vmem:[%s21 + $0x98] sm:$0xff]
      %v3525 = vld [vmem:[%s21 + $0xa0] sm:$0xff]
      %v3526 = vld [vmem:[%s21 + $0xa8] sm:$0xff]
      %v3527 = vld [vmem:[%s21 + $0xb0] sm:$0xff]
      %v3528 = vld [vmem:[%s21 + $0xb8] sm:$0xff]
      %3530 = vset.pattern.permute.xlu0 0
      %3531 = vperm.xlu0 %3530, %v3493
      %v3532 = vpop.permute.xlu0 %3531
      %3535 = vset.pattern.permute.xlu0 0
      %3536 = vperm.xlu0 %3535, %v3494
      %v3537 = vpop.permute.xlu0 %3536
      %v3539 = vmul.f32 %v3491, %v3532
      %v3540 = vmul.f32 %v3492, %v3537
      %3542 = vset.pattern.permute.xlu0 0
      %3543 = vperm.xlu0 %3542, %v3495
      %v3544 = vpop.permute.xlu0 %3543
      %3547 = vset.pattern.permute.xlu0 0
      %3548 = vperm.xlu0 %3547, %v3496
      %v3549 = vpop.permute.xlu0 %3548
      %v3551 = vmul.f32 %v3491, %v3544
      %v3552 = vmul.f32 %v3492, %v3549
      %v3554 = vsel %vm810, %v3551, 0
      %v3557 = vsel %vm810, %v3552, 0
      %3559 = vmatprep.subr.mxu0 0.0
      %3560 = vmatpush1.msra.mxu0 %v3509
      %3561 = vmatprep.subr.mxu0 0.0
      %3562 = vmatpush1.msra.mxu0 %v3510
      %3563 = vmatprep.subr.mxu0 0.0
      %3564 = vmatpush1.msra.mxu0 %v3511
      %3565 = vmatprep.subr.mxu0 0.0
      %3566 = vmatpush1.msra.mxu0 %v3512
      %3567 = vmatprep.subr.mxu0 0.0
      %3568 = vmatpush1.msra.mxu0 0.0
      %3569 = vmatprep.subr.mxu0 0.0
      %3570 = vmatpush1.msra.mxu0 0.0
      %3571 = vmatprep.subr.mxu0 0.0
      %3572 = vmatpush1.msra.mxu0 0.0
      %3573 = vmatprep.subr.mxu0 0.0
      %3574 = vmatpush1.msra.mxu0 0.0
      %3575 = vmatprep.subr.mxu0 0.0
      %3576 = vmatpush1.msra.mxu0 0.0
      %3577 = vmatprep.subr.mxu0 0.0
      %3578 = vmatpush1.msra.mxu0 0.0
      %3579 = vmatprep.subr.mxu0 0.0
      %3580 = vmatpush1.msra.mxu0 0.0
      %3581 = vmatprep.subr.mxu0 0.0
      %3582 = vmatpush1.msra.mxu0 0.0
      %3583 = vmatprep.subr.mxu0 0.0
      %3584 = vmatpush1.msra.mxu0 0.0
      %3585 = vmatprep.subr.mxu0 0.0
      %3586 = vmatpush1.msra.mxu0 0.0
      %3587 = vmatprep.subr.mxu0 0.0
      %3588 = vmatpush1.msra.mxu0 0.0
      %3589 = vmatprep.subr.mxu0 0.0
      %3590 = vmatpush1.msra.mxu0 0.0
      %3591 = vmatprep.subr.mxu0 0.0
      %3592 = vmatpush1.msra.mxu0 0.0
      %3593 = vmatprep.subr.mxu0 0.0
      %3594 = vmatpush1.msra.mxu0 0.0
      %3595 = vmatprep.subr.mxu0 0.0
      %3596 = vmatpush1.msra.mxu0 0.0
      %3597 = vmatprep.subr.mxu0 0.0
      %3598 = vmatpush1.msra.mxu0 0.0
      %3599 = vmatprep.subr.mxu0 0.0
      %3600 = vmatpush1.msra.mxu0 0.0
      %3601 = vmatprep.subr.mxu0 0.0
      %3602 = vmatpush1.msra.mxu0 0.0
      %3603 = vmatprep.subr.mxu0 0.0
      %3604 = vmatpush1.msra.mxu0 0.0
      %3605 = vmatprep.subr.mxu0 0.0
      %3606 = vmatpush1.msra.mxu0 0.0
      %3607 = vmatprep.subr.mxu0 0.0
      %3608 = vmatpush1.msra.mxu0 0.0
      %3609 = vmatprep.subr.mxu0 0.0
      %3610 = vmatpush1.msra.mxu0 0.0
      %3611 = vmatprep.subr.mxu0 0.0
      %3612 = vmatpush1.msra.mxu0 0.0
      %3613 = vmatprep.subr.mxu0 0.0
      %3614 = vmatpush1.msra.mxu0 0.0
      %3615 = vmatprep.subr.mxu0 0.0
      %3616 = vmatpush1.msra.mxu0 0.0
      %3617 = vmatprep.subr.mxu0 0.0
      %3618 = vmatpush1.msra.mxu0 0.0
      %3619 = vmatprep.subr.mxu0 0.0
      %3620 = vmatpush1.msra.mxu0 0.0
      %3621 = vmatprep.subr.mxu0 0.0
      %3622 = vmatpush1.msra.mxu0 0.0
      %3623 = vmatprep.mubr.f32.mxu0 0.0
      %3624 = vmatmul.mubr.f32.gmra.mrb[0].mxu0 %v3554
      %v3625 = vpop.f32.mrb[0].mxu0
      %v3626 = vadd.f32 0.0, %v3625
      %v3627 = vpop.f32.mrb[0].mxu0
      %3628 = vmatprep.mubr.f32.mxu0 0.0
      %3629 = vmatmul.mubr.f32.gmra.mrb[0].mxu0 %v3557
      %v3630 = vpop.f32.mrb[0].mxu0
      %v3631 = vadd.f32 0.0, %v3630
      %v3632 = vpop.f32.mrb[0].mxu0
      %3633 = vdwg.mxu0
      %v3635 = vsel %vm810, %v3539, 0
      %v3638 = vsel %vm810, %v3540, 0
      %3640 = vmatprep.subr.mxu0 0.0
      %3641 = vmatpush1.msra.mxu0 %v3505
      %3642 = vmatprep.subr.mxu0 0.0
      %3643 = vmatpush1.msra.mxu0 %v3506
      %3644 = vmatprep.subr.mxu0 0.0
      %3645 = vmatpush1.msra.mxu0 %v3507
      %3646 = vmatprep.subr.mxu0 0.0
      %3647 = vmatpush1.msra.mxu0 %v3508
      %3648 = vmatprep.subr.mxu0 0.0
      %3649 = vmatpush1.msra.mxu0 0.0
      %3650 = vmatprep.subr.mxu0 0.0
      %3651 = vmatpush1.msra.mxu0 0.0
      %3652 = vmatprep.subr.mxu0 0.0
      %3653 = vmatpush1.msra.mxu0 0.0
      %3654 = vmatprep.subr.mxu0 0.0
      %3655 = vmatpush1.msra.mxu0 0.0
      %3656 = vmatprep.subr.mxu0 0.0
      %3657 = vmatpush1.msra.mxu0 0.0
      %3658 = vmatprep.subr.mxu0 0.0
      %3659 = vmatpush1.msra.mxu0 0.0
      %3660 = vmatprep.subr.mxu0 0.0
      %3661 = vmatpush1.msra.mxu0 0.0
      %3662 = vmatprep.subr.mxu0 0.0
      %3663 = vmatpush1.msra.mxu0 0.0
      %3664 = vmatprep.subr.mxu0 0.0
      %3665 = vmatpush1.msra.mxu0 0.0
      %3666 = vmatprep.subr.mxu0 0.0
      %3667 = vmatpush1.msra.mxu0 0.0
      %3668 = vmatprep.subr.mxu0 0.0
      %3669 = vmatpush1.msra.mxu0 0.0
      %3670 = vmatprep.subr.mxu0 0.0
      %3671 = vmatpush1.msra.mxu0 0.0
      %3672 = vmatprep.subr.mxu0 0.0
      %3673 = vmatpush1.msra.mxu0 0.0
      %3674 = vmatprep.subr.mxu0 0.0
      %3675 = vmatpush1.msra.mxu0 0.0
      %3676 = vmatprep.subr.mxu0 0.0
      %3677 = vmatpush1.msra.mxu0 0.0
      %3678 = vmatprep.subr.mxu0 0.0
      %3679 = vmatpush1.msra.mxu0 0.0
      %3680 = vmatprep.subr.mxu0 0.0
      %3681 = vmatpush1.msra.mxu0 0.0
      %3682 = vmatprep.subr.mxu0 0.0
      %3683 = vmatpush1.msra.mxu0 0.0
      %3684 = vmatprep.subr.mxu0 0.0
      %3685 = vmatpush1.msra.mxu0 0.0
      %3686 = vmatprep.subr.mxu0 0.0
      %3687 = vmatpush1.msra.mxu0 0.0
      %3688 = vmatprep.subr.mxu0 0.0
      %3689 = vmatpush1.msra.mxu0 0.0
      %3690 = vmatprep.subr.mxu0 0.0
      %3691 = vmatpush1.msra.mxu0 0.0
      %3692 = vmatprep.subr.mxu0 0.0
      %3693 = vmatpush1.msra.mxu0 0.0
      %3694 = vmatprep.subr.mxu0 0.0
      %3695 = vmatpush1.msra.mxu0 0.0
      %3696 = vmatprep.subr.mxu0 0.0
      %3697 = vmatpush1.msra.mxu0 0.0
      %3698 = vmatprep.subr.mxu0 0.0
      %3699 = vmatpush1.msra.mxu0 0.0
      %3700 = vmatprep.subr.mxu0 0.0
      %3701 = vmatpush1.msra.mxu0 0.0
      %3702 = vmatprep.subr.mxu0 0.0
      %3703 = vmatpush1.msra.mxu0 0.0
      %3704 = vmatprep.mubr.f32.mxu0 0.0
      %3705 = vmatmul.mubr.f32.gmra.mrb[0].mxu0 %v3635
      %v3706 = vpop.f32.mrb[0].mxu0
      %v3707 = vadd.f32 %v3626, %v3706
      %v3708 = vpop.f32.mrb[0].mxu0
      %3709 = vmatprep.mubr.f32.mxu0 0.0
      %3710 = vmatmul.mubr.f32.gmra.mrb[0].mxu0 %v3638
      %v3711 = vpop.f32.mrb[0].mxu0
      %v3712 = vadd.f32 %v3631, %v3711
      %v3713 = vpop.f32.mrb[0].mxu0
      %3714 = vdwg.mxu0
      %3716 = vset.pattern.permute.xlu0 0
      %3717 = vperm.xlu0 %3716, %v3497
      %v3718 = vpop.permute.xlu0 %3717
      %3721 = vset.pattern.permute.xlu0 0
      %3722 = vperm.xlu0 %3721, %v3498
      %v3723 = vpop.permute.xlu0 %3722
      %v3725 = vmul.f32 %v3491, %v3718
      %v3726 = vmul.f32 %v3492, %v3723
      %v3728 = vsel %vm810, %v3725, 0
      %v3731 = vsel %vm810, %v3726, 0
      %3733 = vmatprep.subr.mxu0 0.0
      %3734 = vmatpush1.msra.mxu0 %v3513
      %3735 = vmatprep.subr.mxu0 0.0
      %3736 = vmatpush1.msra.mxu0 %v3514
      %3737 = vmatprep.subr.mxu0 0.0
      %3738 = vmatpush1.msra.mxu0 %v3515
      %3739 = vmatprep.subr.mxu0 0.0
      %3740 = vmatpush1.msra.mxu0 %v3516
      %3741 = vmatprep.subr.mxu0 0.0
      %3742 = vmatpush1.msra.mxu0 0.0
      %3743 = vmatprep.subr.mxu0 0.0
      %3744 = vmatpush1.msra.mxu0 0.0
      %3745 = vmatprep.subr.mxu0 0.0
      %3746 = vmatpush1.msra.mxu0 0.0
      %3747 = vmatprep.subr.mxu0 0.0
      %3748 = vmatpush1.msra.mxu0 0.0
      %3749 = vmatprep.subr.mxu0 0.0
      %3750 = vmatpush1.msra.mxu0 0.0
      %3751 = vmatprep.subr.mxu0 0.0
      %3752 = vmatpush1.msra.mxu0 0.0
      %3753 = vmatprep.subr.mxu0 0.0
      %3754 = vmatpush1.msra.mxu0 0.0
      %3755 = vmatprep.subr.mxu0 0.0
      %3756 = vmatpush1.msra.mxu0 0.0
      %3757 = vmatprep.subr.mxu0 0.0
      %3758 = vmatpush1.msra.mxu0 0.0
      %3759 = vmatprep.subr.mxu0 0.0
      %3760 = vmatpush1.msra.mxu0 0.0
      %3761 = vmatprep.subr.mxu0 0.0
      %3762 = vmatpush1.msra.mxu0 0.0
      %3763 = vmatprep.subr.mxu0 0.0
      %3764 = vmatpush1.msra.mxu0 0.0
      %3765 = vmatprep.subr.mxu0 0.0
      %3766 = vmatpush1.msra.mxu0 0.0
      %3767 = vmatprep.subr.mxu0 0.0
      %3768 = vmatpush1.msra.mxu0 0.0
      %3769 = vmatprep.subr.mxu0 0.0
      %3770 = vmatpush1.msra.mxu0 0.0
      %3771 = vmatprep.subr.mxu0 0.0
      %3772 = vmatpush1.msra.mxu0 0.0
      %3773 = vmatprep.subr.mxu0 0.0
      %3774 = vmatpush1.msra.mxu0 0.0
      %3775 = vmatprep.subr.mxu0 0.0
      %3776 = vmatpush1.msra.mxu0 0.0
      %3777 = vmatprep.subr.mxu0 0.0
      %3778 = vmatpush1.msra.mxu0 0.0
      %3779 = vmatprep.subr.mxu0 0.0
      %3780 = vmatpush1.msra.mxu0 0.0
      %3781 = vmatprep.subr.mxu0 0.0
      %3782 = vmatpush1.msra.mxu0 0.0
      %3783 = vmatprep.subr.mxu0 0.0
      %3784 = vmatpush1.msra.mxu0 0.0
      %3785 = vmatprep.subr.mxu0 0.0
      %3786 = vmatpush1.msra.mxu0 0.0
      %3787 = vmatprep.subr.mxu0 0.0
      %3788 = vmatpush1.msra.mxu0 0.0
      %3789 = vmatprep.subr.mxu0 0.0
      %3790 = vmatpush1.msra.mxu0 0.0
      %3791 = vmatprep.subr.mxu0 0.0
      %3792 = vmatpush1.msra.mxu0 0.0
      %3793 = vmatprep.subr.mxu0 0.0
      %3794 = vmatpush1.msra.mxu0 0.0
      %3795 = vmatprep.subr.mxu0 0.0
      %3796 = vmatpush1.msra.mxu0 0.0
      %3797 = vmatprep.mubr.f32.mxu0 0.0
      %3798 = vmatmul.mubr.f32.gmra.mrb[0].mxu0 %v3728
      %v3799 = vpop.f32.mrb[0].mxu0
      %v3800 = vadd.f32 0.0, %v3799
      %v3801 = vpop.f32.mrb[0].mxu0
      %3802 = vmatprep.mubr.f32.mxu0 0.0
      %3803 = vmatmul.mubr.f32.gmra.mrb[0].mxu0 %v3731
      %v3804 = vpop.f32.mrb[0].mxu0
      %v3805 = vadd.f32 0.0, %v3804
      %v3806 = vpop.f32.mrb[0].mxu0
      %3807 = vdwg.mxu0
      %v3808 = vadd.f32 %v3707, %v3800
      %v3809 = vadd.f32 %v3712, %v3805
      %3811 = vset.pattern.permute.xlu0 0
      %3812 = vperm.xlu0 %3811, %v3499
      %v3813 = vpop.permute.xlu0 %3812
      %3816 = vset.pattern.permute.xlu0 0
      %3817 = vperm.xlu0 %3816, %v3500
      %v3818 = vpop.permute.xlu0 %3817
      %v3820 = vmul.f32 %v3491, %v3813
      %v3821 = vmul.f32 %v3492, %v3818
      %v3823 = vsel %vm810, %v3820, 0
      %v3826 = vsel %vm810, %v3821, 0
      %3828 = vmatprep.subr.mxu0 0.0
      %3829 = vmatpush1.msra.mxu0 %v3517
      %3830 = vmatprep.subr.mxu0 0.0
      %3831 = vmatpush1.msra.mxu0 %v3518
      %3832 = vmatprep.subr.mxu0 0.0
      %3833 = vmatpush1.msra.mxu0 %v3519
      %3834 = vmatprep.subr.mxu0 0.0
      %3835 = vmatpush1.msra.mxu0 %v3520
      %3836 = vmatprep.subr.mxu0 0.0
      %3837 = vmatpush1.msra.mxu0 0.0
      %3838 = vmatprep.subr.mxu0 0.0
      %3839 = vmatpush1.msra.mxu0 0.0
      %3840 = vmatprep.subr.mxu0 0.0
      %3841 = vmatpush1.msra.mxu0 0.0
      %3842 = vmatprep.subr.mxu0 0.0
      %3843 = vmatpush1.msra.mxu0 0.0
      %3844 = vmatprep.subr.mxu0 0.0
      %3845 = vmatpush1.msra.mxu0 0.0
      %3846 = vmatprep.subr.mxu0 0.0
      %3847 = vmatpush1.msra.mxu0 0.0
      %3848 = vmatprep.subr.mxu0 0.0
      %3849 = vmatpush1.msra.mxu0 0.0
      %3850 = vmatprep.subr.mxu0 0.0
      %3851 = vmatpush1.msra.mxu0 0.0
      %3852 = vmatprep.subr.mxu0 0.0
      %3853 = vmatpush1.msra.mxu0 0.0
      %3854 = vmatprep.subr.mxu0 0.0
      %3855 = vmatpush1.msra.mxu0 0.0
      %3856 = vmatprep.subr.mxu0 0.0
      %3857 = vmatpush1.msra.mxu0 0.0
      %3858 = vmatprep.subr.mxu0 0.0
      %3859 = vmatpush1.msra.mxu0 0.0
      %3860 = vmatprep.subr.mxu0 0.0
      %3861 = vmatpush1.msra.mxu0 0.0
      %3862 = vmatprep.subr.mxu0 0.0
      %3863 = vmatpush1.msra.mxu0 0.0
      %3864 = vmatprep.subr.mxu0 0.0
      %3865 = vmatpush1.msra.mxu0 0.0
      %3866 = vmatprep.subr.mxu0 0.0
      %3867 = vmatpush1.msra.mxu0 0.0
      %3868 = vmatprep.subr.mxu0 0.0
      %3869 = vmatpush1.msra.mxu0 0.0
      %3870 = vmatprep.subr.mxu0 0.0
      %3871 = vmatpush1.msra.mxu0 0.0
      %3872 = vmatprep.subr.mxu0 0.0
      %3873 = vmatpush1.msra.mxu0 0.0
      %3874 = vmatprep.subr.mxu0 0.0
      %3875 = vmatpush1.msra.mxu0 0.0
      %3876 = vmatprep.subr.mxu0 0.0
      %3877 = vmatpush1.msra.mxu0 0.0
      %3878 = vmatprep.subr.mxu0 0.0
      %3879 = vmatpush1.msra.mxu0 0.0
      %3880 = vmatprep.subr.mxu0 0.0
      %3881 = vmatpush1.msra.mxu0 0.0
      %3882 = vmatprep.subr.mxu0 0.0
      %3883 = vmatpush1.msra.mxu0 0.0
      %3884 = vmatprep.subr.mxu0 0.0
      %3885 = vmatpush1.msra.mxu0 0.0
      %3886 = vmatprep.subr.mxu0 0.0
      %3887 = vmatpush1.msra.mxu0 0.0
      %3888 = vmatprep.subr.mxu0 0.0
      %3889 = vmatpush1.msra.mxu0 0.0
      %3890 = vmatprep.subr.mxu0 0.0
      %3891 = vmatpush1.msra.mxu0 0.0
      %3892 = vmatprep.mubr.f32.mxu0 0.0
      %3893 = vmatmul.mubr.f32.gmra.mrb[0].mxu0 %v3823
      %v3894 = vpop.f32.mrb[0].mxu0
      %v3895 = vadd.f32 0.0, %v3894
      %v3896 = vpop.f32.mrb[0].mxu0
      %3897 = vmatprep.mubr.f32.mxu0 0.0
      %3898 = vmatmul.mubr.f32.gmra.mrb[0].mxu0 %v3826
      %v3899 = vpop.f32.mrb[0].mxu0
      %v3900 = vadd.f32 0.0, %v3899
      %v3901 = vpop.f32.mrb[0].mxu0
      %3902 = vdwg.mxu0
      %v3903 = vadd.f32 %v3808, %v3895
      %v3904 = vadd.f32 %v3809, %v3900
      %3906 = vset.pattern.permute.xlu0 0
      %3907 = vperm.xlu0 %3906, %v3501
      %v3908 = vpop.permute.xlu0 %3907
      %3911 = vset.pattern.permute.xlu0 0
      %3912 = vperm.xlu0 %3911, %v3502
      %v3913 = vpop.permute.xlu0 %3912
      %v3915 = vmul.f32 %v3491, %v3908
      %v3916 = vmul.f32 %v3492, %v3913
      %v3918 = vsel %vm810, %v3915, 0
      %v3921 = vsel %vm810, %v3916, 0
      %3923 = vmatprep.subr.mxu0 0.0
      %3924 = vmatpush1.msra.mxu0 %v3521
      %3925 = vmatprep.subr.mxu0 0.0
      %3926 = vmatpush1.msra.mxu0 %v3522
      %3927 = vmatprep.subr.mxu0 0.0
      %3928 = vmatpush1.msra.mxu0 %v3523
      %3929 = vmatprep.subr.mxu0 0.0
      %3930 = vmatpush1.msra.mxu0 %v3524
      %3931 = vmatprep.subr.mxu0 0.0
      %3932 = vmatpush1.msra.mxu0 0.0
      %3933 = vmatprep.subr.mxu0 0.0
      %3934 = vmatpush1.msra.mxu0 0.0
      %3935 = vmatprep.subr.mxu0 0.0
      %3936 = vmatpush1.msra.mxu0 0.0
      %3937 = vmatprep.subr.mxu0 0.0
      %3938 = vmatpush1.msra.mxu0 0.0
      %3939 = vmatprep.subr.mxu0 0.0
      %3940 = vmatpush1.msra.mxu0 0.0
      %3941 = vmatprep.subr.mxu0 0.0
      %3942 = vmatpush1.msra.mxu0 0.0
      %3943 = vmatprep.subr.mxu0 0.0
      %3944 = vmatpush1.msra.mxu0 0.0
      %3945 = vmatprep.subr.mxu0 0.0
      %3946 = vmatpush1.msra.mxu0 0.0
      %3947 = vmatprep.subr.mxu0 0.0
      %3948 = vmatpush1.msra.mxu0 0.0
      %3949 = vmatprep.subr.mxu0 0.0
      %3950 = vmatpush1.msra.mxu0 0.0
      %3951 = vmatprep.subr.mxu0 0.0
      %3952 = vmatpush1.msra.mxu0 0.0
      %3953 = vmatprep.subr.mxu0 0.0
      %3954 = vmatpush1.msra.mxu0 0.0
      %3955 = vmatprep.subr.mxu0 0.0
      %3956 = vmatpush1.msra.mxu0 0.0
      %3957 = vmatprep.subr.mxu0 0.0
      %3958 = vmatpush1.msra.mxu0 0.0
      %3959 = vmatprep.subr.mxu0 0.0
      %3960 = vmatpush1.msra.mxu0 0.0
      %3961 = vmatprep.subr.mxu0 0.0
      %3962 = vmatpush1.msra.mxu0 0.0
      %3963 = vmatprep.subr.mxu0 0.0
      %3964 = vmatpush1.msra.mxu0 0.0
      %3965 = vmatprep.subr.mxu0 0.0
      %3966 = vmatpush1.msra.mxu0 0.0
      %3967 = vmatprep.subr.mxu0 0.0
      %3968 = vmatpush1.msra.mxu0 0.0
      %3969 = vmatprep.subr.mxu0 0.0
      %3970 = vmatpush1.msra.mxu0 0.0
      %3971 = vmatprep.subr.mxu0 0.0
      %3972 = vmatpush1.msra.mxu0 0.0
      %3973 = vmatprep.subr.mxu0 0.0
      %3974 = vmatpush1.msra.mxu0 0.0
      %3975 = vmatprep.subr.mxu0 0.0
      %3976 = vmatpush1.msra.mxu0 0.0
      %3977 = vmatprep.subr.mxu0 0.0
      %3978 = vmatpush1.msra.mxu0 0.0
      %3979 = vmatprep.subr.mxu0 0.0
      %3980 = vmatpush1.msra.mxu0 0.0
      %3981 = vmatprep.subr.mxu0 0.0
      %3982 = vmatpush1.msra.mxu0 0.0
      %3983 = vmatprep.subr.mxu0 0.0
      %3984 = vmatpush1.msra.mxu0 0.0
      %3985 = vmatprep.subr.mxu0 0.0
      %3986 = vmatpush1.msra.mxu0 0.0
      %3987 = vmatprep.mubr.f32.mxu0 0.0
      %3988 = vmatmul.mubr.f32.gmra.mrb[0].mxu0 %v3918
      %v3989 = vpop.f32.mrb[0].mxu0
      %v3990 = vadd.f32 0.0, %v3989
      %v3991 = vpop.f32.mrb[0].mxu0
      %3992 = vmatprep.mubr.f32.mxu0 0.0
      %3993 = vmatmul.mubr.f32.gmra.mrb[0].mxu0 %v3921
      %v3994 = vpop.f32.mrb[0].mxu0
      %v3995 = vadd.f32 0.0, %v3994
      %v3996 = vpop.f32.mrb[0].mxu0
      %3997 = vdwg.mxu0
      %v3998 = vadd.f32 %v3903, %v3990
      %v3999 = vadd.f32 %v3904, %v3995
      %4001 = vset.pattern.permute.xlu0 0
      %4002 = vperm.xlu0 %4001, %v3503
      %v4003 = vpop.permute.xlu0 %4002
      %4006 = vset.pattern.permute.xlu0 0
      %4007 = vperm.xlu0 %4006, %v3504
      %v4008 = vpop.permute.xlu0 %4007
      %v4010 = vmul.f32 %v3491, %v4003
      %v4011 = vmul.f32 %v3492, %v4008
      %v4013 = vsel %vm810, %v4010, 0
      %v4016 = vsel %vm810, %v4011, 0
      %4018 = vmatprep.subr.mxu0 0.0
      %4019 = vmatpush1.msra.mxu0 %v3525
      %4020 = vmatprep.subr.mxu0 0.0
      %4021 = vmatpush1.msra.mxu0 %v3526
      %4022 = vmatprep.subr.mxu0 0.0
      %4023 = vmatpush1.msra.mxu0 %v3527
      %4024 = vmatprep.subr.mxu0 0.0
      %4025 = vmatpush1.msra.mxu0 %v3528
      %4026 = vmatprep.subr.mxu0 0.0
      %4027 = vmatpush1.msra.mxu0 0.0
      %4028 = vmatprep.subr.mxu0 0.0
      %4029 = vmatpush1.msra.mxu0 0.0
      %4030 = vmatprep.subr.mxu0 0.0
      %4031 = vmatpush1.msra.mxu0 0.0
      %4032 = vmatprep.subr.mxu0 0.0
      %4033 = vmatpush1.msra.mxu0 0.0
      %4034 = vmatprep.subr.mxu0 0.0
      %4035 = vmatpush1.msra.mxu0 0.0
      %4036 = vmatprep.subr.mxu0 0.0
      %4037 = vmatpush1.msra.mxu0 0.0
      %4038 = vmatprep.subr.mxu0 0.0
      %4039 = vmatpush1.msra.mxu0 0.0
      %4040 = vmatprep.subr.mxu0 0.0
      %4041 = vmatpush1.msra.mxu0 0.0
      %4042 = vmatprep.subr.mxu0 0.0
      %4043 = vmatpush1.msra.mxu0 0.0
      %4044 = vmatprep.subr.mxu0 0.0
      %4045 = vmatpush1.msra.mxu0 0.0
      %4046 = vmatprep.subr.mxu0 0.0
      %4047 = vmatpush1.msra.mxu0 0.0
      %4048 = vmatprep.subr.mxu0 0.0
      %4049 = vmatpush1.msra.mxu0 0.0
      %4050 = vmatprep.subr.mxu0 0.0
      %4051 = vmatpush1.msra.mxu0 0.0
      %4052 = vmatprep.subr.mxu0 0.0
      %4053 = vmatpush1.msra.mxu0 0.0
      %4054 = vmatprep.subr.mxu0 0.0
      %4055 = vmatpush1.msra.mxu0 0.0
      %4056 = vmatprep.subr.mxu0 0.0
      %4057 = vmatpush1.msra.mxu0 0.0
      %4058 = vmatprep.subr.mxu0 0.0
      %4059 = vmatpush1.msra.mxu0 0.0
      %4060 = vmatprep.subr.mxu0 0.0
      %4061 = vmatpush1.msra.mxu0 0.0
      %4062 = vmatprep.subr.mxu0 0.0
      %4063 = vmatpush1.msra.mxu0 0.0
      %4064 = vmatprep.subr.mxu0 0.0
      %4065 = vmatpush1.msra.mxu0 0.0
      %4066 = vmatprep.subr.mxu0 0.0
      %4067 = vmatpush1.msra.mxu0 0.0
      %4068 = vmatprep.subr.mxu0 0.0
      %4069 = vmatpush1.msra.mxu0 0.0
      %4070 = vmatprep.subr.mxu0 0.0
      %4071 = vmatpush1.msra.mxu0 0.0
      %4072 = vmatprep.subr.mxu0 0.0
      %4073 = vmatpush1.msra.mxu0 0.0
      %4074 = vmatprep.subr.mxu0 0.0
      %4075 = vmatpush1.msra.mxu0 0.0
      %4076 = vmatprep.subr.mxu0 0.0
      %4077 = vmatpush1.msra.mxu0 0.0
      %4078 = vmatprep.subr.mxu0 0.0
      %4079 = vmatpush1.msra.mxu0 0.0
      %4080 = vmatprep.subr.mxu0 0.0
      %4081 = vmatpush1.msra.mxu0 0.0
      %4082 = vmatprep.mubr.f32.mxu0 0.0
      %4083 = vmatmul.mubr.f32.gmra.mrb[0].mxu0 %v4013
      %v4084 = vpop.f32.mrb[0].mxu0
      %v4085 = vadd.f32 0.0, %v4084
      %v4086 = vpop.f32.mrb[0].mxu0
      %4087 = vmatprep.mubr.f32.mxu0 0.0
      %4088 = vmatmul.mubr.f32.gmra.mrb[0].mxu0 %v4016
      %v4089 = vpop.f32.mrb[0].mxu0
      %v4090 = vadd.f32 0.0, %v4089
      %v4091 = vpop.f32.mrb[0].mxu0
      %4092 = vdwg.mxu0
      %v4093 = vadd.f32 %v3998, %v4085
      %v4094 = vadd.f32 %v3999, %v4090
      %4095 = vst [vmem:[%s683] sm:$0xff] %v4093
      %4096 = vst [vmem:[%s683 + $0x8] sm:$0x3] %v4094
      %p4097 = scmp.lt.s32.totalorder %s33, 1
      %s4098 = scalar_select %p4097, %s33, 1
      %s4099 = smul.addr %s4098, 2
      %s4100 = smul.addr %s4099, 8
      %s4101 = scalar_lea.vmem %s22, %s4100
      // Predicated region
      $region109: #{tpu_custom_call.1} parent=107 // pred_check
        %p4102 = pneg %p518
      $region110: #{tpu_custom_call.1} parent=107 // pred_check_branch
        %4104 = sbr.rel (%p4102) target = $region112
      $region111: #{tpu_custom_call.1} parent=107 // pred_region
        _
      $region112: #{tpu_custom_call.1} parent=107 // pred_fallthru
        _
    $region108: #{tpu_custom_call.1} parent=5 // pred_fallthru
      _
    %p4105 = scmp.le.s32.totalorder 2, %s28
    // Predicated region
    $region113: #{tpu_custom_call.1} parent=5 // pred_check
      %p4106 = pneg %p4105
    $region114: #{tpu_custom_call.1} parent=5 // pred_check_branch
      %4108 = sbr.rel (%p4106) target = $region116
    $region115: #{tpu_custom_call.1} parent=5 // pred_region
      %s4109 = ssub.s32 %s28, 2
      // Predicated region
      $region117: #{tpu_custom_call.1} parent=115 // pred_check
        %p4110 = pneg %p524
      $region118: #{tpu_custom_call.1} parent=115 // pred_check_branch
        %4112 = sbr.rel (%p4110) target = $region120
      $region119: #{tpu_custom_call.1} parent=115 // pred_region
        %p4113 = scmp.lt.s32.totalorder %s34, 1
        %s4114 = scalar_select %p4113, %s34, 1
        %s4115 = smul.addr %s4114, 2
        %s4116 = smul.addr %s4115, 8
        %s4117 = scalar_lea.vmem %s22, %s4116
      $region120: #{tpu_custom_call.1} parent=115 // pred_fallthru
        _
    $region116: #{tpu_custom_call.1} parent=5 // pred_fallthru
      _
  $region6: #{tpu_custom_call.1} parent=0 // loop_footer
    %s32 = sadd.s32 1, %s28
  $region7: #{tpu_custom_call.1} parent=0 // loop_footer_branch
    %27 = sbr.rel target = $region3
  $region8: #{tpu_custom_call.1} parent=0 // loop_exit
    _

</llo_original>
